<compile_context>
chip_gen: v7x
topology: tpu7x:2x2x1
jax: 0.10.0
libtpu: 0.0.40
codegen_flags: <defaults>
</compile_context>

<pallas_src>
import numpy as np

import jax
import jax.numpy as jnp
from jax import lax, random
from jax.experimental import pallas as pl
from jax.experimental.pallas import tpu as pltpu

START_TAG = "<START>"
STOP_TAG = "<STOP>"

# bf16 MXU operands (f32 accumulate / f32 elementwise).  Recommended for
# v5e/v6e/v7x whose MXUs are bf16-native; set False for a bit-exact f32 path.
USE_BF16_MXU = True
K_PAD = 128          # lane-dense padded tag width for the feats output


# ----------------------------------------------------------------------------
# Fused kernel: masked packed BiLSTM + hidden2tag + Viterbi decode
# ----------------------------------------------------------------------------
def make_fused_kernel(start_idx, stop_idx):
    def kernel(embeds_ref, lens_ref,
               wx_ref, wh_ref, b_ref,
               wtag_ref, btag_ref, trans_ref,
               feats_ref, scores_ref, paths_ref,
               gx_scr, out_scr, bp_scr, mcomb_scr, meq_scr):
        T = paths_ref.shape[0]
        B = paths_ref.shape[1]
        H = wh_ref.shape[0]
        K = trans_ref.shape[0]
        B2 = 2 * B
        mxu_dtype = wh_ref.dtype

        # ---- sequence-length masks, computed once ---------------------------
        lens_all = lens_ref[...]                              # [2B,1] (fwd,bwd)
        t_iota2 = lax.broadcasted_iota(jnp.int32, (T, B2, 1), 0)
        r_iota2 = lax.broadcasted_iota(jnp.int32, (T, B2, 1), 1)
        eff_t = jnp.where(r_iota2 < B, t_iota2, T - 1 - t_iota2)
        mcomb_scr[...] = (eff_t < lens_all[None, :, :]).astype(jnp.float32)

        t_iota1 = lax.broadcasted_iota(jnp.int32, (T, B, 1), 0)
        lens_fwd = lens_all[:B][None, :, :]                   # [1,B,1]
        meq_scr[...] = ((t_iota1 + 1) == lens_fwd).astype(jnp.float32)

        # ---- input projection hoisted out of the recurrence -----------------
        # rows t*2B..t*2B+B-1: fwd gates for time t; next B rows: bwd gates for
        # time T-1-t (embeds pre-arranged that way in the wrapper).
        gx_scr[...] = (jnp.dot(embeds_ref[...], wx_ref[...],
                               preferred_element_type=jnp.float32)
                       + b_ref[...])

        # ---- packed bidirectional LSTM recurrence ----------------------------
        wh = wh_ref[...]                                      # [H, 8H]
        is_fwd = lax.broadcasted_iota(jnp.int32, (B2, 1), 0) < B

        def lstm_body(t, carry):
            h, c = carry                                      # [2B,H] f32 each
            gx = gx_scr[pl.ds(t * B2, B2), :]                 # [2B,8H]
            g = gx + jnp.dot(h.astype(mxu_dtype), wh,
                             preferred_element_type=jnp.float32)
            sg = jax.nn.sigmoid(g[:, :6 * H])                 # [2B,6H]
            tg = jnp.tanh(g[:, 6 * H:])                       # [2B,2H]
            # select this row-group's (fwd vs bwd) gate columns
            i_g = jnp.where(is_fwd, sg[:, 0:H], sg[:, 3 * H:4 * H])
            f_g = jnp.where(is_fwd, sg[:, H:2 * H], sg[:, 4 * H:5 * H])
            o_g = jnp.where(is_fwd, sg[:, 2 * H:3 * H], sg[:, 5 * H:6 * H])
            g_g = jnp.where(is_fwd, tg[:, 0:H], tg[:, H:2 * H])
            c_new = f_g * c + i_g * g_g
            h_new = o_g * jnp.tanh(c_new)
            m = mcomb_scr[t]                                  # [2B,1]
            h = m * h_new + (1.0 - m) * h
            c = m * c_new + (1.0 - m) * c
            hm = m * h                                        # 0 on padding
            out_scr[pl.ds(t * B, B), 0:H] = hm[0:B]                   # fwd @ t
            out_scr[pl.ds((T - 1 - t) * B, B), H:2 * H] = hm[B:B2]    # bwd @ T-1-t
            return (h, c)

        zeros = jnp.zeros((B2, H), jnp.float32)
        lax.fori_loop(0, T, lstm_body, (zeros, zeros), unroll=True)

        # ---- hidden2tag: single lane-dense matmul ----------------------------
        feats_ref[...] = (jnp.dot(out_scr[...].astype(mxu_dtype), wtag_ref[...],
                                  preferred_element_type=jnp.float32)
                          + btag_ref[...])

        # ---- Viterbi forward recursion ---------------------------------------
        col_iota = lax.broadcasted_iota(jnp.int32, (B, K), 1)
        iota3 = lax.broadcasted_iota(jnp.int32, (B, K, K), 2)        # hoisted
        trans3 = jnp.broadcast_to(trans_ref[...][None, :, :], (B, K, K))
        stop_row = trans_ref[stop_idx:stop_idx + 1, :]               # [1,K]
        pre0 = jnp.where(col_iota == start_idx, 0.0,
                         -10000.0).astype(jnp.float32)

        def vit_body(t, pre):
            # feat[b, j] is constant over the reduced axis i -> add after max
            base = pre[:, None, :] + trans3                          # [B,K,K]
            maxb = jnp.max(base, axis=-1)                            # [B,K]
            is_max = base == maxb[:, :, None]
            idx = jnp.min(jnp.where(is_max, iota3, K),
                          axis=-1).astype(jnp.int32)                 # first max
            bp_scr[t] = idx
            feat = feats_ref[pl.ds(t * B, B), :][:, :K]              # [B,K]
            m = mcomb_scr[t][:B]                                     # lens > t
            pre = m * (maxb + feat) + (1.0 - m) * pre
            pre = pre + meq_scr[t] * stop_row                        # lens==t+1
            return pre

        pre = lax.fori_loop(0, T, vit_body, pre0, unroll=True)

        scores = jnp.max(pre, axis=-1, keepdims=True)                # [B,1]
        is_max = pre == scores
        idx0 = jnp.min(jnp.where(is_max, col_iota, K), axis=-1,
                       keepdims=True).astype(jnp.int32)              # [B,1]
        scores_ref[...] = scores
        paths_ref[T - 1] = idx0

        # ---- backtrack (gather through bp[0] dropped, matching torch) -------
        def bt_body(k, idx):
            t = T - k
            bp_t = bp_scr[t]                                         # [B,K]
            onehot = col_iota == idx
            new_idx = jnp.sum(jnp.where(onehot, bp_t, 0), axis=-1,
                              keepdims=True).astype(jnp.int32)
            paths_ref[t - 1] = new_idx
            return new_idx

        lax.fori_loop(1, T, bt_body, idx0, unroll=True)

    return kernel


# ----------------------------------------------------------------------------
# Parameter setup (deterministic, in-script) + weight packing + wrapper
# ----------------------------------------------------------------------------
def init_params(key, vocab_size, embedding_dim, hidden_dim, tag_to_ix):
    K = len(tag_to_ix)
    H = hidden_dim // 2
    ks = random.split(key, 12)
    p = {}
    p["emb"] = random.normal(ks[0], (vocab_size, embedding_dim), jnp.float32) * 0.1

    def lstm_dir(k1, k2, k3, k4):
        return (random.normal(k1, (4 * H, embedding_dim), jnp.float32) * 0.1,
                random.normal(k2, (4 * H, H), jnp.float32) * 0.1,
                random.normal(k3, (4 * H,), jnp.float32) * 0.1,
                random.normal(k4, (4 * H,), jnp.float32) * 0.1)

    p["w_ih_f"], p["w_hh_f"], p["b_ih_f"], p["b_hh_f"] = lstm_dir(ks[1], ks[2], ks[3], ks[4])
    p["w_ih_b"], p["w_hh_b"], p["b_ih_b"], p["b_hh_b"] = lstm_dir(ks[5], ks[6], ks[7], ks[8])
    p["w_tag"] = random.normal(ks[9], (K, hidden_dim), jnp.float32) * 0.1
    p["b_tag"] = random.normal(ks[10], (K,), jnp.float32) * 0.1
    trans = random.normal(ks[11], (K, K), jnp.float32)
    trans = trans.at[tag_to_ix[START_TAG], :].set(-10000.0)
    trans = trans.at[:, tag_to_ix[STOP_TAG]].set(-10000.0)
    p["transitions"] = trans
    return p


def _pack_bilstm(p, H):
    """Fused BiLSTM weights, column layout [i_f f_f o_f | i_b f_b o_b | g_f g_b].

    PyTorch per-direction weights are [4H, X] with gate rows (i, f, g, o)."""
    def cols(w, gates):                       # -> [X, len(gates)*H]
        return jnp.concatenate([w[g * H:(g + 1) * H, :].T for g in gates], axis=1)

    wx = jnp.concatenate([cols(p["w_ih_f"], (0, 1, 3)),
                          cols(p["w_ih_b"], (0, 1, 3)),
                          cols(p["w_ih_f"], (2,)),
                          cols(p["w_ih_b"], (2,))], axis=1)          # [E, 8H]
    wh = jnp.concatenate([cols(p["w_hh_f"], (0, 1, 3)),
                          cols(p["w_hh_b"], (0, 1, 3)),
                          cols(p["w_hh_f"], (2,)),
                          cols(p["w_hh_b"], (2,))], axis=1)          # [H, 8H]

    bf = p["b_ih_f"] + p["b_hh_f"]
    bb = p["b_ih_b"] + p["b_hh_b"]

    def bcols(b, gates):
        return jnp.concatenate([b[g * H:(g + 1) * H] for g in gates])

    bias = jnp.concatenate([bcols(bf, (0, 1, 3)), bcols(bb, (0, 1, 3)),
                            bcols(bf, (2,)), bcols(bb, (2,))]).reshape(1, 8 * H)
    return wx, wh, bias


def bilstm_crf_forward(params, tag_to_ix, sentence, lens):
    B, T = sentence.shape
    H = params["w_hh_f"].shape[1]
    K = params["w_tag"].shape[0]
    E = params["emb"].shape[1]
    start_idx = tag_to_ix[START_TAG]
    stop_idx = tag_to_ix[STOP_TAG]
    mxu_dtype = jnp.bfloat16 if USE_BF16_MXU else jnp.float32

    # --- thin XLA glue: embedding gather + fwd/bwd time arrangement ----------
    # TODO(synk): embedding gather stays in XLA; an in-kernel DMA gather buys
    # nothing at vocab=20 / E=8.
    embeds = jnp.take(params["emb"], sentence, axis=0)                # [B,T,E]
    embeds_t = jnp.transpose(embeds, (1, 0, 2))                       # [T,B,E]
    embeds_comb = jnp.concatenate([embeds_t, embeds_t[::-1]], axis=1) # [T,2B,E]
    embeds_flat = embeds_comb.reshape(T * 2 * B, E).astype(mxu_dtype)

    lens2 = jnp.concatenate([lens, lens]).reshape(2 * B, 1).astype(jnp.int32)

    wx, wh, bias = _pack_bilstm(params, H)
    wtag = jnp.zeros((2 * H, K_PAD), jnp.float32).at[:, :K].set(params["w_tag"].T)
    btag = jnp.zeros((1, K_PAD), jnp.float32).at[0, :K].set(params["b_tag"])
    trans = params["transitions"].astype(jnp.float32)

    wx = wx.astype(mxu_dtype)
    wh = wh.astype(mxu_dtype)
    wtag = wtag.astype(mxu_dtype)
    bias = bias.astype(jnp.float32)       # biases stay f32 (added post-MXU)

    vmem = pl.BlockSpec(memory_space=pltpu.MemorySpace.VMEM)

    feats_flat, scores, paths = pl.pallas_call(
        make_fused_kernel(start_idx, stop_idx),
        out_shape=(jax.ShapeDtypeStruct((T * B, K_PAD), jnp.float32),
                   jax.ShapeDtypeStruct((B, 1), jnp.float32),
                   jax.ShapeDtypeStruct((T, B, 1), jnp.int32)),
        in_specs=[vmem] * 8,
        out_specs=(vmem, vmem, vmem),
        scratch_shapes=[pltpu.VMEM((T * 2 * B, 8 * H), jnp.float32),  # Gx
                        pltpu.VMEM((T * B, 2 * H), jnp.float32),      # LSTM out
                        pltpu.VMEM((T, B, K), jnp.int32),             # backptrs
                        pltpu.VMEM((T, 2 * B, 1), jnp.float32),       # step mask
                        pltpu.VMEM((T, B, 1), jnp.float32)],          # lens==t+1
    )(embeds_flat, lens2, wx, wh, bias, wtag, btag, trans)

    feats = feats_flat[:, :K].reshape(T, B, K)
    return scores[:, 0], jnp.transpose(paths[:, :, 0], (1, 0)), feats


# ----------------------------------------------------------------------------
# Plain-numpy references (mirror the PyTorch module semantics) for self-check
# ----------------------------------------------------------------------------
def _sigmoid(v):
    return 1.0 / (1.0 + np.exp(-v))


def lstm_feats_reference(params, sentence, lens):
    """f32 numpy BiLSTM + hidden2tag (pack/pad semantics). Returns [B,T,K]."""
    B, T = sentence.shape
    H = params["w_hh_f"].shape[1]
    emb = np.asarray(params["emb"])
    x = emb[np.asarray(sentence)]
    lens_np = np.asarray(lens)

    def run_dir(w_ih, w_hh, b_ih, b_hh, reverse):
        w_ih = np.asarray(w_ih); w_hh = np.asarray(w_hh)
        b = np.asarray(b_ih) + np.asarray(b_hh)
        out = np.zeros((B, T, H), np.float32)
        h = np.zeros((B, H), np.float32)
        c = np.zeros((B, H), np.float32)
        ts = range(T - 1, -1, -1) if reverse else range(T)
        for t in ts:
            g = x[:, t, :] @ w_ih.T + h @ w_hh.T + b
            i_g = _sigmoid(g[:, 0:H]); f_g = _sigmoid(g[:, H:2 * H])
            g_g = np.tanh(g[:, 2 * H:3 * H]); o_g = _sigmoid(g[:, 3 * H:4 * H])
            c_new = f_g * c + i_g * g_g
            h_new = o_g * np.tanh(c_new)
            m = (lens_np > t).astype(np.float32)[:, None]
            h = m * h_new + (1 - m) * h
            c = m * c_new + (1 - m) * c
            out[:, t, :] = m * h
        return out

    out_f = run_dir(params["w_ih_f"], params["w_hh_f"],
                    params["b_ih_f"], params["b_hh_f"], False)
    out_b = run_dir(params["w_ih_b"], params["w_hh_b"],
                    params["b_ih_b"], params["b_hh_b"], True)
    cat = np.concatenate([out_f, out_b], -1)
    return cat @ np.asarray(params["w_tag"]).T + np.asarray(params["b_tag"])


def viterbi_reference(feats, lens, trans, start_idx, stop_idx):
    """numpy mirror of BiLSTM_CRF._viterbi_decode; feats is [B,T,K]."""
    B, T, K = feats.shape
    lens_np = np.asarray(lens)
    trans = np.asarray(trans)
    pre = np.full((B, K), -10000.0, np.float32)
    pre[:, start_idx] = 0.0
    bps = []
    c_lens = lens_np.copy()
    for t in range(T):
        feat = feats[:, t, :]
        mat = feat[:, :, None] + pre[:, None, :] + trans[None, :, :]
        nxt = mat.max(-1)
        idx = mat.argmax(-1)
        m = (c_lens > 0).astype(np.float32)[:, None]
        pre = m * nxt + (1 - m) * pre
        bps.append(idx)
        m1 = (c_lens == 1).astype(np.float32)[:, None]
        pre = pre + m1 * trans[stop_idx][None, :]
        c_lens = c_lens - 1
    scores = pre.max(1)
    idx = pre.argmax(1)
    paths = [idx]
    for bp in reversed(bps):
        idx = bp[np.arange(B), idx]
        paths.insert(0, idx)
    paths = np.stack(paths[1:], 1)
    return scores, paths


# ----------------------------------------------------------------------------
if __name__ == "__main__":
    tag_to_ix = {"B": 0, "I": 1, "O": 2, START_TAG: 3, STOP_TAG: 4}
    vocab_size, embedding_dim, hidden_dim = 20, 8, 32
    B, T = 2, 8

    key = random.PRNGKey(0)
    pkey, skey = random.split(key)
    params = init_params(pkey, vocab_size, embedding_dim, hidden_dim, tag_to_ix)

    sentence = random.randint(skey, (B, T), 0, vocab_size, dtype=jnp.int32)
    lens = jnp.array([T, T - 3], dtype=jnp.int32)   # sorted descending, max == T

    scores, paths, feats = bilstm_crf_forward(params, tag_to_ix, sentence, lens)
    jax.block_until_ready((scores, paths, feats))

    start_idx = tag_to_ix[START_TAG]
    stop_idx = tag_to_ix[STOP_TAG]
    lens_np = np.asarray(lens)
    trans_np = np.asarray(params["transitions"])
    tol = 2e-2 if USE_BF16_MXU else 1e-4

    # 1) feats vs full-f32 reference (tolerance matches the MXU operand dtype)
    ref_feats = lstm_feats_reference(params, sentence, lens)          # [B,T,K]
    feats_bt = np.transpose(np.asarray(feats), (1, 0, 2))
    np.testing.assert_allclose(feats_bt, ref_feats, rtol=tol, atol=tol)

    # 2) Viterbi decode must match a numpy decode of the kernel's own feats
    #    (the in-kernel Viterbi recursion is exact f32).
    vit_scores, vit_paths = viterbi_reference(feats_bt, lens_np, trans_np,
                                              start_idx, stop_idx)
    np.testing.assert_allclose(np.asarray(scores), vit_scores,
                               rtol=1e-4, atol=1e-4)
    assert np.array_equal(np.asarray(paths), vit_paths)

    # 3) end-to-end best-path score vs the full-f32 reference (max() is
    #    1-Lipschitz in feats, so this holds even if a near-tie path flips
    #    under bf16 MXU operands).
    ref_scores, _ = viterbi_reference(ref_feats, lens_np, trans_np,
                                      start_idx, stop_idx)
    np.testing.assert_allclose(np.asarray(scores), ref_scores,
                               rtol=tol, atol=5 * tol)

    print("KERNEL_OK")
</pallas_src>

<mosaic_0001>
module attributes {stable_mosaic.version = 11 : i64} {
  func.func @kernel(%arg0: memref<32x8xbf16, #tpu.memory_space<vmem>>, %arg1: memref<4x1xi32, #tpu.memory_space<vmem>>, %arg2: memref<8x128xbf16, #tpu.memory_space<vmem>>, %arg3: memref<16x128xbf16, #tpu.memory_space<vmem>>, %arg4: memref<1x128xf32, #tpu.memory_space<vmem>>, %arg5: memref<32x128xbf16, #tpu.memory_space<vmem>>, %arg6: memref<1x128xf32, #tpu.memory_space<vmem>>, %arg7: memref<5x5xf32, #tpu.memory_space<vmem>>, %arg8: memref<16x128xf32, #tpu.memory_space<vmem>>, %arg9: memref<2x1xf32, #tpu.memory_space<vmem>>, %arg10: memref<8x2x1xi32, #tpu.memory_space<vmem>>, %arg11: memref<32x128xf32, #tpu.memory_space<vmem>>, %arg12: memref<16x32xf32, #tpu.memory_space<vmem>>, %arg13: memref<8x2x5xi32, #tpu.memory_space<vmem>>, %arg14: memref<8x4x1xf32, #tpu.memory_space<vmem>>, %arg15: memref<8x2x1xf32, #tpu.memory_space<vmem>>) attributes {dimension_semantics = [], scalar_prefetch = 0 : i64, scratch_operands = 5 : i64, tpu.core_type = #tpu.core_type<tc>} {
    %c0 = arith.constant 0 : index
    %c0_0 = arith.constant 0 : index
    %0 = vector.load %arg1[%c0, %c0_0] : memref<4x1xi32, #tpu.memory_space<vmem>>, vector<4x1xi32>
    %1 = tpu.iota {dimensions = array<i32: 0>} : vector<8x4x1xi32>
    %2 = tpu.iota {dimensions = array<i32: 1>} : vector<8x4x1xi32>
    %c2_i32 = arith.constant 2 : i32
    %3 = vector.broadcast %c2_i32 : i32 to vector<8x4x1xi32>
    %4 = arith.cmpi slt, %2, %3 : vector<8x4x1xi32>
    %c7_i32 = arith.constant 7 : i32
    %5 = vector.broadcast %c7_i32 : i32 to vector<8x4x1xi32>
    %6 = arith.subi %5, %1 : vector<8x4x1xi32>
    %7 = arith.select %4, %1, %6 : vector<8x4x1xi1>, vector<8x4x1xi32>
    %8 = vector.shape_cast %0 : vector<4x1xi32> to vector<1x4x1xi32>
    %9 = vector.broadcast %8 : vector<1x4x1xi32> to vector<8x4x1xi32>
    %10 = arith.cmpi slt, %7, %9 : vector<8x4x1xi32>
    %11 = arith.extui %10 : vector<8x4x1xi1> to vector<8x4x1xi32>
    %12 = arith.sitofp %11 : vector<8x4x1xi32> to vector<8x4x1xf32>
    %c0_1 = arith.constant 0 : index
    %c0_2 = arith.constant 0 : index
    %c0_3 = arith.constant 0 : index
    %13 = vector.load %arg14[%c0_1, %c0_2, %c0_3] : memref<8x4x1xf32, #tpu.memory_space<vmem>>, vector<8x4x1xf32>
    tpu.vector_store %arg14[%c0_1, %c0_2, %c0_3], %12 {strides = array<i32>} : memref<8x4x1xf32, #tpu.memory_space<vmem>>, vector<8x4x1xf32>,
    %14 = tpu.iota {dimensions = array<i32: 0>} : vector<8x2x1xi32>
    %15 = vector.extract_strided_slice %0 {offsets = [0, 0], sizes = [2, 1], strides = [1, 1]} : vector<4x1xi32> to vector<2x1xi32>
    %16 = vector.shape_cast %15 : vector<2x1xi32> to vector<1x2x1xi32>
    %c1_i32 = arith.constant 1 : i32
    %17 = vector.broadcast %c1_i32 : i32 to vector<8x2x1xi32>
    %18 = arith.addi %14, %17 : vector<8x2x1xi32>
    %19 = vector.broadcast %16 : vector<1x2x1xi32> to vector<8x2x1xi32>
    %20 = arith.cmpi eq, %18, %19 : vector<8x2x1xi32>
    %21 = arith.extui %20 : vector<8x2x1xi1> to vector<8x2x1xi32>
    %22 = arith.sitofp %21 : vector<8x2x1xi32> to vector<8x2x1xf32>
    %c0_4 = arith.constant 0 : index
    %c0_5 = arith.constant 0 : index
    %c0_6 = arith.constant 0 : index
    %23 = vector.load %arg15[%c0_4, %c0_5, %c0_6] : memref<8x2x1xf32, #tpu.memory_space<vmem>>, vector<8x2x1xf32>
    tpu.vector_store %arg15[%c0_4, %c0_5, %c0_6], %22 {strides = array<i32>} : memref<8x2x1xf32, #tpu.memory_space<vmem>>, vector<8x2x1xf32>,
    %c0_7 = arith.constant 0 : index
    %c0_8 = arith.constant 0 : index
    %24 = vector.load %arg0[%c0_7, %c0_8] : memref<32x8xbf16, #tpu.memory_space<vmem>>, vector<32x8xbf16>
    %c0_9 = arith.constant 0 : index
    %c0_10 = arith.constant 0 : index
    %25 = vector.load %arg2[%c0_9, %c0_10] : memref<8x128xbf16, #tpu.memory_space<vmem>>, vector<8x128xbf16>
    %cst = arith.constant dense<0.000000e+00> : vector<32x128xf32>
    %26 = tpu.matmul %24, %25, %cst {dimension_numbers = #tpu.dot_dimension_numbers<[1], [0], [0], [1], [0, 0, 1, 1], [], []>} : vector<32x8xbf16>, vector<8x128xbf16>, vector<32x128xf32> -> vector<32x128xf32>
    %c0_11 = arith.constant 0 : index
    %c0_12 = arith.constant 0 : index
    %27 = vector.load %arg4[%c0_11, %c0_12] : memref<1x128xf32, #tpu.memory_space<vmem>>, vector<1x128xf32>
    %28 = vector.broadcast %27 : vector<1x128xf32> to vector<32x128xf32>
    %29 = arith.addf %26, %28 : vector<32x128xf32>
    %c0_13 = arith.constant 0 : index
    %c0_14 = arith.constant 0 : index
    %30 = vector.load %arg11[%c0_13, %c0_14] : memref<32x128xf32, #tpu.memory_space<vmem>>, vector<32x128xf32>
    tpu.vector_store %arg11[%c0_13, %c0_14], %29 {strides = array<i32>} : memref<32x128xf32, #tpu.memory_space<vmem>>, vector<32x128xf32>,
    %c0_15 = arith.constant 0 : index
    %c0_16 = arith.constant 0 : index
    %31 = vector.load %arg3[%c0_15, %c0_16] : memref<16x128xbf16, #tpu.memory_space<vmem>>, vector<16x128xbf16>
    %32 = tpu.iota {dimensions = array<i32: 0>} : vector<4x1xi32>
    %c2_i32_17 = arith.constant 2 : i32
    %33 = vector.broadcast %c2_i32_17 : i32 to vector<4x1xi32>
    %34 = arith.cmpi slt, %32, %33 : vector<4x1xi32>
    %cst_18 = arith.constant 0.000000e+00 : f32
    %35 = vector.broadcast %cst_18 : f32 to vector<4x16xf32>
    %c0_i32 = arith.constant 0 : i32
    %c4_i32 = arith.constant 4 : i32
    %36 = arith.muli %c0_i32, %c4_i32 : i32
    %37 = arith.index_cast %36 : i32 to index
    %c0_19 = arith.constant 0 : index
    %38 = vector.load %arg11[%37, %c0_19] : memref<32x128xf32, #tpu.memory_space<vmem>>, vector<4x128xf32>
    %39 = arith.truncf %35 : vector<4x16xf32> to vector<4x16xbf16>
    %cst_20 = arith.constant dense<0.000000e+00> : vector<4x128xf32>
    %40 = tpu.matmul %39, %31, %cst_20 {dimension_numbers = #tpu.dot_dimension_numbers<[1], [0], [0], [1], [0, 0, 1, 1], [], []>} : vector<4x16xbf16>, vector<16x128xbf16>, vector<4x128xf32> -> vector<4x128xf32>
    %41 = arith.addf %38, %40 : vector<4x128xf32>
    %42 = vector.extract_strided_slice %41 {offsets = [0, 0], sizes = [4, 96], strides = [1, 1]} : vector<4x128xf32> to vector<4x96xf32>
    %43 = arith.negf %42 : vector<4x96xf32>
    %44 = math.exp %43 : vector<4x96xf32>
    %cst_21 = arith.constant 1.000000e+00 : f32
    %45 = vector.broadcast %cst_21 : f32 to vector<4x96xf32>
    %46 = arith.addf %45, %44 : vector<4x96xf32>
    %47 = arith.divf %45, %46 : vector<4x96xf32>
    %48 = vector.extract_strided_slice %41 {offsets = [0, 96], sizes = [4, 32], strides = [1, 1]} : vector<4x128xf32> to vector<4x32xf32>
    %49 = math.tanh %48 : vector<4x32xf32>
    %50 = vector.extract_strided_slice %47 {offsets = [0, 0], sizes = [4, 16], strides = [1, 1]} : vector<4x96xf32> to vector<4x16xf32>
    %51 = vector.extract_strided_slice %47 {offsets = [0, 48], sizes = [4, 16], strides = [1, 1]} : vector<4x96xf32> to vector<4x16xf32>
    %52 = vector.shape_cast %34 : vector<4x1xi1> to vector<4x1xi1>
    %53 = vector.broadcast %52 : vector<4x1xi1> to vector<4x16xi1>
    %54 = arith.select %53, %50, %51 : vector<4x16xi1>, vector<4x16xf32>
    %55 = vector.extract_strided_slice %47 {offsets = [0, 16], sizes = [4, 16], strides = [1, 1]} : vector<4x96xf32> to vector<4x16xf32>
    %56 = vector.extract_strided_slice %47 {offsets = [0, 64], sizes = [4, 16], strides = [1, 1]} : vector<4x96xf32> to vector<4x16xf32>
    %57 = vector.shape_cast %34 : vector<4x1xi1> to vector<4x1xi1>
    %58 = vector.broadcast %57 : vector<4x1xi1> to vector<4x16xi1>
    %59 = arith.select %58, %55, %56 : vector<4x16xi1>, vector<4x16xf32>
    %60 = vector.extract_strided_slice %47 {offsets = [0, 32], sizes = [4, 16], strides = [1, 1]} : vector<4x96xf32> to vector<4x16xf32>
    %61 = vector.extract_strided_slice %47 {offsets = [0, 80], sizes = [4, 16], strides = [1, 1]} : vector<4x96xf32> to vector<4x16xf32>
    %62 = vector.shape_cast %34 : vector<4x1xi1> to vector<4x1xi1>
    %63 = vector.broadcast %62 : vector<4x1xi1> to vector<4x16xi1>
    %64 = arith.select %63, %60, %61 : vector<4x16xi1>, vector<4x16xf32>
    %65 = vector.extract_strided_slice %49 {offsets = [0, 0], sizes = [4, 16], strides = [1, 1]} : vector<4x32xf32> to vector<4x16xf32>
    %66 = vector.extract_strided_slice %49 {offsets = [0, 16], sizes = [4, 16], strides = [1, 1]} : vector<4x32xf32> to vector<4x16xf32>
    %67 = vector.shape_cast %34 : vector<4x1xi1> to vector<4x1xi1>
    %68 = vector.broadcast %67 : vector<4x1xi1> to vector<4x16xi1>
    %69 = arith.select %68, %65, %66 : vector<4x16xi1>, vector<4x16xf32>
    %70 = arith.mulf %59, %35 : vector<4x16xf32>
    %71 = arith.mulf %54, %69 : vector<4x16xf32>
    %72 = arith.addf %70, %71 : vector<4x16xf32>
    %73 = math.tanh %72 : vector<4x16xf32>
    %74 = arith.mulf %64, %73 : vector<4x16xf32>
    %75 = arith.index_cast %c0_i32 : i32 to index
    %c0_22 = arith.constant 0 : index
    %c0_23 = arith.constant 0 : index
    %76 = vector.load %arg14[%75, %c0_22, %c0_23] : memref<8x4x1xf32, #tpu.memory_space<vmem>>, vector<1x4x1xf32>
    %77 = vector.shape_cast %76 : vector<1x4x1xf32> to vector<4x1xf32>
    %78 = vector.broadcast %77 : vector<4x1xf32> to vector<4x16xf32>
    %79 = arith.mulf %78, %74 : vector<4x16xf32>
    %cst_24 = arith.constant 1.000000e+00 : f32
    %80 = vector.broadcast %cst_24 : f32 to vector<4x1xf32>
    %81 = arith.subf %80, %77 : vector<4x1xf32>
    %82 = vector.broadcast %81 : vector<4x1xf32> to vector<4x16xf32>
    %83 = arith.mulf %82, %35 : vector<4x16xf32>
    %84 = arith.addf %79, %83 : vector<4x16xf32>
    %85 = vector.broadcast %77 : vector<4x1xf32> to vector<4x16xf32>
    %86 = arith.mulf %85, %72 : vector<4x16xf32>
    %cst_25 = arith.constant 1.000000e+00 : f32
    %87 = vector.broadcast %cst_25 : f32 to vector<4x1xf32>
    %88 = arith.subf %87, %77 : vector<4x1xf32>
    %89 = vector.broadcast %88 : vector<4x1xf32> to vector<4x16xf32>
    %90 = arith.mulf %89, %35 : vector<4x16xf32>
    %91 = arith.addf %86, %90 : vector<4x16xf32>
    %92 = vector.broadcast %77 : vector<4x1xf32> to vector<4x16xf32>
    %93 = arith.mulf %92, %84 : vector<4x16xf32>
    %94 = vector.extract_strided_slice %93 {offsets = [0, 0], sizes = [2, 16], strides = [1, 1]} : vector<4x16xf32> to vector<2x16xf32>
    %c2_i32_26 = arith.constant 2 : i32
    %95 = arith.muli %c0_i32, %c2_i32_26 : i32
    %96 = arith.index_cast %95 : i32 to index
    %c0_27 = arith.constant 0 : index
    %97 = vector.load %arg12[%96, %c0_27] : memref<16x32xf32, #tpu.memory_space<vmem>>, vector<2x16xf32>
    tpu.vector_store %arg12[%96, %c0_27], %94 {strides = array<i32>} : memref<16x32xf32, #tpu.memory_space<vmem>>, vector<2x16xf32>,
    %98 = vector.extract_strided_slice %93 {offsets = [2, 0], sizes = [2, 16], strides = [1, 1]} : vector<4x16xf32> to vector<2x16xf32>
    %c7_i32_28 = arith.constant 7 : i32
    %99 = arith.subi %c7_i32_28, %c0_i32 : i32
    %c2_i32_29 = arith.constant 2 : i32
    %100 = arith.muli %99, %c2_i32_29 : i32
    %101 = arith.index_cast %100 : i32 to index
    %c16 = arith.constant 16 : index
    %102 = vector.load %arg12[%101, %c16] : memref<16x32xf32, #tpu.memory_space<vmem>>, vector<2x16xf32>
    tpu.vector_store %arg12[%101, %c16], %98 {strides = array<i32>} : memref<16x32xf32, #tpu.memory_space<vmem>>, vector<2x16xf32>,
    %c1_i32_30 = arith.constant 1 : i32
    %c4_i32_31 = arith.constant 4 : i32
    %103 = arith.muli %c1_i32_30, %c4_i32_31 : i32
    %104 = arith.index_cast %103 : i32 to index
    %c0_32 = arith.constant 0 : index
    %105 = vector.load %arg11[%104, %c0_32] : memref<32x128xf32, #tpu.memory_space<vmem>>, vector<4x128xf32>
    %106 = arith.truncf %84 : vector<4x16xf32> to vector<4x16xbf16>
    %cst_33 = arith.constant dense<0.000000e+00> : vector<4x128xf32>
    %107 = tpu.matmul %106, %31, %cst_33 {dimension_numbers = #tpu.dot_dimension_numbers<[1], [0], [0], [1], [0, 0, 1, 1], [], []>} : vector<4x16xbf16>, vector<16x128xbf16>, vector<4x128xf32> -> vector<4x128xf32>
    %108 = arith.addf %105, %107 : vector<4x128xf32>
    %109 = vector.extract_strided_slice %108 {offsets = [0, 0], sizes = [4, 96], strides = [1, 1]} : vector<4x128xf32> to vector<4x96xf32>
    %110 = arith.negf %109 : vector<4x96xf32>
    %111 = math.exp %110 : vector<4x96xf32>
    %cst_34 = arith.constant 1.000000e+00 : f32
    %112 = vector.broadcast %cst_34 : f32 to vector<4x96xf32>
    %113 = arith.addf %112, %111 : vector<4x96xf32>
    %114 = arith.divf %112, %113 : vector<4x96xf32>
    %115 = vector.extract_strided_slice %108 {offsets = [0, 96], sizes = [4, 32], strides = [1, 1]} : vector<4x128xf32> to vector<4x32xf32>
    %116 = math.tanh %115 : vector<4x32xf32>
    %117 = vector.extract_strided_slice %114 {offsets = [0, 0], sizes = [4, 16], strides = [1, 1]} : vector<4x96xf32> to vector<4x16xf32>
    %118 = vector.extract_strided_slice %114 {offsets = [0, 48], sizes = [4, 16], strides = [1, 1]} : vector<4x96xf32> to vector<4x16xf32>
    %119 = vector.shape_cast %34 : vector<4x1xi1> to vector<4x1xi1>
    %120 = vector.broadcast %119 : vector<4x1xi1> to vector<4x16xi1>
    %121 = arith.select %120, %117, %118 : vector<4x16xi1>, vector<4x16xf32>
    %122 = vector.extract_strided_slice %114 {offsets = [0, 16], sizes = [4, 16], strides = [1, 1]} : vector<4x96xf32> to vector<4x16xf32>
    %123 = vector.extract_strided_slice %114 {offsets = [0, 64], sizes = [4, 16], strides = [1, 1]} : vector<4x96xf32> to vector<4x16xf32>
    %124 = vector.shape_cast %34 : vector<4x1xi1> to vector<4x1xi1>
    %125 = vector.broadcast %124 : vector<4x1xi1> to vector<4x16xi1>
    %126 = arith.select %125, %122, %123 : vector<4x16xi1>, vector<4x16xf32>
    %127 = vector.extract_strided_slice %114 {offsets = [0, 32], sizes = [4, 16], strides = [1, 1]} : vector<4x96xf32> to vector<4x16xf32>
    %128 = vector.extract_strided_slice %114 {offsets = [0, 80], sizes = [4, 16], strides = [1, 1]} : vector<4x96xf32> to vector<4x16xf32>
    %129 = vector.shape_cast %34 : vector<4x1xi1> to vector<4x1xi1>
    %130 = vector.broadcast %129 : vector<4x1xi1> to vector<4x16xi1>
    %131 = arith.select %130, %127, %128 : vector<4x16xi1>, vector<4x16xf32>
    %132 = vector.extract_strided_slice %116 {offsets = [0, 0], sizes = [4, 16], strides = [1, 1]} : vector<4x32xf32> to vector<4x16xf32>
    %133 = vector.extract_strided_slice %116 {offsets = [0, 16], sizes = [4, 16], strides = [1, 1]} : vector<4x32xf32> to vector<4x16xf32>
    %134 = vector.shape_cast %34 : vector<4x1xi1> to vector<4x1xi1>
    %135 = vector.broadcast %134 : vector<4x1xi1> to vector<4x16xi1>
    %136 = arith.select %135, %132, %133 : vector<4x16xi1>, vector<4x16xf32>
    %137 = arith.mulf %126, %91 : vector<4x16xf32>
    %138 = arith.mulf %121, %136 : vector<4x16xf32>
    %139 = arith.addf %137, %138 : vector<4x16xf32>
    %140 = math.tanh %139 : vector<4x16xf32>
    %141 = arith.mulf %131, %140 : vector<4x16xf32>
    %142 = arith.index_cast %c1_i32_30 : i32 to index
    %c0_35 = arith.constant 0 : index
    %c0_36 = arith.constant 0 : index
    %143 = vector.load %arg14[%142, %c0_35, %c0_36] : memref<8x4x1xf32, #tpu.memory_space<vmem>>, vector<1x4x1xf32>
    %144 = vector.shape_cast %143 : vector<1x4x1xf32> to vector<4x1xf32>
    %145 = vector.broadcast %144 : vector<4x1xf32> to vector<4x16xf32>
    %146 = arith.mulf %145, %141 : vector<4x16xf32>
    %cst_37 = arith.constant 1.000000e+00 : f32
    %147 = vector.broadcast %cst_37 : f32 to vector<4x1xf32>
    %148 = arith.subf %147, %144 : vector<4x1xf32>
    %149 = vector.broadcast %148 : vector<4x1xf32> to vector<4x16xf32>
    %150 = arith.mulf %149, %84 : vector<4x16xf32>
    %151 = arith.addf %146, %150 : vector<4x16xf32>
    %152 = vector.broadcast %144 : vector<4x1xf32> to vector<4x16xf32>
    %153 = arith.mulf %152, %139 : vector<4x16xf32>
    %cst_38 = arith.constant 1.000000e+00 : f32
    %154 = vector.broadcast %cst_38 : f32 to vector<4x1xf32>
    %155 = arith.subf %154, %144 : vector<4x1xf32>
    %156 = vector.broadcast %155 : vector<4x1xf32> to vector<4x16xf32>
    %157 = arith.mulf %156, %91 : vector<4x16xf32>
    %158 = arith.addf %153, %157 : vector<4x16xf32>
    %159 = vector.broadcast %144 : vector<4x1xf32> to vector<4x16xf32>
    %160 = arith.mulf %159, %151 : vector<4x16xf32>
    %161 = vector.extract_strided_slice %160 {offsets = [0, 0], sizes = [2, 16], strides = [1, 1]} : vector<4x16xf32> to vector<2x16xf32>
    %c2_i32_39 = arith.constant 2 : i32
    %162 = arith.muli %c1_i32_30, %c2_i32_39 : i32
    %163 = arith.index_cast %162 : i32 to index
    %c0_40 = arith.constant 0 : index
    %164 = vector.load %arg12[%163, %c0_40] : memref<16x32xf32, #tpu.memory_space<vmem>>, vector<2x16xf32>
    tpu.vector_store %arg12[%163, %c0_40], %161 {strides = array<i32>} : memref<16x32xf32, #tpu.memory_space<vmem>>, vector<2x16xf32>,
    %165 = vector.extract_strided_slice %160 {offsets = [2, 0], sizes = [2, 16], strides = [1, 1]} : vector<4x16xf32> to vector<2x16xf32>
    %c7_i32_41 = arith.constant 7 : i32
    %166 = arith.subi %c7_i32_41, %c1_i32_30 : i32
    %c2_i32_42 = arith.constant 2 : i32
    %167 = arith.muli %166, %c2_i32_42 : i32
    %168 = arith.index_cast %167 : i32 to index
    %c16_43 = arith.constant 16 : index
    %169 = vector.load %arg12[%168, %c16_43] : memref<16x32xf32, #tpu.memory_space<vmem>>, vector<2x16xf32>
    tpu.vector_store %arg12[%168, %c16_43], %165 {strides = array<i32>} : memref<16x32xf32, #tpu.memory_space<vmem>>, vector<2x16xf32>,
    %c2_i32_44 = arith.constant 2 : i32
    %c4_i32_45 = arith.constant 4 : i32
    %170 = arith.muli %c2_i32_44, %c4_i32_45 : i32
    %171 = arith.index_cast %170 : i32 to index
    %c0_46 = arith.constant 0 : index
    %172 = vector.load %arg11[%171, %c0_46] : memref<32x128xf32, #tpu.memory_space<vmem>>, vector<4x128xf32>
    %173 = arith.truncf %151 : vector<4x16xf32> to vector<4x16xbf16>
    %cst_47 = arith.constant dense<0.000000e+00> : vector<4x128xf32>
    %174 = tpu.matmul %173, %31, %cst_47 {dimension_numbers = #tpu.dot_dimension_numbers<[1], [0], [0], [1], [0, 0, 1, 1], [], []>} : vector<4x16xbf16>, vector<16x128xbf16>, vector<4x128xf32> -> vector<4x128xf32>
    %175 = arith.addf %172, %174 : vector<4x128xf32>
    %176 = vector.extract_strided_slice %175 {offsets = [0, 0], sizes = [4, 96], strides = [1, 1]} : vector<4x128xf32> to vector<4x96xf32>
    %177 = arith.negf %176 : vector<4x96xf32>
    %178 = math.exp %177 : vector<4x96xf32>
    %cst_48 = arith.constant 1.000000e+00 : f32
    %179 = vector.broadcast %cst_48 : f32 to vector<4x96xf32>
    %180 = arith.addf %179, %178 : vector<4x96xf32>
    %181 = arith.divf %179, %180 : vector<4x96xf32>
    %182 = vector.extract_strided_slice %175 {offsets = [0, 96], sizes = [4, 32], strides = [1, 1]} : vector<4x128xf32> to vector<4x32xf32>
    %183 = math.tanh %182 : vector<4x32xf32>
    %184 = vector.extract_strided_slice %181 {offsets = [0, 0], sizes = [4, 16], strides = [1, 1]} : vector<4x96xf32> to vector<4x16xf32>
    %185 = vector.extract_strided_slice %181 {offsets = [0, 48], sizes = [4, 16], strides = [1, 1]} : vector<4x96xf32> to vector<4x16xf32>
    %186 = vector.shape_cast %34 : vector<4x1xi1> to vector<4x1xi1>
    %187 = vector.broadcast %186 : vector<4x1xi1> to vector<4x16xi1>
    %188 = arith.select %187, %184, %185 : vector<4x16xi1>, vector<4x16xf32>
    %189 = vector.extract_strided_slice %181 {offsets = [0, 16], sizes = [4, 16], strides = [1, 1]} : vector<4x96xf32> to vector<4x16xf32>
    %190 = vector.extract_strided_slice %181 {offsets = [0, 64], sizes = [4, 16], strides = [1, 1]} : vector<4x96xf32> to vector<4x16xf32>
    %191 = vector.shape_cast %34 : vector<4x1xi1> to vector<4x1xi1>
    %192 = vector.broadcast %191 : vector<4x1xi1> to vector<4x16xi1>
    %193 = arith.select %192, %189, %190 : vector<4x16xi1>, vector<4x16xf32>
    %194 = vector.extract_strided_slice %181 {offsets = [0, 32], sizes = [4, 16], strides = [1, 1]} : vector<4x96xf32> to vector<4x16xf32>
    %195 = vector.extract_strided_slice %181 {offsets = [0, 80], sizes = [4, 16], strides = [1, 1]} : vector<4x96xf32> to vector<4x16xf32>
    %196 = vector.shape_cast %34 : vector<4x1xi1> to vector<4x1xi1>
    %197 = vector.broadcast %196 : vector<4x1xi1> to vector<4x16xi1>
    %198 = arith.select %197, %194, %195 : vector<4x16xi1>, vector<4x16xf32>
    %199 = vector.extract_strided_slice %183 {offsets = [0, 0], sizes = [4, 16], strides = [1, 1]} : vector<4x32xf32> to vector<4x16xf32>
    %200 = vector.extract_strided_slice %183 {offsets = [0, 16], sizes = [4, 16], strides = [1, 1]} : vector<4x32xf32> to vector<4x16xf32>
    %201 = vector.shape_cast %34 : vector<4x1xi1> to vector<4x1xi1>
    %202 = vector.broadcast %201 : vector<4x1xi1> to vector<4x16xi1>
    %203 = arith.select %202, %199, %200 : vector<4x16xi1>, vector<4x16xf32>
    %204 = arith.mulf %193, %158 : vector<4x16xf32>
    %205 = arith.mulf %188, %203 : vector<4x16xf32>
    %206 = arith.addf %204, %205 : vector<4x16xf32>
    %207 = math.tanh %206 : vector<4x16xf32>
    %208 = arith.mulf %198, %207 : vector<4x16xf32>
    %209 = arith.index_cast %c2_i32_44 : i32 to index
    %c0_49 = arith.constant 0 : index
    %c0_50 = arith.constant 0 : index
    %210 = vector.load %arg14[%209, %c0_49, %c0_50] : memref<8x4x1xf32, #tpu.memory_space<vmem>>, vector<1x4x1xf32>
    %211 = vector.shape_cast %210 : vector<1x4x1xf32> to vector<4x1xf32>
    %212 = vector.broadcast %211 : vector<4x1xf32> to vector<4x16xf32>
    %213 = arith.mulf %212, %208 : vector<4x16xf32>
    %cst_51 = arith.constant 1.000000e+00 : f32
    %214 = vector.broadcast %cst_51 : f32 to vector<4x1xf32>
    %215 = arith.subf %214, %211 : vector<4x1xf32>
    %216 = vector.broadcast %215 : vector<4x1xf32> to vector<4x16xf32>
    %217 = arith.mulf %216, %151 : vector<4x16xf32>
    %218 = arith.addf %213, %217 : vector<4x16xf32>
    %219 = vector.broadcast %211 : vector<4x1xf32> to vector<4x16xf32>
    %220 = arith.mulf %219, %206 : vector<4x16xf32>
    %cst_52 = arith.constant 1.000000e+00 : f32
    %221 = vector.broadcast %cst_52 : f32 to vector<4x1xf32>
    %222 = arith.subf %221, %211 : vector<4x1xf32>
    %223 = vector.broadcast %222 : vector<4x1xf32> to vector<4x16xf32>
    %224 = arith.mulf %223, %158 : vector<4x16xf32>
    %225 = arith.addf %220, %224 : vector<4x16xf32>
    %226 = vector.broadcast %211 : vector<4x1xf32> to vector<4x16xf32>
    %227 = arith.mulf %226, %218 : vector<4x16xf32>
    %228 = vector.extract_strided_slice %227 {offsets = [0, 0], sizes = [2, 16], strides = [1, 1]} : vector<4x16xf32> to vector<2x16xf32>
    %c2_i32_53 = arith.constant 2 : i32
    %229 = arith.muli %c2_i32_44, %c2_i32_53 : i32
    %230 = arith.index_cast %229 : i32 to index
    %c0_54 = arith.constant 0 : index
    %231 = vector.load %arg12[%230, %c0_54] : memref<16x32xf32, #tpu.memory_space<vmem>>, vector<2x16xf32>
    tpu.vector_store %arg12[%230, %c0_54], %228 {strides = array<i32>} : memref<16x32xf32, #tpu.memory_space<vmem>>, vector<2x16xf32>,
    %232 = vector.extract_strided_slice %227 {offsets = [2, 0], sizes = [2, 16], strides = [1, 1]} : vector<4x16xf32> to vector<2x16xf32>
    %c7_i32_55 = arith.constant 7 : i32
    %233 = arith.subi %c7_i32_55, %c2_i32_44 : i32
    %c2_i32_56 = arith.constant 2 : i32
    %234 = arith.muli %233, %c2_i32_56 : i32
    %235 = arith.index_cast %234 : i32 to index
    %c16_57 = arith.constant 16 : index
    %236 = vector.load %arg12[%235, %c16_57] : memref<16x32xf32, #tpu.memory_space<vmem>>, vector<2x16xf32>
    tpu.vector_store %arg12[%235, %c16_57], %232 {strides = array<i32>} : memref<16x32xf32, #tpu.memory_space<vmem>>, vector<2x16xf32>,
    %c3_i32 = arith.constant 3 : i32
    %c4_i32_58 = arith.constant 4 : i32
    %237 = arith.muli %c3_i32, %c4_i32_58 : i32
    %238 = arith.index_cast %237 : i32 to index
    %c0_59 = arith.constant 0 : index
    %239 = vector.load %arg11[%238, %c0_59] : memref<32x128xf32, #tpu.memory_space<vmem>>, vector<4x128xf32>
    %240 = arith.truncf %218 : vector<4x16xf32> to vector<4x16xbf16>
    %cst_60 = arith.constant dense<0.000000e+00> : vector<4x128xf32>
    %241 = tpu.matmul %240, %31, %cst_60 {dimension_numbers = #tpu.dot_dimension_numbers<[1], [0], [0], [1], [0, 0, 1, 1], [], []>} : vector<4x16xbf16>, vector<16x128xbf16>, vector<4x128xf32> -> vector<4x128xf32>
    %242 = arith.addf %239, %241 : vector<4x128xf32>
    %243 = vector.extract_strided_slice %242 {offsets = [0, 0], sizes = [4, 96], strides = [1, 1]} : vector<4x128xf32> to vector<4x96xf32>
    %244 = arith.negf %243 : vector<4x96xf32>
    %245 = math.exp %244 : vector<4x96xf32>
    %cst_61 = arith.constant 1.000000e+00 : f32
    %246 = vector.broadcast %cst_61 : f32 to vector<4x96xf32>
    %247 = arith.addf %246, %245 : vector<4x96xf32>
    %248 = arith.divf %246, %247 : vector<4x96xf32>
    %249 = vector.extract_strided_slice %242 {offsets = [0, 96], sizes = [4, 32], strides = [1, 1]} : vector<4x128xf32> to vector<4x32xf32>
    %250 = math.tanh %249 : vector<4x32xf32>
    %251 = vector.extract_strided_slice %248 {offsets = [0, 0], sizes = [4, 16], strides = [1, 1]} : vector<4x96xf32> to vector<4x16xf32>
    %252 = vector.extract_strided_slice %248 {offsets = [0, 48], sizes = [4, 16], strides = [1, 1]} : vector<4x96xf32> to vector<4x16xf32>
    %253 = vector.shape_cast %34 : vector<4x1xi1> to vector<4x1xi1>
    %254 = vector.broadcast %253 : vector<4x1xi1> to vector<4x16xi1>
    %255 = arith.select %254, %251, %252 : vector<4x16xi1>, vector<4x16xf32>
    %256 = vector.extract_strided_slice %248 {offsets = [0, 16], sizes = [4, 16], strides = [1, 1]} : vector<4x96xf32> to vector<4x16xf32>
    %257 = vector.extract_strided_slice %248 {offsets = [0, 64], sizes = [4, 16], strides = [1, 1]} : vector<4x96xf32> to vector<4x16xf32>
    %258 = vector.shape_cast %34 : vector<4x1xi1> to vector<4x1xi1>
    %259 = vector.broadcast %258 : vector<4x1xi1> to vector<4x16xi1>
    %260 = arith.select %259, %256, %257 : vector<4x16xi1>, vector<4x16xf32>
    %261 = vector.extract_strided_slice %248 {offsets = [0, 32], sizes = [4, 16], strides = [1, 1]} : vector<4x96xf32> to vector<4x16xf32>
    %262 = vector.extract_strided_slice %248 {offsets = [0, 80], sizes = [4, 16], strides = [1, 1]} : vector<4x96xf32> to vector<4x16xf32>
    %263 = vector.shape_cast %34 : vector<4x1xi1> to vector<4x1xi1>
    %264 = vector.broadcast %263 : vector<4x1xi1> to vector<4x16xi1>
    %265 = arith.select %264, %261, %262 : vector<4x16xi1>, vector<4x16xf32>
    %266 = vector.extract_strided_slice %250 {offsets = [0, 0], sizes = [4, 16], strides = [1, 1]} : vector<4x32xf32> to vector<4x16xf32>
    %267 = vector.extract_strided_slice %250 {offsets = [0, 16], sizes = [4, 16], strides = [1, 1]} : vector<4x32xf32> to vector<4x16xf32>
    %268 = vector.shape_cast %34 : vector<4x1xi1> to vector<4x1xi1>
    %269 = vector.broadcast %268 : vector<4x1xi1> to vector<4x16xi1>
    %270 = arith.select %269, %266, %267 : vector<4x16xi1>, vector<4x16xf32>
    %271 = arith.mulf %260, %225 : vector<4x16xf32>
    %272 = arith.mulf %255, %270 : vector<4x16xf32>
    %273 = arith.addf %271, %272 : vector<4x16xf32>
    %274 = math.tanh %273 : vector<4x16xf32>
    %275 = arith.mulf %265, %274 : vector<4x16xf32>
    %276 = arith.index_cast %c3_i32 : i32 to index
    %c0_62 = arith.constant 0 : index
    %c0_63 = arith.constant 0 : index
    %277 = vector.load %arg14[%276, %c0_62, %c0_63] : memref<8x4x1xf32, #tpu.memory_space<vmem>>, vector<1x4x1xf32>
    %278 = vector.shape_cast %277 : vector<1x4x1xf32> to vector<4x1xf32>
    %279 = vector.broadcast %278 : vector<4x1xf32> to vector<4x16xf32>
    %280 = arith.mulf %279, %275 : vector<4x16xf32>
    %cst_64 = arith.constant 1.000000e+00 : f32
    %281 = vector.broadcast %cst_64 : f32 to vector<4x1xf32>
    %282 = arith.subf %281, %278 : vector<4x1xf32>
    %283 = vector.broadcast %282 : vector<4x1xf32> to vector<4x16xf32>
    %284 = arith.mulf %283, %218 : vector<4x16xf32>
    %285 = arith.addf %280, %284 : vector<4x16xf32>
    %286 = vector.broadcast %278 : vector<4x1xf32> to vector<4x16xf32>
    %287 = arith.mulf %286, %273 : vector<4x16xf32>
    %cst_65 = arith.constant 1.000000e+00 : f32
    %288 = vector.broadcast %cst_65 : f32 to vector<4x1xf32>
    %289 = arith.subf %288, %278 : vector<4x1xf32>
    %290 = vector.broadcast %289 : vector<4x1xf32> to vector<4x16xf32>
    %291 = arith.mulf %290, %225 : vector<4x16xf32>
    %292 = arith.addf %287, %291 : vector<4x16xf32>
    %293 = vector.broadcast %278 : vector<4x1xf32> to vector<4x16xf32>
    %294 = arith.mulf %293, %285 : vector<4x16xf32>
    %295 = vector.extract_strided_slice %294 {offsets = [0, 0], sizes = [2, 16], strides = [1, 1]} : vector<4x16xf32> to vector<2x16xf32>
    %c2_i32_66 = arith.constant 2 : i32
    %296 = arith.muli %c3_i32, %c2_i32_66 : i32
    %297 = arith.index_cast %296 : i32 to index
    %c0_67 = arith.constant 0 : index
    %298 = vector.load %arg12[%297, %c0_67] : memref<16x32xf32, #tpu.memory_space<vmem>>, vector<2x16xf32>
    tpu.vector_store %arg12[%297, %c0_67], %295 {strides = array<i32>} : memref<16x32xf32, #tpu.memory_space<vmem>>, vector<2x16xf32>,
    %299 = vector.extract_strided_slice %294 {offsets = [2, 0], sizes = [2, 16], strides = [1, 1]} : vector<4x16xf32> to vector<2x16xf32>
    %c7_i32_68 = arith.constant 7 : i32
    %300 = arith.subi %c7_i32_68, %c3_i32 : i32
    %c2_i32_69 = arith.constant 2 : i32
    %301 = arith.muli %300, %c2_i32_69 : i32
    %302 = arith.index_cast %301 : i32 to index
    %c16_70 = arith.constant 16 : index
    %303 = vector.load %arg12[%302, %c16_70] : memref<16x32xf32, #tpu.memory_space<vmem>>, vector<2x16xf32>
    tpu.vector_store %arg12[%302, %c16_70], %299 {strides = array<i32>} : memref<16x32xf32, #tpu.memory_space<vmem>>, vector<2x16xf32>,
    %c4_i32_71 = arith.constant 4 : i32
    %c4_i32_72 = arith.constant 4 : i32
    %304 = arith.muli %c4_i32_71, %c4_i32_72 : i32
    %305 = arith.index_cast %304 : i32 to index
    %c0_73 = arith.constant 0 : index
    %306 = vector.load %arg11[%305, %c0_73] : memref<32x128xf32, #tpu.memory_space<vmem>>, vector<4x128xf32>
    %307 = arith.truncf %285 : vector<4x16xf32> to vector<4x16xbf16>
    %cst_74 = arith.constant dense<0.000000e+00> : vector<4x128xf32>
    %308 = tpu.matmul %307, %31, %cst_74 {dimension_numbers = #tpu.dot_dimension_numbers<[1], [0], [0], [1], [0, 0, 1, 1], [], []>} : vector<4x16xbf16>, vector<16x128xbf16>, vector<4x128xf32> -> vector<4x128xf32>
    %309 = arith.addf %306, %308 : vector<4x128xf32>
    %310 = vector.extract_strided_slice %309 {offsets = [0, 0], sizes = [4, 96], strides = [1, 1]} : vector<4x128xf32> to vector<4x96xf32>
    %311 = arith.negf %310 : vector<4x96xf32>
    %312 = math.exp %311 : vector<4x96xf32>
    %cst_75 = arith.constant 1.000000e+00 : f32
    %313 = vector.broadcast %cst_75 : f32 to vector<4x96xf32>
    %314 = arith.addf %313, %312 : vector<4x96xf32>
    %315 = arith.divf %313, %314 : vector<4x96xf32>
    %316 = vector.extract_strided_slice %309 {offsets = [0, 96], sizes = [4, 32], strides = [1, 1]} : vector<4x128xf32> to vector<4x32xf32>
    %317 = math.tanh %316 : vector<4x32xf32>
    %318 = vector.extract_strided_slice %315 {offsets = [0, 0], sizes = [4, 16], strides = [1, 1]} : vector<4x96xf32> to vector<4x16xf32>
    %319 = vector.extract_strided_slice %315 {offsets = [0, 48], sizes = [4, 16], strides = [1, 1]} : vector<4x96xf32> to vector<4x16xf32>
    %320 = vector.shape_cast %34 : vector<4x1xi1> to vector<4x1xi1>
    %321 = vector.broadcast %320 : vector<4x1xi1> to vector<4x16xi1>
    %322 = arith.select %321, %318, %319 : vector<4x16xi1>, vector<4x16xf32>
    %323 = vector.extract_strided_slice %315 {offsets = [0, 16], sizes = [4, 16], strides = [1, 1]} : vector<4x96xf32> to vector<4x16xf32>
    %324 = vector.extract_strided_slice %315 {offsets = [0, 64], sizes = [4, 16], strides = [1, 1]} : vector<4x96xf32> to vector<4x16xf32>
    %325 = vector.shape_cast %34 : vector<4x1xi1> to vector<4x1xi1>
    %326 = vector.broadcast %325 : vector<4x1xi1> to vector<4x16xi1>
    %327 = arith.select %326, %323, %324 : vector<4x16xi1>, vector<4x16xf32>
    %328 = vector.extract_strided_slice %315 {offsets = [0, 32], sizes = [4, 16], strides = [1, 1]} : vector<4x96xf32> to vector<4x16xf32>
    %329 = vector.extract_strided_slice %315 {offsets = [0, 80], sizes = [4, 16], strides = [1, 1]} : vector<4x96xf32> to vector<4x16xf32>
    %330 = vector.shape_cast %34 : vector<4x1xi1> to vector<4x1xi1>
    %331 = vector.broadcast %330 : vector<4x1xi1> to vector<4x16xi1>
    %332 = arith.select %331, %328, %329 : vector<4x16xi1>, vector<4x16xf32>
    %333 = vector.extract_strided_slice %317 {offsets = [0, 0], sizes = [4, 16], strides = [1, 1]} : vector<4x32xf32> to vector<4x16xf32>
    %334 = vector.extract_strided_slice %317 {offsets = [0, 16], sizes = [4, 16], strides = [1, 1]} : vector<4x32xf32> to vector<4x16xf32>
    %335 = vector.shape_cast %34 : vector<4x1xi1> to vector<4x1xi1>
    %336 = vector.broadcast %335 : vector<4x1xi1> to vector<4x16xi1>
    %337 = arith.select %336, %333, %334 : vector<4x16xi1>, vector<4x16xf32>
    %338 = arith.mulf %327, %292 : vector<4x16xf32>
    %339 = arith.mulf %322, %337 : vector<4x16xf32>
    %340 = arith.addf %338, %339 : vector<4x16xf32>
    %341 = math.tanh %340 : vector<4x16xf32>
    %342 = arith.mulf %332, %341 : vector<4x16xf32>
    %343 = arith.index_cast %c4_i32_71 : i32 to index
    %c0_76 = arith.constant 0 : index
    %c0_77 = arith.constant 0 : index
    %344 = vector.load %arg14[%343, %c0_76, %c0_77] : memref<8x4x1xf32, #tpu.memory_space<vmem>>, vector<1x4x1xf32>
    %345 = vector.shape_cast %344 : vector<1x4x1xf32> to vector<4x1xf32>
    %346 = vector.broadcast %345 : vector<4x1xf32> to vector<4x16xf32>
    %347 = arith.mulf %346, %342 : vector<4x16xf32>
    %cst_78 = arith.constant 1.000000e+00 : f32
    %348 = vector.broadcast %cst_78 : f32 to vector<4x1xf32>
    %349 = arith.subf %348, %345 : vector<4x1xf32>
    %350 = vector.broadcast %349 : vector<4x1xf32> to vector<4x16xf32>
    %351 = arith.mulf %350, %285 : vector<4x16xf32>
    %352 = arith.addf %347, %351 : vector<4x16xf32>
    %353 = vector.broadcast %345 : vector<4x1xf32> to vector<4x16xf32>
    %354 = arith.mulf %353, %340 : vector<4x16xf32>
    %cst_79 = arith.constant 1.000000e+00 : f32
    %355 = vector.broadcast %cst_79 : f32 to vector<4x1xf32>
    %356 = arith.subf %355, %345 : vector<4x1xf32>
    %357 = vector.broadcast %356 : vector<4x1xf32> to vector<4x16xf32>
    %358 = arith.mulf %357, %292 : vector<4x16xf32>
    %359 = arith.addf %354, %358 : vector<4x16xf32>
    %360 = vector.broadcast %345 : vector<4x1xf32> to vector<4x16xf32>
    %361 = arith.mulf %360, %352 : vector<4x16xf32>
    %362 = vector.extract_strided_slice %361 {offsets = [0, 0], sizes = [2, 16], strides = [1, 1]} : vector<4x16xf32> to vector<2x16xf32>
    %c2_i32_80 = arith.constant 2 : i32
    %363 = arith.muli %c4_i32_71, %c2_i32_80 : i32
    %364 = arith.index_cast %363 : i32 to index
    %c0_81 = arith.constant 0 : index
    %365 = vector.load %arg12[%364, %c0_81] : memref<16x32xf32, #tpu.memory_space<vmem>>, vector<2x16xf32>
    tpu.vector_store %arg12[%364, %c0_81], %362 {strides = array<i32>} : memref<16x32xf32, #tpu.memory_space<vmem>>, vector<2x16xf32>,
    %366 = vector.extract_strided_slice %361 {offsets = [2, 0], sizes = [2, 16], strides = [1, 1]} : vector<4x16xf32> to vector<2x16xf32>
    %c7_i32_82 = arith.constant 7 : i32
    %367 = arith.subi %c7_i32_82, %c4_i32_71 : i32
    %c2_i32_83 = arith.constant 2 : i32
    %368 = arith.muli %367, %c2_i32_83 : i32
    %369 = arith.index_cast %368 : i32 to index
    %c16_84 = arith.constant 16 : index
    %370 = vector.load %arg12[%369, %c16_84] : memref<16x32xf32, #tpu.memory_space<vmem>>, vector<2x16xf32>
    tpu.vector_store %arg12[%369, %c16_84], %366 {strides = array<i32>} : memref<16x32xf32, #tpu.memory_space<vmem>>, vector<2x16xf32>,
    %c5_i32 = arith.constant 5 : i32
    %c4_i32_85 = arith.constant 4 : i32
    %371 = arith.muli %c5_i32, %c4_i32_85 : i32
    %372 = arith.index_cast %371 : i32 to index
    %c0_86 = arith.constant 0 : index
    %373 = vector.load %arg11[%372, %c0_86] : memref<32x128xf32, #tpu.memory_space<vmem>>, vector<4x128xf32>
    %374 = arith.truncf %352 : vector<4x16xf32> to vector<4x16xbf16>
    %cst_87 = arith.constant dense<0.000000e+00> : vector<4x128xf32>
    %375 = tpu.matmul %374, %31, %cst_87 {dimension_numbers = #tpu.dot_dimension_numbers<[1], [0], [0], [1], [0, 0, 1, 1], [], []>} : vector<4x16xbf16>, vector<16x128xbf16>, vector<4x128xf32> -> vector<4x128xf32>
    %376 = arith.addf %373, %375 : vector<4x128xf32>
    %377 = vector.extract_strided_slice %376 {offsets = [0, 0], sizes = [4, 96], strides = [1, 1]} : vector<4x128xf32> to vector<4x96xf32>
    %378 = arith.negf %377 : vector<4x96xf32>
    %379 = math.exp %378 : vector<4x96xf32>
    %cst_88 = arith.constant 1.000000e+00 : f32
    %380 = vector.broadcast %cst_88 : f32 to vector<4x96xf32>
    %381 = arith.addf %380, %379 : vector<4x96xf32>
    %382 = arith.divf %380, %381 : vector<4x96xf32>
    %383 = vector.extract_strided_slice %376 {offsets = [0, 96], sizes = [4, 32], strides = [1, 1]} : vector<4x128xf32> to vector<4x32xf32>
    %384 = math.tanh %383 : vector<4x32xf32>
    %385 = vector.extract_strided_slice %382 {offsets = [0, 0], sizes = [4, 16], strides = [1, 1]} : vector<4x96xf32> to vector<4x16xf32>
    %386 = vector.extract_strided_slice %382 {offsets = [0, 48], sizes = [4, 16], strides = [1, 1]} : vector<4x96xf32> to vector<4x16xf32>
    %387 = vector.shape_cast %34 : vector<4x1xi1> to vector<4x1xi1>
    %388 = vector.broadcast %387 : vector<4x1xi1> to vector<4x16xi1>
    %389 = arith.select %388, %385, %386 : vector<4x16xi1>, vector<4x16xf32>
    %390 = vector.extract_strided_slice %382 {offsets = [0, 16], sizes = [4, 16], strides = [1, 1]} : vector<4x96xf32> to vector<4x16xf32>
    %391 = vector.extract_strided_slice %382 {offsets = [0, 64], sizes = [4, 16], strides = [1, 1]} : vector<4x96xf32> to vector<4x16xf32>
    %392 = vector.shape_cast %34 : vector<4x1xi1> to vector<4x1xi1>
    %393 = vector.broadcast %392 : vector<4x1xi1> to vector<4x16xi1>
    %394 = arith.select %393, %390, %391 : vector<4x16xi1>, vector<4x16xf32>
    %395 = vector.extract_strided_slice %382 {offsets = [0, 32], sizes = [4, 16], strides = [1, 1]} : vector<4x96xf32> to vector<4x16xf32>
    %396 = vector.extract_strided_slice %382 {offsets = [0, 80], sizes = [4, 16], strides = [1, 1]} : vector<4x96xf32> to vector<4x16xf32>
    %397 = vector.shape_cast %34 : vector<4x1xi1> to vector<4x1xi1>
    %398 = vector.broadcast %397 : vector<4x1xi1> to vector<4x16xi1>
    %399 = arith.select %398, %395, %396 : vector<4x16xi1>, vector<4x16xf32>
    %400 = vector.extract_strided_slice %384 {offsets = [0, 0], sizes = [4, 16], strides = [1, 1]} : vector<4x32xf32> to vector<4x16xf32>
    %401 = vector.extract_strided_slice %384 {offsets = [0, 16], sizes = [4, 16], strides = [1, 1]} : vector<4x32xf32> to vector<4x16xf32>
    %402 = vector.shape_cast %34 : vector<4x1xi1> to vector<4x1xi1>
    %403 = vector.broadcast %402 : vector<4x1xi1> to vector<4x16xi1>
    %404 = arith.select %403, %400, %401 : vector<4x16xi1>, vector<4x16xf32>
    %405 = arith.mulf %394, %359 : vector<4x16xf32>
    %406 = arith.mulf %389, %404 : vector<4x16xf32>
    %407 = arith.addf %405, %406 : vector<4x16xf32>
    %408 = math.tanh %407 : vector<4x16xf32>
    %409 = arith.mulf %399, %408 : vector<4x16xf32>
    %410 = arith.index_cast %c5_i32 : i32 to index
    %c0_89 = arith.constant 0 : index
    %c0_90 = arith.constant 0 : index
    %411 = vector.load %arg14[%410, %c0_89, %c0_90] : memref<8x4x1xf32, #tpu.memory_space<vmem>>, vector<1x4x1xf32>
    %412 = vector.shape_cast %411 : vector<1x4x1xf32> to vector<4x1xf32>
    %413 = vector.broadcast %412 : vector<4x1xf32> to vector<4x16xf32>
    %414 = arith.mulf %413, %409 : vector<4x16xf32>
    %cst_91 = arith.constant 1.000000e+00 : f32
    %415 = vector.broadcast %cst_91 : f32 to vector<4x1xf32>
    %416 = arith.subf %415, %412 : vector<4x1xf32>
    %417 = vector.broadcast %416 : vector<4x1xf32> to vector<4x16xf32>
    %418 = arith.mulf %417, %352 : vector<4x16xf32>
    %419 = arith.addf %414, %418 : vector<4x16xf32>
    %420 = vector.broadcast %412 : vector<4x1xf32> to vector<4x16xf32>
    %421 = arith.mulf %420, %407 : vector<4x16xf32>
    %cst_92 = arith.constant 1.000000e+00 : f32
    %422 = vector.broadcast %cst_92 : f32 to vector<4x1xf32>
    %423 = arith.subf %422, %412 : vector<4x1xf32>
    %424 = vector.broadcast %423 : vector<4x1xf32> to vector<4x16xf32>
    %425 = arith.mulf %424, %359 : vector<4x16xf32>
    %426 = arith.addf %421, %425 : vector<4x16xf32>
    %427 = vector.broadcast %412 : vector<4x1xf32> to vector<4x16xf32>
    %428 = arith.mulf %427, %419 : vector<4x16xf32>
    %429 = vector.extract_strided_slice %428 {offsets = [0, 0], sizes = [2, 16], strides = [1, 1]} : vector<4x16xf32> to vector<2x16xf32>
    %c2_i32_93 = arith.constant 2 : i32
    %430 = arith.muli %c5_i32, %c2_i32_93 : i32
    %431 = arith.index_cast %430 : i32 to index
    %c0_94 = arith.constant 0 : index
    %432 = vector.load %arg12[%431, %c0_94] : memref<16x32xf32, #tpu.memory_space<vmem>>, vector<2x16xf32>
    tpu.vector_store %arg12[%431, %c0_94], %429 {strides = array<i32>} : memref<16x32xf32, #tpu.memory_space<vmem>>, vector<2x16xf32>,
    %433 = vector.extract_strided_slice %428 {offsets = [2, 0], sizes = [2, 16], strides = [1, 1]} : vector<4x16xf32> to vector<2x16xf32>
    %c7_i32_95 = arith.constant 7 : i32
    %434 = arith.subi %c7_i32_95, %c5_i32 : i32
    %c2_i32_96 = arith.constant 2 : i32
    %435 = arith.muli %434, %c2_i32_96 : i32
    %436 = arith.index_cast %435 : i32 to index
    %c16_97 = arith.constant 16 : index
    %437 = vector.load %arg12[%436, %c16_97] : memref<16x32xf32, #tpu.memory_space<vmem>>, vector<2x16xf32>
    tpu.vector_store %arg12[%436, %c16_97], %433 {strides = array<i32>} : memref<16x32xf32, #tpu.memory_space<vmem>>, vector<2x16xf32>,
    %c6_i32 = arith.constant 6 : i32
    %c4_i32_98 = arith.constant 4 : i32
    %438 = arith.muli %c6_i32, %c4_i32_98 : i32
    %439 = arith.index_cast %438 : i32 to index
    %c0_99 = arith.constant 0 : index
    %440 = vector.load %arg11[%439, %c0_99] : memref<32x128xf32, #tpu.memory_space<vmem>>, vector<4x128xf32>
    %441 = arith.truncf %419 : vector<4x16xf32> to vector<4x16xbf16>
    %cst_100 = arith.constant dense<0.000000e+00> : vector<4x128xf32>
    %442 = tpu.matmul %441, %31, %cst_100 {dimension_numbers = #tpu.dot_dimension_numbers<[1], [0], [0], [1], [0, 0, 1, 1], [], []>} : vector<4x16xbf16>, vector<16x128xbf16>, vector<4x128xf32> -> vector<4x128xf32>
    %443 = arith.addf %440, %442 : vector<4x128xf32>
    %444 = vector.extract_strided_slice %443 {offsets = [0, 0], sizes = [4, 96], strides = [1, 1]} : vector<4x128xf32> to vector<4x96xf32>
    %445 = arith.negf %444 : vector<4x96xf32>
    %446 = math.exp %445 : vector<4x96xf32>
    %cst_101 = arith.constant 1.000000e+00 : f32
    %447 = vector.broadcast %cst_101 : f32 to vector<4x96xf32>
    %448 = arith.addf %447, %446 : vector<4x96xf32>
    %449 = arith.divf %447, %448 : vector<4x96xf32>
    %450 = vector.extract_strided_slice %443 {offsets = [0, 96], sizes = [4, 32], strides = [1, 1]} : vector<4x128xf32> to vector<4x32xf32>
    %451 = math.tanh %450 : vector<4x32xf32>
    %452 = vector.extract_strided_slice %449 {offsets = [0, 0], sizes = [4, 16], strides = [1, 1]} : vector<4x96xf32> to vector<4x16xf32>
    %453 = vector.extract_strided_slice %449 {offsets = [0, 48], sizes = [4, 16], strides = [1, 1]} : vector<4x96xf32> to vector<4x16xf32>
    %454 = vector.shape_cast %34 : vector<4x1xi1> to vector<4x1xi1>
    %455 = vector.broadcast %454 : vector<4x1xi1> to vector<4x16xi1>
    %456 = arith.select %455, %452, %453 : vector<4x16xi1>, vector<4x16xf32>
    %457 = vector.extract_strided_slice %449 {offsets = [0, 16], sizes = [4, 16], strides = [1, 1]} : vector<4x96xf32> to vector<4x16xf32>
    %458 = vector.extract_strided_slice %449 {offsets = [0, 64], sizes = [4, 16], strides = [1, 1]} : vector<4x96xf32> to vector<4x16xf32>
    %459 = vector.shape_cast %34 : vector<4x1xi1> to vector<4x1xi1>
    %460 = vector.broadcast %459 : vector<4x1xi1> to vector<4x16xi1>
    %461 = arith.select %460, %457, %458 : vector<4x16xi1>, vector<4x16xf32>
    %462 = vector.extract_strided_slice %449 {offsets = [0, 32], sizes = [4, 16], strides = [1, 1]} : vector<4x96xf32> to vector<4x16xf32>
    %463 = vector.extract_strided_slice %449 {offsets = [0, 80], sizes = [4, 16], strides = [1, 1]} : vector<4x96xf32> to vector<4x16xf32>
    %464 = vector.shape_cast %34 : vector<4x1xi1> to vector<4x1xi1>
    %465 = vector.broadcast %464 : vector<4x1xi1> to vector<4x16xi1>
    %466 = arith.select %465, %462, %463 : vector<4x16xi1>, vector<4x16xf32>
    %467 = vector.extract_strided_slice %451 {offsets = [0, 0], sizes = [4, 16], strides = [1, 1]} : vector<4x32xf32> to vector<4x16xf32>
    %468 = vector.extract_strided_slice %451 {offsets = [0, 16], sizes = [4, 16], strides = [1, 1]} : vector<4x32xf32> to vector<4x16xf32>
    %469 = vector.shape_cast %34 : vector<4x1xi1> to vector<4x1xi1>
    %470 = vector.broadcast %469 : vector<4x1xi1> to vector<4x16xi1>
    %471 = arith.select %470, %467, %468 : vector<4x16xi1>, vector<4x16xf32>
    %472 = arith.mulf %461, %426 : vector<4x16xf32>
    %473 = arith.mulf %456, %471 : vector<4x16xf32>
    %474 = arith.addf %472, %473 : vector<4x16xf32>
    %475 = math.tanh %474 : vector<4x16xf32>
    %476 = arith.mulf %466, %475 : vector<4x16xf32>
    %477 = arith.index_cast %c6_i32 : i32 to index
    %c0_102 = arith.constant 0 : index
    %c0_103 = arith.constant 0 : index
    %478 = vector.load %arg14[%477, %c0_102, %c0_103] : memref<8x4x1xf32, #tpu.memory_space<vmem>>, vector<1x4x1xf32>
    %479 = vector.shape_cast %478 : vector<1x4x1xf32> to vector<4x1xf32>
    %480 = vector.broadcast %479 : vector<4x1xf32> to vector<4x16xf32>
    %481 = arith.mulf %480, %476 : vector<4x16xf32>
    %cst_104 = arith.constant 1.000000e+00 : f32
    %482 = vector.broadcast %cst_104 : f32 to vector<4x1xf32>
    %483 = arith.subf %482, %479 : vector<4x1xf32>
    %484 = vector.broadcast %483 : vector<4x1xf32> to vector<4x16xf32>
    %485 = arith.mulf %484, %419 : vector<4x16xf32>
    %486 = arith.addf %481, %485 : vector<4x16xf32>
    %487 = vector.broadcast %479 : vector<4x1xf32> to vector<4x16xf32>
    %488 = arith.mulf %487, %474 : vector<4x16xf32>
    %cst_105 = arith.constant 1.000000e+00 : f32
    %489 = vector.broadcast %cst_105 : f32 to vector<4x1xf32>
    %490 = arith.subf %489, %479 : vector<4x1xf32>
    %491 = vector.broadcast %490 : vector<4x1xf32> to vector<4x16xf32>
    %492 = arith.mulf %491, %426 : vector<4x16xf32>
    %493 = arith.addf %488, %492 : vector<4x16xf32>
    %494 = vector.broadcast %479 : vector<4x1xf32> to vector<4x16xf32>
    %495 = arith.mulf %494, %486 : vector<4x16xf32>
    %496 = vector.extract_strided_slice %495 {offsets = [0, 0], sizes = [2, 16], strides = [1, 1]} : vector<4x16xf32> to vector<2x16xf32>
    %c2_i32_106 = arith.constant 2 : i32
    %497 = arith.muli %c6_i32, %c2_i32_106 : i32
    %498 = arith.index_cast %497 : i32 to index
    %c0_107 = arith.constant 0 : index
    %499 = vector.load %arg12[%498, %c0_107] : memref<16x32xf32, #tpu.memory_space<vmem>>, vector<2x16xf32>
    tpu.vector_store %arg12[%498, %c0_107], %496 {strides = array<i32>} : memref<16x32xf32, #tpu.memory_space<vmem>>, vector<2x16xf32>,
    %500 = vector.extract_strided_slice %495 {offsets = [2, 0], sizes = [2, 16], strides = [1, 1]} : vector<4x16xf32> to vector<2x16xf32>
    %c7_i32_108 = arith.constant 7 : i32
    %501 = arith.subi %c7_i32_108, %c6_i32 : i32
    %c2_i32_109 = arith.constant 2 : i32
    %502 = arith.muli %501, %c2_i32_109 : i32
    %503 = arith.index_cast %502 : i32 to index
    %c16_110 = arith.constant 16 : index
    %504 = vector.load %arg12[%503, %c16_110] : memref<16x32xf32, #tpu.memory_space<vmem>>, vector<2x16xf32>
    tpu.vector_store %arg12[%503, %c16_110], %500 {strides = array<i32>} : memref<16x32xf32, #tpu.memory_space<vmem>>, vector<2x16xf32>,
    %c7_i32_111 = arith.constant 7 : i32
    %c4_i32_112 = arith.constant 4 : i32
    %505 = arith.muli %c7_i32_111, %c4_i32_112 : i32
    %506 = arith.index_cast %505 : i32 to index
    %c0_113 = arith.constant 0 : index
    %507 = vector.load %arg11[%506, %c0_113] : memref<32x128xf32, #tpu.memory_space<vmem>>, vector<4x128xf32>
    %508 = arith.truncf %486 : vector<4x16xf32> to vector<4x16xbf16>
    %cst_114 = arith.constant dense<0.000000e+00> : vector<4x128xf32>
    %509 = tpu.matmul %508, %31, %cst_114 {dimension_numbers = #tpu.dot_dimension_numbers<[1], [0], [0], [1], [0, 0, 1, 1], [], []>} : vector<4x16xbf16>, vector<16x128xbf16>, vector<4x128xf32> -> vector<4x128xf32>
    %510 = arith.addf %507, %509 : vector<4x128xf32>
    %511 = vector.extract_strided_slice %510 {offsets = [0, 0], sizes = [4, 96], strides = [1, 1]} : vector<4x128xf32> to vector<4x96xf32>
    %512 = arith.negf %511 : vector<4x96xf32>
    %513 = math.exp %512 : vector<4x96xf32>
    %cst_115 = arith.constant 1.000000e+00 : f32
    %514 = vector.broadcast %cst_115 : f32 to vector<4x96xf32>
    %515 = arith.addf %514, %513 : vector<4x96xf32>
    %516 = arith.divf %514, %515 : vector<4x96xf32>
    %517 = vector.extract_strided_slice %510 {offsets = [0, 96], sizes = [4, 32], strides = [1, 1]} : vector<4x128xf32> to vector<4x32xf32>
    %518 = math.tanh %517 : vector<4x32xf32>
    %519 = vector.extract_strided_slice %516 {offsets = [0, 0], sizes = [4, 16], strides = [1, 1]} : vector<4x96xf32> to vector<4x16xf32>
    %520 = vector.extract_strided_slice %516 {offsets = [0, 48], sizes = [4, 16], strides = [1, 1]} : vector<4x96xf32> to vector<4x16xf32>
    %521 = vector.shape_cast %34 : vector<4x1xi1> to vector<4x1xi1>
    %522 = vector.broadcast %521 : vector<4x1xi1> to vector<4x16xi1>
    %523 = arith.select %522, %519, %520 : vector<4x16xi1>, vector<4x16xf32>
    %524 = vector.extract_strided_slice %516 {offsets = [0, 16], sizes = [4, 16], strides = [1, 1]} : vector<4x96xf32> to vector<4x16xf32>
    %525 = vector.extract_strided_slice %516 {offsets = [0, 64], sizes = [4, 16], strides = [1, 1]} : vector<4x96xf32> to vector<4x16xf32>
    %526 = vector.shape_cast %34 : vector<4x1xi1> to vector<4x1xi1>
    %527 = vector.broadcast %526 : vector<4x1xi1> to vector<4x16xi1>
    %528 = arith.select %527, %524, %525 : vector<4x16xi1>, vector<4x16xf32>
    %529 = vector.extract_strided_slice %516 {offsets = [0, 32], sizes = [4, 16], strides = [1, 1]} : vector<4x96xf32> to vector<4x16xf32>
    %530 = vector.extract_strided_slice %516 {offsets = [0, 80], sizes = [4, 16], strides = [1, 1]} : vector<4x96xf32> to vector<4x16xf32>
    %531 = vector.shape_cast %34 : vector<4x1xi1> to vector<4x1xi1>
    %532 = vector.broadcast %531 : vector<4x1xi1> to vector<4x16xi1>
    %533 = arith.select %532, %529, %530 : vector<4x16xi1>, vector<4x16xf32>
    %534 = vector.extract_strided_slice %518 {offsets = [0, 0], sizes = [4, 16], strides = [1, 1]} : vector<4x32xf32> to vector<4x16xf32>
    %535 = vector.extract_strided_slice %518 {offsets = [0, 16], sizes = [4, 16], strides = [1, 1]} : vector<4x32xf32> to vector<4x16xf32>
    %536 = vector.shape_cast %34 : vector<4x1xi1> to vector<4x1xi1>
    %537 = vector.broadcast %536 : vector<4x1xi1> to vector<4x16xi1>
    %538 = arith.select %537, %534, %535 : vector<4x16xi1>, vector<4x16xf32>
    %539 = arith.mulf %528, %493 : vector<4x16xf32>
    %540 = arith.mulf %523, %538 : vector<4x16xf32>
    %541 = arith.addf %539, %540 : vector<4x16xf32>
    %542 = math.tanh %541 : vector<4x16xf32>
    %543 = arith.mulf %533, %542 : vector<4x16xf32>
    %544 = arith.index_cast %c7_i32_111 : i32 to index
    %c0_116 = arith.constant 0 : index
    %c0_117 = arith.constant 0 : index
    %545 = vector.load %arg14[%544, %c0_116, %c0_117] : memref<8x4x1xf32, #tpu.memory_space<vmem>>, vector<1x4x1xf32>
    %546 = vector.shape_cast %545 : vector<1x4x1xf32> to vector<4x1xf32>
    %547 = vector.broadcast %546 : vector<4x1xf32> to vector<4x16xf32>
    %548 = arith.mulf %547, %543 : vector<4x16xf32>
    %cst_118 = arith.constant 1.000000e+00 : f32
    %549 = vector.broadcast %cst_118 : f32 to vector<4x1xf32>
    %550 = arith.subf %549, %546 : vector<4x1xf32>
    %551 = vector.broadcast %550 : vector<4x1xf32> to vector<4x16xf32>
    %552 = arith.mulf %551, %486 : vector<4x16xf32>
    %553 = arith.addf %548, %552 : vector<4x16xf32>
    %554 = vector.broadcast %546 : vector<4x1xf32> to vector<4x16xf32>
    %555 = arith.mulf %554, %541 : vector<4x16xf32>
    %cst_119 = arith.constant 1.000000e+00 : f32
    %556 = vector.broadcast %cst_119 : f32 to vector<4x1xf32>
    %557 = arith.subf %556, %546 : vector<4x1xf32>
    %558 = vector.broadcast %557 : vector<4x1xf32> to vector<4x16xf32>
    %559 = arith.mulf %558, %493 : vector<4x16xf32>
    %560 = arith.addf %555, %559 : vector<4x16xf32>
    %561 = vector.broadcast %546 : vector<4x1xf32> to vector<4x16xf32>
    %562 = arith.mulf %561, %553 : vector<4x16xf32>
    %563 = vector.extract_strided_slice %562 {offsets = [0, 0], sizes = [2, 16], strides = [1, 1]} : vector<4x16xf32> to vector<2x16xf32>
    %c2_i32_120 = arith.constant 2 : i32
    %564 = arith.muli %c7_i32_111, %c2_i32_120 : i32
    %565 = arith.index_cast %564 : i32 to index
    %c0_121 = arith.constant 0 : index
    %566 = vector.load %arg12[%565, %c0_121] : memref<16x32xf32, #tpu.memory_space<vmem>>, vector<2x16xf32>
    tpu.vector_store %arg12[%565, %c0_121], %563 {strides = array<i32>} : memref<16x32xf32, #tpu.memory_space<vmem>>, vector<2x16xf32>,
    %567 = vector.extract_strided_slice %562 {offsets = [2, 0], sizes = [2, 16], strides = [1, 1]} : vector<4x16xf32> to vector<2x16xf32>
    %c7_i32_122 = arith.constant 7 : i32
    %568 = arith.subi %c7_i32_122, %c7_i32_111 : i32
    %c2_i32_123 = arith.constant 2 : i32
    %569 = arith.muli %568, %c2_i32_123 : i32
    %570 = arith.index_cast %569 : i32 to index
    %c16_124 = arith.constant 16 : index
    %571 = vector.load %arg12[%570, %c16_124] : memref<16x32xf32, #tpu.memory_space<vmem>>, vector<2x16xf32>
    tpu.vector_store %arg12[%570, %c16_124], %567 {strides = array<i32>} : memref<16x32xf32, #tpu.memory_space<vmem>>, vector<2x16xf32>,
    %c8_i32 = arith.constant 8 : i32
    %c0_125 = arith.constant 0 : index
    %c0_126 = arith.constant 0 : index
    %572 = vector.load %arg12[%c0_125, %c0_126] : memref<16x32xf32, #tpu.memory_space<vmem>>, vector<16x32xf32>
    %573 = arith.truncf %572 : vector<16x32xf32> to vector<16x32xbf16>
    %c0_127 = arith.constant 0 : index
    %c0_128 = arith.constant 0 : index
    %574 = vector.load %arg5[%c0_127, %c0_128] : memref<32x128xbf16, #tpu.memory_space<vmem>>, vector<32x128xbf16>
    %cst_129 = arith.constant dense<0.000000e+00> : vector<16x128xf32>
    %575 = tpu.matmul %573, %574, %cst_129 {dimension_numbers = #tpu.dot_dimension_numbers<[1], [0], [0], [1], [0, 0, 1, 1], [], []>} : vector<16x32xbf16>, vector<32x128xbf16>, vector<16x128xf32> -> vector<16x128xf32>
    %c0_130 = arith.constant 0 : index
    %c0_131 = arith.constant 0 : index
    %576 = vector.load %arg6[%c0_130, %c0_131] : memref<1x128xf32, #tpu.memory_space<vmem>>, vector<1x128xf32>
    %577 = vector.broadcast %576 : vector<1x128xf32> to vector<16x128xf32>
    %578 = arith.addf %575, %577 : vector<16x128xf32>
    %c0_132 = arith.constant 0 : index
    %c0_133 = arith.constant 0 : index
    %579 = vector.load %arg8[%c0_132, %c0_133] : memref<16x128xf32, #tpu.memory_space<vmem>>, vector<16x128xf32>
    tpu.vector_store %arg8[%c0_132, %c0_133], %578 {strides = array<i32>} : memref<16x128xf32, #tpu.memory_space<vmem>>, vector<16x128xf32>,
    %580 = tpu.iota {dimensions = array<i32: 1>} : vector<2x5xi32>
    %581 = tpu.iota {dimensions = array<i32: 2>} : vector<2x5x5xi32>
    %c0_134 = arith.constant 0 : index
    %c0_135 = arith.constant 0 : index
    %582 = vector.load %arg7[%c0_134, %c0_135] : memref<5x5xf32, #tpu.memory_space<vmem>>, vector<5x5xf32>
    %583 = vector.shape_cast %582 : vector<5x5xf32> to vector<1x5x5xf32>
    %584 = vector.shape_cast %583 : vector<1x5x5xf32> to vector<1x5x5xf32>
    %585 = vector.broadcast %584 : vector<1x5x5xf32> to vector<2x5x5xf32>
    %c4 = arith.constant 4 : index
    %c0_136 = arith.constant 0 : index
    %586 = vector.load %arg7[%c4, %c0_136] : memref<5x5xf32, #tpu.memory_space<vmem>>, vector<1x5xf32>
    %c3_i32_137 = arith.constant 3 : i32
    %587 = vector.broadcast %c3_i32_137 : i32 to vector<2x5xi32>
    %588 = arith.cmpi eq, %580, %587 : vector<2x5xi32>
    %cst_138 = arith.constant 0.000000e+00 : f32
    %cst_139 = arith.constant -1.000000e+04 : f32
    %589 = vector.broadcast %cst_138 : f32 to vector<2x5xf32>
    %590 = vector.broadcast %cst_139 : f32 to vector<2x5xf32>
    %591 = arith.select %588, %589, %590 : vector<2x5xi1>, vector<2x5xf32>
    %c0_i32_140 = arith.constant 0 : i32
    %592 = vector.shape_cast %591 : vector<2x5xf32> to vector<2x1x5xf32>
    %593 = vector.broadcast %592 : vector<2x1x5xf32> to vector<2x5x5xf32>
    %594 = arith.addf %593, %585 : vector<2x5x5xf32>
    %cst_141 = arith.constant dense<0xFF800000> : vector<2x5xf32>
    %595 = vector.multi_reduction <maximumf>, %594, %cst_141 [2] : vector<2x5x5xf32> to vector<2x5xf32>
    %596 = vector.shape_cast %595 : vector<2x5xf32> to vector<2x5x1xf32>
    %597 = vector.broadcast %596 : vector<2x5x1xf32> to vector<2x5x5xf32>
    %598 = arith.cmpf oeq, %594, %597 : vector<2x5x5xf32>
    %c5_i32_142 = arith.constant 5 : i32
    %599 = vector.broadcast %c5_i32_142 : i32 to vector<2x5x5xi32>
    %600 = arith.select %598, %581, %599 : vector<2x5x5xi1>, vector<2x5x5xi32>
    %cst_143 = arith.constant dense<2147483647> : vector<2x5xi32>
    %601 = vector.multi_reduction <minsi>, %600, %cst_143 [2] : vector<2x5x5xi32> to vector<2x5xi32>
    %602 = arith.index_cast %c0_i32_140 : i32 to index
    %c0_144 = arith.constant 0 : index
    %c0_145 = arith.constant 0 : index
    %603 = vector.load %arg13[%602, %c0_144, %c0_145] : memref<8x2x5xi32, #tpu.memory_space<vmem>>, vector<1x2x5xi32>
    %604 = vector.shape_cast %603 : vector<1x2x5xi32> to vector<2x5xi32>
    %605 = vector.shape_cast %601 : vector<2x5xi32> to vector<1x2x5xi32>
    tpu.vector_store %arg13[%602, %c0_144, %c0_145], %605 {strides = array<i32>} : memref<8x2x5xi32, #tpu.memory_space<vmem>>, vector<1x2x5xi32>,
    %c2_i32_146 = arith.constant 2 : i32
    %606 = arith.muli %c0_i32_140, %c2_i32_146 : i32
    %607 = arith.index_cast %606 : i32 to index
    %c0_147 = arith.constant 0 : index
    %608 = vector.load %arg8[%607, %c0_147] : memref<16x128xf32, #tpu.memory_space<vmem>>, vector<2x128xf32>
    %609 = vector.extract_strided_slice %608 {offsets = [0, 0], sizes = [2, 5], strides = [1, 1]} : vector<2x128xf32> to vector<2x5xf32>
    %610 = arith.index_cast %c0_i32_140 : i32 to index
    %c0_148 = arith.constant 0 : index
    %c0_149 = arith.constant 0 : index
    %611 = vector.load %arg14[%610, %c0_148, %c0_149] : memref<8x4x1xf32, #tpu.memory_space<vmem>>, vector<1x4x1xf32>
    %612 = vector.shape_cast %611 : vector<1x4x1xf32> to vector<4x1xf32>
    %613 = vector.extract_strided_slice %612 {offsets = [0, 0], sizes = [2, 1], strides = [1, 1]} : vector<4x1xf32> to vector<2x1xf32>
    %614 = arith.addf %595, %609 : vector<2x5xf32>
    %615 = vector.broadcast %613 : vector<2x1xf32> to vector<2x5xf32>
    %616 = arith.mulf %615, %614 : vector<2x5xf32>
    %cst_150 = arith.constant 1.000000e+00 : f32
    %617 = vector.broadcast %cst_150 : f32 to vector<2x1xf32>
    %618 = arith.subf %617, %613 : vector<2x1xf32>
    %619 = vector.broadcast %618 : vector<2x1xf32> to vector<2x5xf32>
    %620 = arith.mulf %619, %591 : vector<2x5xf32>
    %621 = arith.addf %616, %620 : vector<2x5xf32>
    %622 = arith.index_cast %c0_i32_140 : i32 to index
    %c0_151 = arith.constant 0 : index
    %c0_152 = arith.constant 0 : index
    %623 = vector.load %arg15[%622, %c0_151, %c0_152] : memref<8x2x1xf32, #tpu.memory_space<vmem>>, vector<1x2x1xf32>
    %624 = vector.shape_cast %623 : vector<1x2x1xf32> to vector<2x1xf32>
    %625 = vector.broadcast %624 : vector<2x1xf32> to vector<2x5xf32>
    %626 = vector.broadcast %586 : vector<1x5xf32> to vector<2x5xf32>
    %627 = arith.mulf %625, %626 : vector<2x5xf32>
    %628 = arith.addf %621, %627 : vector<2x5xf32>
    %c1_i32_153 = arith.constant 1 : i32
    %629 = vector.shape_cast %628 : vector<2x5xf32> to vector<2x1x5xf32>
    %630 = vector.broadcast %629 : vector<2x1x5xf32> to vector<2x5x5xf32>
    %631 = arith.addf %630, %585 : vector<2x5x5xf32>
    %cst_154 = arith.constant dense<0xFF800000> : vector<2x5xf32>
    %632 = vector.multi_reduction <maximumf>, %631, %cst_154 [2] : vector<2x5x5xf32> to vector<2x5xf32>
    %633 = vector.shape_cast %632 : vector<2x5xf32> to vector<2x5x1xf32>
    %634 = vector.broadcast %633 : vector<2x5x1xf32> to vector<2x5x5xf32>
    %635 = arith.cmpf oeq, %631, %634 : vector<2x5x5xf32>
    %c5_i32_155 = arith.constant 5 : i32
    %636 = vector.broadcast %c5_i32_155 : i32 to vector<2x5x5xi32>
    %637 = arith.select %635, %581, %636 : vector<2x5x5xi1>, vector<2x5x5xi32>
    %cst_156 = arith.constant dense<2147483647> : vector<2x5xi32>
    %638 = vector.multi_reduction <minsi>, %637, %cst_156 [2] : vector<2x5x5xi32> to vector<2x5xi32>
    %639 = arith.index_cast %c1_i32_153 : i32 to index
    %c0_157 = arith.constant 0 : index
    %c0_158 = arith.constant 0 : index
    %640 = vector.load %arg13[%639, %c0_157, %c0_158] : memref<8x2x5xi32, #tpu.memory_space<vmem>>, vector<1x2x5xi32>
    %641 = vector.shape_cast %640 : vector<1x2x5xi32> to vector<2x5xi32>
    %642 = vector.shape_cast %638 : vector<2x5xi32> to vector<1x2x5xi32>
    tpu.vector_store %arg13[%639, %c0_157, %c0_158], %642 {strides = array<i32>} : memref<8x2x5xi32, #tpu.memory_space<vmem>>, vector<1x2x5xi32>,
    %c2_i32_159 = arith.constant 2 : i32
    %643 = arith.muli %c1_i32_153, %c2_i32_159 : i32
    %644 = arith.index_cast %643 : i32 to index
    %c0_160 = arith.constant 0 : index
    %645 = vector.load %arg8[%644, %c0_160] : memref<16x128xf32, #tpu.memory_space<vmem>>, vector<2x128xf32>
    %646 = vector.extract_strided_slice %645 {offsets = [0, 0], sizes = [2, 5], strides = [1, 1]} : vector<2x128xf32> to vector<2x5xf32>
    %647 = arith.index_cast %c1_i32_153 : i32 to index
    %c0_161 = arith.constant 0 : index
    %c0_162 = arith.constant 0 : index
    %648 = vector.load %arg14[%647, %c0_161, %c0_162] : memref<8x4x1xf32, #tpu.memory_space<vmem>>, vector<1x4x1xf32>
    %649 = vector.shape_cast %648 : vector<1x4x1xf32> to vector<4x1xf32>
    %650 = vector.extract_strided_slice %649 {offsets = [0, 0], sizes = [2, 1], strides = [1, 1]} : vector<4x1xf32> to vector<2x1xf32>
    %651 = arith.addf %632, %646 : vector<2x5xf32>
    %652 = vector.broadcast %650 : vector<2x1xf32> to vector<2x5xf32>
    %653 = arith.mulf %652, %651 : vector<2x5xf32>
    %cst_163 = arith.constant 1.000000e+00 : f32
    %654 = vector.broadcast %cst_163 : f32 to vector<2x1xf32>
    %655 = arith.subf %654, %650 : vector<2x1xf32>
    %656 = vector.broadcast %655 : vector<2x1xf32> to vector<2x5xf32>
    %657 = arith.mulf %656, %628 : vector<2x5xf32>
    %658 = arith.addf %653, %657 : vector<2x5xf32>
    %659 = arith.index_cast %c1_i32_153 : i32 to index
    %c0_164 = arith.constant 0 : index
    %c0_165 = arith.constant 0 : index
    %660 = vector.load %arg15[%659, %c0_164, %c0_165] : memref<8x2x1xf32, #tpu.memory_space<vmem>>, vector<1x2x1xf32>
    %661 = vector.shape_cast %660 : vector<1x2x1xf32> to vector<2x1xf32>
    %662 = vector.broadcast %661 : vector<2x1xf32> to vector<2x5xf32>
    %663 = vector.broadcast %586 : vector<1x5xf32> to vector<2x5xf32>
    %664 = arith.mulf %662, %663 : vector<2x5xf32>
    %665 = arith.addf %658, %664 : vector<2x5xf32>
    %c2_i32_166 = arith.constant 2 : i32
    %666 = vector.shape_cast %665 : vector<2x5xf32> to vector<2x1x5xf32>
    %667 = vector.broadcast %666 : vector<2x1x5xf32> to vector<2x5x5xf32>
    %668 = arith.addf %667, %585 : vector<2x5x5xf32>
    %cst_167 = arith.constant dense<0xFF800000> : vector<2x5xf32>
    %669 = vector.multi_reduction <maximumf>, %668, %cst_167 [2] : vector<2x5x5xf32> to vector<2x5xf32>
    %670 = vector.shape_cast %669 : vector<2x5xf32> to vector<2x5x1xf32>
    %671 = vector.broadcast %670 : vector<2x5x1xf32> to vector<2x5x5xf32>
    %672 = arith.cmpf oeq, %668, %671 : vector<2x5x5xf32>
    %c5_i32_168 = arith.constant 5 : i32
    %673 = vector.broadcast %c5_i32_168 : i32 to vector<2x5x5xi32>
    %674 = arith.select %672, %581, %673 : vector<2x5x5xi1>, vector<2x5x5xi32>
    %cst_169 = arith.constant dense<2147483647> : vector<2x5xi32>
    %675 = vector.multi_reduction <minsi>, %674, %cst_169 [2] : vector<2x5x5xi32> to vector<2x5xi32>
    %676 = arith.index_cast %c2_i32_166 : i32 to index
    %c0_170 = arith.constant 0 : index
    %c0_171 = arith.constant 0 : index
    %677 = vector.load %arg13[%676, %c0_170, %c0_171] : memref<8x2x5xi32, #tpu.memory_space<vmem>>, vector<1x2x5xi32>
    %678 = vector.shape_cast %677 : vector<1x2x5xi32> to vector<2x5xi32>
    %679 = vector.shape_cast %675 : vector<2x5xi32> to vector<1x2x5xi32>
    tpu.vector_store %arg13[%676, %c0_170, %c0_171], %679 {strides = array<i32>} : memref<8x2x5xi32, #tpu.memory_space<vmem>>, vector<1x2x5xi32>,
    %c2_i32_172 = arith.constant 2 : i32
    %680 = arith.muli %c2_i32_166, %c2_i32_172 : i32
    %681 = arith.index_cast %680 : i32 to index
    %c0_173 = arith.constant 0 : index
    %682 = vector.load %arg8[%681, %c0_173] : memref<16x128xf32, #tpu.memory_space<vmem>>, vector<2x128xf32>
    %683 = vector.extract_strided_slice %682 {offsets = [0, 0], sizes = [2, 5], strides = [1, 1]} : vector<2x128xf32> to vector<2x5xf32>
    %684 = arith.index_cast %c2_i32_166 : i32 to index
    %c0_174 = arith.constant 0 : index
    %c0_175 = arith.constant 0 : index
    %685 = vector.load %arg14[%684, %c0_174, %c0_175] : memref<8x4x1xf32, #tpu.memory_space<vmem>>, vector<1x4x1xf32>
    %686 = vector.shape_cast %685 : vector<1x4x1xf32> to vector<4x1xf32>
    %687 = vector.extract_strided_slice %686 {offsets = [0, 0], sizes = [2, 1], strides = [1, 1]} : vector<4x1xf32> to vector<2x1xf32>
    %688 = arith.addf %669, %683 : vector<2x5xf32>
    %689 = vector.broadcast %687 : vector<2x1xf32> to vector<2x5xf32>
    %690 = arith.mulf %689, %688 : vector<2x5xf32>
    %cst_176 = arith.constant 1.000000e+00 : f32
    %691 = vector.broadcast %cst_176 : f32 to vector<2x1xf32>
    %692 = arith.subf %691, %687 : vector<2x1xf32>
    %693 = vector.broadcast %692 : vector<2x1xf32> to vector<2x5xf32>
    %694 = arith.mulf %693, %665 : vector<2x5xf32>
    %695 = arith.addf %690, %694 : vector<2x5xf32>
    %696 = arith.index_cast %c2_i32_166 : i32 to index
    %c0_177 = arith.constant 0 : index
    %c0_178 = arith.constant 0 : index
    %697 = vector.load %arg15[%696, %c0_177, %c0_178] : memref<8x2x1xf32, #tpu.memory_space<vmem>>, vector<1x2x1xf32>
    %698 = vector.shape_cast %697 : vector<1x2x1xf32> to vector<2x1xf32>
    %699 = vector.broadcast %698 : vector<2x1xf32> to vector<2x5xf32>
    %700 = vector.broadcast %586 : vector<1x5xf32> to vector<2x5xf32>
    %701 = arith.mulf %699, %700 : vector<2x5xf32>
    %702 = arith.addf %695, %701 : vector<2x5xf32>
    %c3_i32_179 = arith.constant 3 : i32
    %703 = vector.shape_cast %702 : vector<2x5xf32> to vector<2x1x5xf32>
    %704 = vector.broadcast %703 : vector<2x1x5xf32> to vector<2x5x5xf32>
    %705 = arith.addf %704, %585 : vector<2x5x5xf32>
    %cst_180 = arith.constant dense<0xFF800000> : vector<2x5xf32>
    %706 = vector.multi_reduction <maximumf>, %705, %cst_180 [2] : vector<2x5x5xf32> to vector<2x5xf32>
    %707 = vector.shape_cast %706 : vector<2x5xf32> to vector<2x5x1xf32>
    %708 = vector.broadcast %707 : vector<2x5x1xf32> to vector<2x5x5xf32>
    %709 = arith.cmpf oeq, %705, %708 : vector<2x5x5xf32>
    %c5_i32_181 = arith.constant 5 : i32
    %710 = vector.broadcast %c5_i32_181 : i32 to vector<2x5x5xi32>
    %711 = arith.select %709, %581, %710 : vector<2x5x5xi1>, vector<2x5x5xi32>
    %cst_182 = arith.constant dense<2147483647> : vector<2x5xi32>
    %712 = vector.multi_reduction <minsi>, %711, %cst_182 [2] : vector<2x5x5xi32> to vector<2x5xi32>
    %713 = arith.index_cast %c3_i32_179 : i32 to index
    %c0_183 = arith.constant 0 : index
    %c0_184 = arith.constant 0 : index
    %714 = vector.load %arg13[%713, %c0_183, %c0_184] : memref<8x2x5xi32, #tpu.memory_space<vmem>>, vector<1x2x5xi32>
    %715 = vector.shape_cast %714 : vector<1x2x5xi32> to vector<2x5xi32>
    %716 = vector.shape_cast %712 : vector<2x5xi32> to vector<1x2x5xi32>
    tpu.vector_store %arg13[%713, %c0_183, %c0_184], %716 {strides = array<i32>} : memref<8x2x5xi32, #tpu.memory_space<vmem>>, vector<1x2x5xi32>,
    %c2_i32_185 = arith.constant 2 : i32
    %717 = arith.muli %c3_i32_179, %c2_i32_185 : i32
    %718 = arith.index_cast %717 : i32 to index
    %c0_186 = arith.constant 0 : index
    %719 = vector.load %arg8[%718, %c0_186] : memref<16x128xf32, #tpu.memory_space<vmem>>, vector<2x128xf32>
    %720 = vector.extract_strided_slice %719 {offsets = [0, 0], sizes = [2, 5], strides = [1, 1]} : vector<2x128xf32> to vector<2x5xf32>
    %721 = arith.index_cast %c3_i32_179 : i32 to index
    %c0_187 = arith.constant 0 : index
    %c0_188 = arith.constant 0 : index
    %722 = vector.load %arg14[%721, %c0_187, %c0_188] : memref<8x4x1xf32, #tpu.memory_space<vmem>>, vector<1x4x1xf32>
    %723 = vector.shape_cast %722 : vector<1x4x1xf32> to vector<4x1xf32>
    %724 = vector.extract_strided_slice %723 {offsets = [0, 0], sizes = [2, 1], strides = [1, 1]} : vector<4x1xf32> to vector<2x1xf32>
    %725 = arith.addf %706, %720 : vector<2x5xf32>
    %726 = vector.broadcast %724 : vector<2x1xf32> to vector<2x5xf32>
    %727 = arith.mulf %726, %725 : vector<2x5xf32>
    %cst_189 = arith.constant 1.000000e+00 : f32
    %728 = vector.broadcast %cst_189 : f32 to vector<2x1xf32>
    %729 = arith.subf %728, %724 : vector<2x1xf32>
    %730 = vector.broadcast %729 : vector<2x1xf32> to vector<2x5xf32>
    %731 = arith.mulf %730, %702 : vector<2x5xf32>
    %732 = arith.addf %727, %731 : vector<2x5xf32>
    %733 = arith.index_cast %c3_i32_179 : i32 to index
    %c0_190 = arith.constant 0 : index
    %c0_191 = arith.constant 0 : index
    %734 = vector.load %arg15[%733, %c0_190, %c0_191] : memref<8x2x1xf32, #tpu.memory_space<vmem>>, vector<1x2x1xf32>
    %735 = vector.shape_cast %734 : vector<1x2x1xf32> to vector<2x1xf32>
    %736 = vector.broadcast %735 : vector<2x1xf32> to vector<2x5xf32>
    %737 = vector.broadcast %586 : vector<1x5xf32> to vector<2x5xf32>
    %738 = arith.mulf %736, %737 : vector<2x5xf32>
    %739 = arith.addf %732, %738 : vector<2x5xf32>
    %c4_i32_192 = arith.constant 4 : i32
    %740 = vector.shape_cast %739 : vector<2x5xf32> to vector<2x1x5xf32>
    %741 = vector.broadcast %740 : vector<2x1x5xf32> to vector<2x5x5xf32>
    %742 = arith.addf %741, %585 : vector<2x5x5xf32>
    %cst_193 = arith.constant dense<0xFF800000> : vector<2x5xf32>
    %743 = vector.multi_reduction <maximumf>, %742, %cst_193 [2] : vector<2x5x5xf32> to vector<2x5xf32>
    %744 = vector.shape_cast %743 : vector<2x5xf32> to vector<2x5x1xf32>
    %745 = vector.broadcast %744 : vector<2x5x1xf32> to vector<2x5x5xf32>
    %746 = arith.cmpf oeq, %742, %745 : vector<2x5x5xf32>
    %c5_i32_194 = arith.constant 5 : i32
    %747 = vector.broadcast %c5_i32_194 : i32 to vector<2x5x5xi32>
    %748 = arith.select %746, %581, %747 : vector<2x5x5xi1>, vector<2x5x5xi32>
    %cst_195 = arith.constant dense<2147483647> : vector<2x5xi32>
    %749 = vector.multi_reduction <minsi>, %748, %cst_195 [2] : vector<2x5x5xi32> to vector<2x5xi32>
    %750 = arith.index_cast %c4_i32_192 : i32 to index
    %c0_196 = arith.constant 0 : index
    %c0_197 = arith.constant 0 : index
    %751 = vector.load %arg13[%750, %c0_196, %c0_197] : memref<8x2x5xi32, #tpu.memory_space<vmem>>, vector<1x2x5xi32>
    %752 = vector.shape_cast %751 : vector<1x2x5xi32> to vector<2x5xi32>
    %753 = vector.shape_cast %749 : vector<2x5xi32> to vector<1x2x5xi32>
    tpu.vector_store %arg13[%750, %c0_196, %c0_197], %753 {strides = array<i32>} : memref<8x2x5xi32, #tpu.memory_space<vmem>>, vector<1x2x5xi32>,
    %c2_i32_198 = arith.constant 2 : i32
    %754 = arith.muli %c4_i32_192, %c2_i32_198 : i32
    %755 = arith.index_cast %754 : i32 to index
    %c0_199 = arith.constant 0 : index
    %756 = vector.load %arg8[%755, %c0_199] : memref<16x128xf32, #tpu.memory_space<vmem>>, vector<2x128xf32>
    %757 = vector.extract_strided_slice %756 {offsets = [0, 0], sizes = [2, 5], strides = [1, 1]} : vector<2x128xf32> to vector<2x5xf32>
    %758 = arith.index_cast %c4_i32_192 : i32 to index
    %c0_200 = arith.constant 0 : index
    %c0_201 = arith.constant 0 : index
    %759 = vector.load %arg14[%758, %c0_200, %c0_201] : memref<8x4x1xf32, #tpu.memory_space<vmem>>, vector<1x4x1xf32>
    %760 = vector.shape_cast %759 : vector<1x4x1xf32> to vector<4x1xf32>
    %761 = vector.extract_strided_slice %760 {offsets = [0, 0], sizes = [2, 1], strides = [1, 1]} : vector<4x1xf32> to vector<2x1xf32>
    %762 = arith.addf %743, %757 : vector<2x5xf32>
    %763 = vector.broadcast %761 : vector<2x1xf32> to vector<2x5xf32>
    %764 = arith.mulf %763, %762 : vector<2x5xf32>
    %cst_202 = arith.constant 1.000000e+00 : f32
    %765 = vector.broadcast %cst_202 : f32 to vector<2x1xf32>
    %766 = arith.subf %765, %761 : vector<2x1xf32>
    %767 = vector.broadcast %766 : vector<2x1xf32> to vector<2x5xf32>
    %768 = arith.mulf %767, %739 : vector<2x5xf32>
    %769 = arith.addf %764, %768 : vector<2x5xf32>
    %770 = arith.index_cast %c4_i32_192 : i32 to index
    %c0_203 = arith.constant 0 : index
    %c0_204 = arith.constant 0 : index
    %771 = vector.load %arg15[%770, %c0_203, %c0_204] : memref<8x2x1xf32, #tpu.memory_space<vmem>>, vector<1x2x1xf32>
    %772 = vector.shape_cast %771 : vector<1x2x1xf32> to vector<2x1xf32>
    %773 = vector.broadcast %772 : vector<2x1xf32> to vector<2x5xf32>
    %774 = vector.broadcast %586 : vector<1x5xf32> to vector<2x5xf32>
    %775 = arith.mulf %773, %774 : vector<2x5xf32>
    %776 = arith.addf %769, %775 : vector<2x5xf32>
    %c5_i32_205 = arith.constant 5 : i32
    %777 = vector.shape_cast %776 : vector<2x5xf32> to vector<2x1x5xf32>
    %778 = vector.broadcast %777 : vector<2x1x5xf32> to vector<2x5x5xf32>
    %779 = arith.addf %778, %585 : vector<2x5x5xf32>
    %cst_206 = arith.constant dense<0xFF800000> : vector<2x5xf32>
    %780 = vector.multi_reduction <maximumf>, %779, %cst_206 [2] : vector<2x5x5xf32> to vector<2x5xf32>
    %781 = vector.shape_cast %780 : vector<2x5xf32> to vector<2x5x1xf32>
    %782 = vector.broadcast %781 : vector<2x5x1xf32> to vector<2x5x5xf32>
    %783 = arith.cmpf oeq, %779, %782 : vector<2x5x5xf32>
    %c5_i32_207 = arith.constant 5 : i32
    %784 = vector.broadcast %c5_i32_207 : i32 to vector<2x5x5xi32>
    %785 = arith.select %783, %581, %784 : vector<2x5x5xi1>, vector<2x5x5xi32>
    %cst_208 = arith.constant dense<2147483647> : vector<2x5xi32>
    %786 = vector.multi_reduction <minsi>, %785, %cst_208 [2] : vector<2x5x5xi32> to vector<2x5xi32>
    %787 = arith.index_cast %c5_i32_205 : i32 to index
    %c0_209 = arith.constant 0 : index
    %c0_210 = arith.constant 0 : index
    %788 = vector.load %arg13[%787, %c0_209, %c0_210] : memref<8x2x5xi32, #tpu.memory_space<vmem>>, vector<1x2x5xi32>
    %789 = vector.shape_cast %788 : vector<1x2x5xi32> to vector<2x5xi32>
    %790 = vector.shape_cast %786 : vector<2x5xi32> to vector<1x2x5xi32>
    tpu.vector_store %arg13[%787, %c0_209, %c0_210], %790 {strides = array<i32>} : memref<8x2x5xi32, #tpu.memory_space<vmem>>, vector<1x2x5xi32>,
    %c2_i32_211 = arith.constant 2 : i32
    %791 = arith.muli %c5_i32_205, %c2_i32_211 : i32
    %792 = arith.index_cast %791 : i32 to index
    %c0_212 = arith.constant 0 : index
    %793 = vector.load %arg8[%792, %c0_212] : memref<16x128xf32, #tpu.memory_space<vmem>>, vector<2x128xf32>
    %794 = vector.extract_strided_slice %793 {offsets = [0, 0], sizes = [2, 5], strides = [1, 1]} : vector<2x128xf32> to vector<2x5xf32>
    %795 = arith.index_cast %c5_i32_205 : i32 to index
    %c0_213 = arith.constant 0 : index
    %c0_214 = arith.constant 0 : index
    %796 = vector.load %arg14[%795, %c0_213, %c0_214] : memref<8x4x1xf32, #tpu.memory_space<vmem>>, vector<1x4x1xf32>
    %797 = vector.shape_cast %796 : vector<1x4x1xf32> to vector<4x1xf32>
    %798 = vector.extract_strided_slice %797 {offsets = [0, 0], sizes = [2, 1], strides = [1, 1]} : vector<4x1xf32> to vector<2x1xf32>
    %799 = arith.addf %780, %794 : vector<2x5xf32>
    %800 = vector.broadcast %798 : vector<2x1xf32> to vector<2x5xf32>
    %801 = arith.mulf %800, %799 : vector<2x5xf32>
    %cst_215 = arith.constant 1.000000e+00 : f32
    %802 = vector.broadcast %cst_215 : f32 to vector<2x1xf32>
    %803 = arith.subf %802, %798 : vector<2x1xf32>
    %804 = vector.broadcast %803 : vector<2x1xf32> to vector<2x5xf32>
    %805 = arith.mulf %804, %776 : vector<2x5xf32>
    %806 = arith.addf %801, %805 : vector<2x5xf32>
    %807 = arith.index_cast %c5_i32_205 : i32 to index
    %c0_216 = arith.constant 0 : index
    %c0_217 = arith.constant 0 : index
    %808 = vector.load %arg15[%807, %c0_216, %c0_217] : memref<8x2x1xf32, #tpu.memory_space<vmem>>, vector<1x2x1xf32>
    %809 = vector.shape_cast %808 : vector<1x2x1xf32> to vector<2x1xf32>
    %810 = vector.broadcast %809 : vector<2x1xf32> to vector<2x5xf32>
    %811 = vector.broadcast %586 : vector<1x5xf32> to vector<2x5xf32>
    %812 = arith.mulf %810, %811 : vector<2x5xf32>
    %813 = arith.addf %806, %812 : vector<2x5xf32>
    %c6_i32_218 = arith.constant 6 : i32
    %814 = vector.shape_cast %813 : vector<2x5xf32> to vector<2x1x5xf32>
    %815 = vector.broadcast %814 : vector<2x1x5xf32> to vector<2x5x5xf32>
    %816 = arith.addf %815, %585 : vector<2x5x5xf32>
    %cst_219 = arith.constant dense<0xFF800000> : vector<2x5xf32>
    %817 = vector.multi_reduction <maximumf>, %816, %cst_219 [2] : vector<2x5x5xf32> to vector<2x5xf32>
    %818 = vector.shape_cast %817 : vector<2x5xf32> to vector<2x5x1xf32>
    %819 = vector.broadcast %818 : vector<2x5x1xf32> to vector<2x5x5xf32>
    %820 = arith.cmpf oeq, %816, %819 : vector<2x5x5xf32>
    %c5_i32_220 = arith.constant 5 : i32
    %821 = vector.broadcast %c5_i32_220 : i32 to vector<2x5x5xi32>
    %822 = arith.select %820, %581, %821 : vector<2x5x5xi1>, vector<2x5x5xi32>
    %cst_221 = arith.constant dense<2147483647> : vector<2x5xi32>
    %823 = vector.multi_reduction <minsi>, %822, %cst_221 [2] : vector<2x5x5xi32> to vector<2x5xi32>
    %824 = arith.index_cast %c6_i32_218 : i32 to index
    %c0_222 = arith.constant 0 : index
    %c0_223 = arith.constant 0 : index
    %825 = vector.load %arg13[%824, %c0_222, %c0_223] : memref<8x2x5xi32, #tpu.memory_space<vmem>>, vector<1x2x5xi32>
    %826 = vector.shape_cast %825 : vector<1x2x5xi32> to vector<2x5xi32>
    %827 = vector.shape_cast %823 : vector<2x5xi32> to vector<1x2x5xi32>
    tpu.vector_store %arg13[%824, %c0_222, %c0_223], %827 {strides = array<i32>} : memref<8x2x5xi32, #tpu.memory_space<vmem>>, vector<1x2x5xi32>,
    %c2_i32_224 = arith.constant 2 : i32
    %828 = arith.muli %c6_i32_218, %c2_i32_224 : i32
    %829 = arith.index_cast %828 : i32 to index
    %c0_225 = arith.constant 0 : index
    %830 = vector.load %arg8[%829, %c0_225] : memref<16x128xf32, #tpu.memory_space<vmem>>, vector<2x128xf32>
    %831 = vector.extract_strided_slice %830 {offsets = [0, 0], sizes = [2, 5], strides = [1, 1]} : vector<2x128xf32> to vector<2x5xf32>
    %832 = arith.index_cast %c6_i32_218 : i32 to index
    %c0_226 = arith.constant 0 : index
    %c0_227 = arith.constant 0 : index
    %833 = vector.load %arg14[%832, %c0_226, %c0_227] : memref<8x4x1xf32, #tpu.memory_space<vmem>>, vector<1x4x1xf32>
    %834 = vector.shape_cast %833 : vector<1x4x1xf32> to vector<4x1xf32>
    %835 = vector.extract_strided_slice %834 {offsets = [0, 0], sizes = [2, 1], strides = [1, 1]} : vector<4x1xf32> to vector<2x1xf32>
    %836 = arith.addf %817, %831 : vector<2x5xf32>
    %837 = vector.broadcast %835 : vector<2x1xf32> to vector<2x5xf32>
    %838 = arith.mulf %837, %836 : vector<2x5xf32>
    %cst_228 = arith.constant 1.000000e+00 : f32
    %839 = vector.broadcast %cst_228 : f32 to vector<2x1xf32>
    %840 = arith.subf %839, %835 : vector<2x1xf32>
    %841 = vector.broadcast %840 : vector<2x1xf32> to vector<2x5xf32>
    %842 = arith.mulf %841, %813 : vector<2x5xf32>
    %843 = arith.addf %838, %842 : vector<2x5xf32>
    %844 = arith.index_cast %c6_i32_218 : i32 to index
    %c0_229 = arith.constant 0 : index
    %c0_230 = arith.constant 0 : index
    %845 = vector.load %arg15[%844, %c0_229, %c0_230] : memref<8x2x1xf32, #tpu.memory_space<vmem>>, vector<1x2x1xf32>
    %846 = vector.shape_cast %845 : vector<1x2x1xf32> to vector<2x1xf32>
    %847 = vector.broadcast %846 : vector<2x1xf32> to vector<2x5xf32>
    %848 = vector.broadcast %586 : vector<1x5xf32> to vector<2x5xf32>
    %849 = arith.mulf %847, %848 : vector<2x5xf32>
    %850 = arith.addf %843, %849 : vector<2x5xf32>
    %c7_i32_231 = arith.constant 7 : i32
    %851 = vector.shape_cast %850 : vector<2x5xf32> to vector<2x1x5xf32>
    %852 = vector.broadcast %851 : vector<2x1x5xf32> to vector<2x5x5xf32>
    %853 = arith.addf %852, %585 : vector<2x5x5xf32>
    %cst_232 = arith.constant dense<0xFF800000> : vector<2x5xf32>
    %854 = vector.multi_reduction <maximumf>, %853, %cst_232 [2] : vector<2x5x5xf32> to vector<2x5xf32>
    %855 = vector.shape_cast %854 : vector<2x5xf32> to vector<2x5x1xf32>
    %856 = vector.broadcast %855 : vector<2x5x1xf32> to vector<2x5x5xf32>
    %857 = arith.cmpf oeq, %853, %856 : vector<2x5x5xf32>
    %c5_i32_233 = arith.constant 5 : i32
    %858 = vector.broadcast %c5_i32_233 : i32 to vector<2x5x5xi32>
    %859 = arith.select %857, %581, %858 : vector<2x5x5xi1>, vector<2x5x5xi32>
    %cst_234 = arith.constant dense<2147483647> : vector<2x5xi32>
    %860 = vector.multi_reduction <minsi>, %859, %cst_234 [2] : vector<2x5x5xi32> to vector<2x5xi32>
    %861 = arith.index_cast %c7_i32_231 : i32 to index
    %c0_235 = arith.constant 0 : index
    %c0_236 = arith.constant 0 : index
    %862 = vector.load %arg13[%861, %c0_235, %c0_236] : memref<8x2x5xi32, #tpu.memory_space<vmem>>, vector<1x2x5xi32>
    %863 = vector.shape_cast %862 : vector<1x2x5xi32> to vector<2x5xi32>
    %864 = vector.shape_cast %860 : vector<2x5xi32> to vector<1x2x5xi32>
    tpu.vector_store %arg13[%861, %c0_235, %c0_236], %864 {strides = array<i32>} : memref<8x2x5xi32, #tpu.memory_space<vmem>>, vector<1x2x5xi32>,
    %c2_i32_237 = arith.constant 2 : i32
    %865 = arith.muli %c7_i32_231, %c2_i32_237 : i32
    %866 = arith.index_cast %865 : i32 to index
    %c0_238 = arith.constant 0 : index
    %867 = vector.load %arg8[%866, %c0_238] : memref<16x128xf32, #tpu.memory_space<vmem>>, vector<2x128xf32>
    %868 = vector.extract_strided_slice %867 {offsets = [0, 0], sizes = [2, 5], strides = [1, 1]} : vector<2x128xf32> to vector<2x5xf32>
    %869 = arith.index_cast %c7_i32_231 : i32 to index
    %c0_239 = arith.constant 0 : index
    %c0_240 = arith.constant 0 : index
    %870 = vector.load %arg14[%869, %c0_239, %c0_240] : memref<8x4x1xf32, #tpu.memory_space<vmem>>, vector<1x4x1xf32>
    %871 = vector.shape_cast %870 : vector<1x4x1xf32> to vector<4x1xf32>
    %872 = vector.extract_strided_slice %871 {offsets = [0, 0], sizes = [2, 1], strides = [1, 1]} : vector<4x1xf32> to vector<2x1xf32>
    %873 = arith.addf %854, %868 : vector<2x5xf32>
    %874 = vector.broadcast %872 : vector<2x1xf32> to vector<2x5xf32>
    %875 = arith.mulf %874, %873 : vector<2x5xf32>
    %cst_241 = arith.constant 1.000000e+00 : f32
    %876 = vector.broadcast %cst_241 : f32 to vector<2x1xf32>
    %877 = arith.subf %876, %872 : vector<2x1xf32>
    %878 = vector.broadcast %877 : vector<2x1xf32> to vector<2x5xf32>
    %879 = arith.mulf %878, %850 : vector<2x5xf32>
    %880 = arith.addf %875, %879 : vector<2x5xf32>
    %881 = arith.index_cast %c7_i32_231 : i32 to index
    %c0_242 = arith.constant 0 : index
    %c0_243 = arith.constant 0 : index
    %882 = vector.load %arg15[%881, %c0_242, %c0_243] : memref<8x2x1xf32, #tpu.memory_space<vmem>>, vector<1x2x1xf32>
    %883 = vector.shape_cast %882 : vector<1x2x1xf32> to vector<2x1xf32>
    %884 = vector.broadcast %883 : vector<2x1xf32> to vector<2x5xf32>
    %885 = vector.broadcast %586 : vector<1x5xf32> to vector<2x5xf32>
    %886 = arith.mulf %884, %885 : vector<2x5xf32>
    %887 = arith.addf %880, %886 : vector<2x5xf32>
    %c8_i32_244 = arith.constant 8 : i32
    %cst_245 = arith.constant dense<0xFF800000> : vector<2xf32>
    %888 = vector.multi_reduction <maximumf>, %887, %cst_245 [1] : vector<2x5xf32> to vector<2xf32>
    %889 = vector.shape_cast %888 : vector<2xf32> to vector<2x1xf32>
    %890 = vector.broadcast %889 : vector<2x1xf32> to vector<2x5xf32>
    %891 = arith.cmpf oeq, %887, %890 : vector<2x5xf32>
    %c5_i32_246 = arith.constant 5 : i32
    %892 = vector.broadcast %c5_i32_246 : i32 to vector<2x5xi32>
    %893 = arith.select %891, %580, %892 : vector<2x5xi1>, vector<2x5xi32>
    %cst_247 = arith.constant dense<2147483647> : vector<2xi32>
    %894 = vector.multi_reduction <minsi>, %893, %cst_247 [1] : vector<2x5xi32> to vector<2xi32>
    %895 = vector.shape_cast %894 : vector<2xi32> to vector<2x1xi32>
    %c0_248 = arith.constant 0 : index
    %c0_249 = arith.constant 0 : index
    %896 = vector.load %arg9[%c0_248, %c0_249] : memref<2x1xf32, #tpu.memory_space<vmem>>, vector<2x1xf32>
    tpu.vector_store %arg9[%c0_248, %c0_249], %889 {strides = array<i32>} : memref<2x1xf32, #tpu.memory_space<vmem>>, vector<2x1xf32>,
    %c7 = arith.constant 7 : index
    %c0_250 = arith.constant 0 : index
    %c0_251 = arith.constant 0 : index
    %897 = vector.load %arg10[%c7, %c0_250, %c0_251] : memref<8x2x1xi32, #tpu.memory_space<vmem>>, vector<1x2x1xi32>
    %898 = vector.shape_cast %897 : vector<1x2x1xi32> to vector<2x1xi32>
    %899 = vector.shape_cast %895 : vector<2x1xi32> to vector<1x2x1xi32>
    tpu.vector_store %arg10[%c7, %c0_250, %c0_251], %899 {strides = array<i32>} : memref<8x2x1xi32, #tpu.memory_space<vmem>>, vector<1x2x1xi32>,
    %c1_i32_252 = arith.constant 1 : i32
    %c8_i32_253 = arith.constant 8 : i32
    %900 = arith.subi %c8_i32_253, %c1_i32_252 : i32
    %901 = arith.index_cast %900 : i32 to index
    %c0_254 = arith.constant 0 : index
    %c0_255 = arith.constant 0 : index
    %902 = vector.load %arg13[%901, %c0_254, %c0_255] : memref<8x2x5xi32, #tpu.memory_space<vmem>>, vector<1x2x5xi32>
    %903 = vector.shape_cast %902 : vector<1x2x5xi32> to vector<2x5xi32>
    %904 = vector.broadcast %895 : vector<2x1xi32> to vector<2x5xi32>
    %905 = arith.cmpi eq, %580, %904 : vector<2x5xi32>
    %c0_i32_256 = arith.constant 0 : i32
    %906 = vector.broadcast %c0_i32_256 : i32 to vector<2x5xi32>
    %907 = arith.select %905, %903, %906 : vector<2x5xi1>, vector<2x5xi32>
    %cst_257 = arith.constant dense<0> : vector<2xi32>
    %908 = vector.multi_reduction <add>, %907, %cst_257 [1] : vector<2x5xi32> to vector<2xi32>
    %909 = vector.shape_cast %908 : vector<2xi32> to vector<2x1xi32>
    %c1_i32_258 = arith.constant 1 : i32
    %910 = arith.subi %900, %c1_i32_258 : i32
    %911 = arith.index_cast %910 : i32 to index
    %c0_259 = arith.constant 0 : index
    %c0_260 = arith.constant 0 : index
    %912 = vector.load %arg10[%911, %c0_259, %c0_260] : memref<8x2x1xi32, #tpu.memory_space<vmem>>, vector<1x2x1xi32>
    %913 = vector.shape_cast %912 : vector<1x2x1xi32> to vector<2x1xi32>
    %914 = vector.shape_cast %909 : vector<2x1xi32> to vector<1x2x1xi32>
    tpu.vector_store %arg10[%911, %c0_259, %c0_260], %914 {strides = array<i32>} : memref<8x2x1xi32, #tpu.memory_space<vmem>>, vector<1x2x1xi32>,
    %c2_i32_261 = arith.constant 2 : i32
    %c8_i32_262 = arith.constant 8 : i32
    %915 = arith.subi %c8_i32_262, %c2_i32_261 : i32
    %916 = arith.index_cast %915 : i32 to index
    %c0_263 = arith.constant 0 : index
    %c0_264 = arith.constant 0 : index
    %917 = vector.load %arg13[%916, %c0_263, %c0_264] : memref<8x2x5xi32, #tpu.memory_space<vmem>>, vector<1x2x5xi32>
    %918 = vector.shape_cast %917 : vector<1x2x5xi32> to vector<2x5xi32>
    %919 = vector.broadcast %909 : vector<2x1xi32> to vector<2x5xi32>
    %920 = arith.cmpi eq, %580, %919 : vector<2x5xi32>
    %c0_i32_265 = arith.constant 0 : i32
    %921 = vector.broadcast %c0_i32_265 : i32 to vector<2x5xi32>
    %922 = arith.select %920, %918, %921 : vector<2x5xi1>, vector<2x5xi32>
    %cst_266 = arith.constant dense<0> : vector<2xi32>
    %923 = vector.multi_reduction <add>, %922, %cst_266 [1] : vector<2x5xi32> to vector<2xi32>
    %924 = vector.shape_cast %923 : vector<2xi32> to vector<2x1xi32>
    %c1_i32_267 = arith.constant 1 : i32
    %925 = arith.subi %915, %c1_i32_267 : i32
    %926 = arith.index_cast %925 : i32 to index
    %c0_268 = arith.constant 0 : index
    %c0_269 = arith.constant 0 : index
    %927 = vector.load %arg10[%926, %c0_268, %c0_269] : memref<8x2x1xi32, #tpu.memory_space<vmem>>, vector<1x2x1xi32>
    %928 = vector.shape_cast %927 : vector<1x2x1xi32> to vector<2x1xi32>
    %929 = vector.shape_cast %924 : vector<2x1xi32> to vector<1x2x1xi32>
    tpu.vector_store %arg10[%926, %c0_268, %c0_269], %929 {strides = array<i32>} : memref<8x2x1xi32, #tpu.memory_space<vmem>>, vector<1x2x1xi32>,
    %c3_i32_270 = arith.constant 3 : i32
    %c8_i32_271 = arith.constant 8 : i32
    %930 = arith.subi %c8_i32_271, %c3_i32_270 : i32
    %931 = arith.index_cast %930 : i32 to index
    %c0_272 = arith.constant 0 : index
    %c0_273 = arith.constant 0 : index
    %932 = vector.load %arg13[%931, %c0_272, %c0_273] : memref<8x2x5xi32, #tpu.memory_space<vmem>>, vector<1x2x5xi32>
    %933 = vector.shape_cast %932 : vector<1x2x5xi32> to vector<2x5xi32>
    %934 = vector.broadcast %924 : vector<2x1xi32> to vector<2x5xi32>
    %935 = arith.cmpi eq, %580, %934 : vector<2x5xi32>
    %c0_i32_274 = arith.constant 0 : i32
    %936 = vector.broadcast %c0_i32_274 : i32 to vector<2x5xi32>
    %937 = arith.select %935, %933, %936 : vector<2x5xi1>, vector<2x5xi32>
    %cst_275 = arith.constant dense<0> : vector<2xi32>
    %938 = vector.multi_reduction <add>, %937, %cst_275 [1] : vector<2x5xi32> to vector<2xi32>
    %939 = vector.shape_cast %938 : vector<2xi32> to vector<2x1xi32>
    %c1_i32_276 = arith.constant 1 : i32
    %940 = arith.subi %930, %c1_i32_276 : i32
    %941 = arith.index_cast %940 : i32 to index
    %c0_277 = arith.constant 0 : index
    %c0_278 = arith.constant 0 : index
    %942 = vector.load %arg10[%941, %c0_277, %c0_278] : memref<8x2x1xi32, #tpu.memory_space<vmem>>, vector<1x2x1xi32>
    %943 = vector.shape_cast %942 : vector<1x2x1xi32> to vector<2x1xi32>
    %944 = vector.shape_cast %939 : vector<2x1xi32> to vector<1x2x1xi32>
    tpu.vector_store %arg10[%941, %c0_277, %c0_278], %944 {strides = array<i32>} : memref<8x2x1xi32, #tpu.memory_space<vmem>>, vector<1x2x1xi32>,
    %c4_i32_279 = arith.constant 4 : i32
    %c8_i32_280 = arith.constant 8 : i32
    %945 = arith.subi %c8_i32_280, %c4_i32_279 : i32
    %946 = arith.index_cast %945 : i32 to index
    %c0_281 = arith.constant 0 : index
    %c0_282 = arith.constant 0 : index
    %947 = vector.load %arg13[%946, %c0_281, %c0_282] : memref<8x2x5xi32, #tpu.memory_space<vmem>>, vector<1x2x5xi32>
    %948 = vector.shape_cast %947 : vector<1x2x5xi32> to vector<2x5xi32>
    %949 = vector.broadcast %939 : vector<2x1xi32> to vector<2x5xi32>
    %950 = arith.cmpi eq, %580, %949 : vector<2x5xi32>
    %c0_i32_283 = arith.constant 0 : i32
    %951 = vector.broadcast %c0_i32_283 : i32 to vector<2x5xi32>
    %952 = arith.select %950, %948, %951 : vector<2x5xi1>, vector<2x5xi32>
    %cst_284 = arith.constant dense<0> : vector<2xi32>
    %953 = vector.multi_reduction <add>, %952, %cst_284 [1] : vector<2x5xi32> to vector<2xi32>
    %954 = vector.shape_cast %953 : vector<2xi32> to vector<2x1xi32>
    %c1_i32_285 = arith.constant 1 : i32
    %955 = arith.subi %945, %c1_i32_285 : i32
    %956 = arith.index_cast %955 : i32 to index
    %c0_286 = arith.constant 0 : index
    %c0_287 = arith.constant 0 : index
    %957 = vector.load %arg10[%956, %c0_286, %c0_287] : memref<8x2x1xi32, #tpu.memory_space<vmem>>, vector<1x2x1xi32>
    %958 = vector.shape_cast %957 : vector<1x2x1xi32> to vector<2x1xi32>
    %959 = vector.shape_cast %954 : vector<2x1xi32> to vector<1x2x1xi32>
    tpu.vector_store %arg10[%956, %c0_286, %c0_287], %959 {strides = array<i32>} : memref<8x2x1xi32, #tpu.memory_space<vmem>>, vector<1x2x1xi32>,
    %c5_i32_288 = arith.constant 5 : i32
    %c8_i32_289 = arith.constant 8 : i32
    %960 = arith.subi %c8_i32_289, %c5_i32_288 : i32
    %961 = arith.index_cast %960 : i32 to index
    %c0_290 = arith.constant 0 : index
    %c0_291 = arith.constant 0 : index
    %962 = vector.load %arg13[%961, %c0_290, %c0_291] : memref<8x2x5xi32, #tpu.memory_space<vmem>>, vector<1x2x5xi32>
    %963 = vector.shape_cast %962 : vector<1x2x5xi32> to vector<2x5xi32>
    %964 = vector.broadcast %954 : vector<2x1xi32> to vector<2x5xi32>
    %965 = arith.cmpi eq, %580, %964 : vector<2x5xi32>
    %c0_i32_292 = arith.constant 0 : i32
    %966 = vector.broadcast %c0_i32_292 : i32 to vector<2x5xi32>
    %967 = arith.select %965, %963, %966 : vector<2x5xi1>, vector<2x5xi32>
    %cst_293 = arith.constant dense<0> : vector<2xi32>
    %968 = vector.multi_reduction <add>, %967, %cst_293 [1] : vector<2x5xi32> to vector<2xi32>
    %969 = vector.shape_cast %968 : vector<2xi32> to vector<2x1xi32>
    %c1_i32_294 = arith.constant 1 : i32
    %970 = arith.subi %960, %c1_i32_294 : i32
    %971 = arith.index_cast %970 : i32 to index
    %c0_295 = arith.constant 0 : index
    %c0_296 = arith.constant 0 : index
    %972 = vector.load %arg10[%971, %c0_295, %c0_296] : memref<8x2x1xi32, #tpu.memory_space<vmem>>, vector<1x2x1xi32>
    %973 = vector.shape_cast %972 : vector<1x2x1xi32> to vector<2x1xi32>
    %974 = vector.shape_cast %969 : vector<2x1xi32> to vector<1x2x1xi32>
    tpu.vector_store %arg10[%971, %c0_295, %c0_296], %974 {strides = array<i32>} : memref<8x2x1xi32, #tpu.memory_space<vmem>>, vector<1x2x1xi32>,
    %c6_i32_297 = arith.constant 6 : i32
    %c8_i32_298 = arith.constant 8 : i32
    %975 = arith.subi %c8_i32_298, %c6_i32_297 : i32
    %976 = arith.index_cast %975 : i32 to index
    %c0_299 = arith.constant 0 : index
    %c0_300 = arith.constant 0 : index
    %977 = vector.load %arg13[%976, %c0_299, %c0_300] : memref<8x2x5xi32, #tpu.memory_space<vmem>>, vector<1x2x5xi32>
    %978 = vector.shape_cast %977 : vector<1x2x5xi32> to vector<2x5xi32>
    %979 = vector.broadcast %969 : vector<2x1xi32> to vector<2x5xi32>
    %980 = arith.cmpi eq, %580, %979 : vector<2x5xi32>
    %c0_i32_301 = arith.constant 0 : i32
    %981 = vector.broadcast %c0_i32_301 : i32 to vector<2x5xi32>
    %982 = arith.select %980, %978, %981 : vector<2x5xi1>, vector<2x5xi32>
    %cst_302 = arith.constant dense<0> : vector<2xi32>
    %983 = vector.multi_reduction <add>, %982, %cst_302 [1] : vector<2x5xi32> to vector<2xi32>
    %984 = vector.shape_cast %983 : vector<2xi32> to vector<2x1xi32>
    %c1_i32_303 = arith.constant 1 : i32
    %985 = arith.subi %975, %c1_i32_303 : i32
    %986 = arith.index_cast %985 : i32 to index
    %c0_304 = arith.constant 0 : index
    %c0_305 = arith.constant 0 : index
    %987 = vector.load %arg10[%986, %c0_304, %c0_305] : memref<8x2x1xi32, #tpu.memory_space<vmem>>, vector<1x2x1xi32>
    %988 = vector.shape_cast %987 : vector<1x2x1xi32> to vector<2x1xi32>
    %989 = vector.shape_cast %984 : vector<2x1xi32> to vector<1x2x1xi32>
    tpu.vector_store %arg10[%986, %c0_304, %c0_305], %989 {strides = array<i32>} : memref<8x2x1xi32, #tpu.memory_space<vmem>>, vector<1x2x1xi32>,
    %c7_i32_306 = arith.constant 7 : i32
    %c8_i32_307 = arith.constant 8 : i32
    %990 = arith.subi %c8_i32_307, %c7_i32_306 : i32
    %991 = arith.index_cast %990 : i32 to index
    %c0_308 = arith.constant 0 : index
    %c0_309 = arith.constant 0 : index
    %992 = vector.load %arg13[%991, %c0_308, %c0_309] : memref<8x2x5xi32, #tpu.memory_space<vmem>>, vector<1x2x5xi32>
    %993 = vector.shape_cast %992 : vector<1x2x5xi32> to vector<2x5xi32>
    %994 = vector.broadcast %984 : vector<2x1xi32> to vector<2x5xi32>
    %995 = arith.cmpi eq, %580, %994 : vector<2x5xi32>
    %c0_i32_310 = arith.constant 0 : i32
    %996 = vector.broadcast %c0_i32_310 : i32 to vector<2x5xi32>
    %997 = arith.select %995, %993, %996 : vector<2x5xi1>, vector<2x5xi32>
    %cst_311 = arith.constant dense<0> : vector<2xi32>
    %998 = vector.multi_reduction <add>, %997, %cst_311 [1] : vector<2x5xi32> to vector<2xi32>
    %999 = vector.shape_cast %998 : vector<2xi32> to vector<2x1xi32>
    %c1_i32_312 = arith.constant 1 : i32
    %1000 = arith.subi %990, %c1_i32_312 : i32
    %1001 = arith.index_cast %1000 : i32 to index
    %c0_313 = arith.constant 0 : index
    %c0_314 = arith.constant 0 : index
    %1002 = vector.load %arg10[%1001, %c0_313, %c0_314] : memref<8x2x1xi32, #tpu.memory_space<vmem>>, vector<1x2x1xi32>
    %1003 = vector.shape_cast %1002 : vector<1x2x1xi32> to vector<2x1xi32>
    %1004 = vector.shape_cast %999 : vector<2x1xi32> to vector<1x2x1xi32>
    tpu.vector_store %arg10[%1001, %c0_313, %c0_314], %1004 {strides = array<i32>} : memref<8x2x1xi32, #tpu.memory_space<vmem>>, vector<1x2x1xi32>,
    %c7_i32_315 = arith.constant 7 : i32
    return
  }
}

</mosaic_0001>

<llo_original>
// kernel: tpu_custom_call.1
$region0: #{tpu_custom_call.1}
  #allocation0 [shape = 'u32[]', space=smem, size = 0x4, offset = 0x4, fixed_abs, tag = 'smem constant byte address 0x4 - core index']
  #allocation1 [shape = 'u32[144,128]{1,0:T(1,128)}', space=vmem, size = 0x12000, scoped, tag = 'internal scratch']
  #allocation2 [shape = 'f32[32,128]{1,0:T(8,128)}', space=vmem, size = 0x4000, scoped, tag = 'scratch operand']
  #allocation3 [shape = 'f32[16,32]{1,0:T(8,128)}', space=vmem, size = 0x2000, scoped, tag = 'scratch operand']
  #allocation4 [shape = 's32[8,2,5]{2,1,0:T(2,128)}', space=vmem, size = 0x2000, scoped, tag = 'scratch operand']
  #allocation5 [shape = 'f32[8,4,1]{2,1,0:T(4,128)}', space=vmem, size = 0x4000, scoped, tag = 'scratch operand']
  #allocation6 [shape = 'f32[8,2,1]{2,1,0:T(2,128)}', space=vmem, size = 0x2000, scoped, tag = 'scratch operand']
  %s0 = inlined_call_operand.vmem [shape: bf16[32,8], index: 0, kind: input, shape index: {}]
  %s1 = inlined_call_operand.vmem [shape: s32[4,1], index: 1, kind: input, shape index: {}]
  %s2 = inlined_call_operand.hbm [shape: bf16[8,128], index: 2, kind: input, shape index: {}]
  %s3 = inlined_call_operand.vmem [shape: bf16[16,128], index: 3, kind: input, shape index: {}]
  %s4 = inlined_call_operand.vmem [shape: f32[1,128], index: 4, kind: input, shape index: {}]
  %s5 = inlined_call_operand.vmem [shape: bf16[32,128], index: 5, kind: input, shape index: {}]
  %s6 = inlined_call_operand.vmem [shape: f32[1,128], index: 6, kind: input, shape index: {}]
  %s7 = inlined_call_operand.vmem [shape: f32[5,5], index: 7, kind: input, shape index: {}]
  %s8 = inlined_call_operand.hbm [shape: f32[16,128], index: 8, kind: output, shape index: {0}]
  %s9 = inlined_call_operand.vmem [shape: f32[2,1], index: 9, kind: output, shape index: {1}]
  %s10 = inlined_call_operand.vmem [shape: s32[8,2,1], index: 10, kind: output, shape index: {2}]
  %11 = xla_tuple %s8, %s9, %s10
  %s12 = sld [smem:[#allocation0]]
  $region62: #{tpu_custom_call.1} parent=0
    _
  %s14 = ssub.s32 1, %s12
  %s15 = scalar_select 0, %s14, %s12
  $region1: #{tpu_custom_call.1} parent=0
    #allocation7 [shape = 'u8[2048]{0}', space=vmem, size = 0x800, scoped, tag = 'input window, operand 2, single buffered']
    #allocation8 [shape = 's32[1]{0}', space=sflag, size = 0x4, scoped, tag = 'scoped memory for tpu_custom_call.1']
    #allocation9 [shape = 's32[1]{0}', space=sflag, size = 0x4, scoped, tag = 'scoped memory for tpu_custom_call.1']
    #allocation10 [shape = 'u8[8192]{0}', space=vmem, size = 0x2000, scoped, tag = 'output window, operand 0, single buffered']
    %16 = vsyncpa [#allocation8], 0
    %17 = vsyncpa [#allocation9], 0
    // Predicated region
    $region2: #{tpu_custom_call.1} parent=1 // pred_check
      _
    $region3: #{tpu_custom_call.1} parent=1 // pred_check_branch
      %19 = sbr.rel (0) target = $region5
    $region4: #{tpu_custom_call.1} parent=1 // pred_region
      _
    $region5: #{tpu_custom_call.1} parent=1 // pred_fallthru
      _
    // Predicated region
    $region6: #{tpu_custom_call.1} parent=1 // pred_check
      _
    $region7: #{tpu_custom_call.1} parent=1 // pred_check_branch
      %21 = sbr.rel (0) target = $region9
    $region8: #{tpu_custom_call.1} parent=1 // pred_region
      _
    $region9: #{tpu_custom_call.1} parent=1 // pred_fallthru
      _
    // Predicated region
    $region10: #{tpu_custom_call.1} parent=1 // pred_check
      _
    $region11: #{tpu_custom_call.1} parent=1 // pred_check_branch
      %23 = sbr.rel (0) target = $region13
    $region12: #{tpu_custom_call.1} parent=1 // pred_region
      %s25 = ssub.s32 64, 64
      %26 = vsyncadd [#allocation8], %s25
      %s28 = sshll.u32 [#allocation7], 4
      %s29 = int_to_ptr.vmem [resolvable:$true] %s28
      %31 = dma.hbm_to_vmem [thread:$0]  %s2, 64, %s29, [#allocation8]
    $region13: #{tpu_custom_call.1} parent=1 // pred_fallthru
      _
    // Predicated region
    $region14: #{tpu_custom_call.1} parent=1 // pred_check
      _
    $region15: #{tpu_custom_call.1} parent=1 // pred_check_branch
      %33 = sbr.rel (0) target = $region17
    $region16: #{tpu_custom_call.1} parent=1 // pred_region
      _
    $region17: #{tpu_custom_call.1} parent=1 // pred_fallthru
      _
    // Predicated region
    $region18: #{tpu_custom_call.1} parent=1 // pred_check
      _
    $region19: #{tpu_custom_call.1} parent=1 // pred_check_branch
      %35 = sbr.rel (0) target = $region21
    $region20: #{tpu_custom_call.1} parent=1 // pred_region
      _
    $region21: #{tpu_custom_call.1} parent=1 // pred_fallthru
      _
    // Predicated region
    $region22: #{tpu_custom_call.1} parent=1 // pred_check
      _
    $region23: #{tpu_custom_call.1} parent=1 // pred_check_branch
      %37 = sbr.rel (0) target = $region25
    $region24: #{tpu_custom_call.1} parent=1 // pred_region
      _
    $region25: #{tpu_custom_call.1} parent=1 // pred_fallthru
      _
    // Predicated region
    $region26: #{tpu_custom_call.1} parent=1 // pred_check
      _
    $region27: #{tpu_custom_call.1} parent=1 // pred_check_branch
      %39 = sbr.rel (0) target = $region29
    $region28: #{tpu_custom_call.1} parent=1 // pred_region
      _
    $region29: #{tpu_custom_call.1} parent=1 // pred_fallthru
      _
    // Predicated region
    $region30: #{tpu_custom_call.1} parent=1 // pred_check
      _
    $region31: #{tpu_custom_call.1} parent=1 // pred_check_branch
      %41 = sbr.rel (0) target = $region33
    $region32: #{tpu_custom_call.1} parent=1 // pred_region
      _
    $region33: #{tpu_custom_call.1} parent=1 // pred_fallthru
      _
    // Predicated region
    $region34: #{tpu_custom_call.1} parent=1 // pred_check
      _
    $region35: #{tpu_custom_call.1} parent=1 // pred_check_branch
      %43 = sbr.rel (0) target = $region37
    $region36: #{tpu_custom_call.1} parent=1 // pred_region
      %44 = dma.done [#allocation8], 64
    $region37: #{tpu_custom_call.1} parent=1 // pred_fallthru
      _
    %v46 = vld [vmem:[%s1] sm:$0xf]
    %v47 = vlaneseq
    %v48 = vshrl.u32 %v47, 7
    %vm49 = vcmp.lt.s32.totalorder %v48, 2
    %v50 = vsel %vm49, 0, 7
    %v51 = vsel %vm49, 1, 6
    %v52 = vsel %vm49, 2, 5
    %v53 = vsel %vm49, 3, 4
    %v54 = vsel %vm49, 4, 3
    %v55 = vsel %vm49, 5, 2
    %v56 = vsel %vm49, 6, 1
    %v57 = vsel %vm49, 7, 0
    %vm58 = vcmp.lt.s32.totalorder %v50, %v46
    %vm59 = vcmp.lt.s32.totalorder %v51, %v46
    %vm60 = vcmp.lt.s32.totalorder %v52, %v46
    %vm61 = vcmp.lt.s32.totalorder %v53, %v46
    %vm62 = vcmp.lt.s32.totalorder %v54, %v46
    %vm63 = vcmp.lt.s32.totalorder %v55, %v46
    %vm64 = vcmp.lt.s32.totalorder %v56, %v46
    %vm65 = vcmp.lt.s32.totalorder %v57, %v46
    %v66 = vsel %vm58, 1, 0
    %v67 = vsel %vm59, 1, 0
    %v68 = vsel %vm60, 1, 0
    %v69 = vsel %vm61, 1, 0
    %v70 = vsel %vm62, 1, 0
    %v71 = vsel %vm63, 1, 0
    %v72 = vsel %vm64, 1, 0
    %v73 = vsel %vm65, 1, 0
    %v74 = vcvt.s32.f32 %v66
    %v75 = vcvt.s32.f32 %v67
    %v76 = vcvt.s32.f32 %v68
    %v77 = vcvt.s32.f32 %v69
    %v78 = vcvt.s32.f32 %v70
    %v79 = vcvt.s32.f32 %v71
    %v80 = vcvt.s32.f32 %v72
    %v81 = vcvt.s32.f32 %v73
    %vm82 = vcmask 3072
    %83 = vst.msk [vmem:[#allocation5] sm:$0xf] %vm82, %v74
    %84 = vst.msk [vmem:[#allocation5 + $0x4] sm:$0xf] %vm82, %v75
    %85 = vst.msk [vmem:[#allocation5 + $0x8] sm:$0xf] %vm82, %v76
    %86 = vst.msk [vmem:[#allocation5 + $0xc] sm:$0xf] %vm82, %v77
    %87 = vst.msk [vmem:[#allocation5 + $0x10] sm:$0xf] %vm82, %v78
    %88 = vst.msk [vmem:[#allocation5 + $0x14] sm:$0xf] %vm82, %v79
    %89 = vst.msk [vmem:[#allocation5 + $0x18] sm:$0xf] %vm82, %v80
    %90 = vst.msk [vmem:[#allocation5 + $0x1c] sm:$0xf] %vm82, %v81
    %vm91 = vcmp.eq.s32.totalorder %v46, 1
    %vm92 = vcmp.eq.s32.totalorder %v46, 2
    %vm93 = vcmp.eq.s32.totalorder %v46, 3
    %vm94 = vcmp.eq.s32.totalorder %v46, 4
    %vm95 = vcmp.eq.s32.totalorder %v46, 5
    %vm96 = vcmp.eq.s32.totalorder %v46, 6
    %vm97 = vcmp.eq.s32.totalorder %v46, 7
    %vm98 = vcmp.eq.s32.totalorder %v46, 8
    %v99 = vsel %vm91, 1, 0
    %v100 = vsel %vm92, 1, 0
    %v101 = vsel %vm93, 1, 0
    %v102 = vsel %vm94, 1, 0
    %v103 = vsel %vm95, 1, 0
    %v104 = vsel %vm96, 1, 0
    %v105 = vsel %vm97, 1, 0
    %v106 = vsel %vm98, 1, 0
    %v107 = vcvt.s32.f32 %v99
    %v108 = vcvt.s32.f32 %v100
    %v109 = vcvt.s32.f32 %v101
    %v110 = vcvt.s32.f32 %v102
    %v111 = vcvt.s32.f32 %v103
    %v112 = vcvt.s32.f32 %v104
    %v113 = vcvt.s32.f32 %v105
    %v114 = vcvt.s32.f32 %v106
    %vm115 = vcmask 1024
    %116 = vst.msk [vmem:[#allocation6] sm:$0x3] %vm115, %v107
    %117 = vst.msk [vmem:[#allocation6 + $0x2] sm:$0x3] %vm115, %v108
    %118 = vst.msk [vmem:[#allocation6 + $0x4] sm:$0x3] %vm115, %v109
    %119 = vst.msk [vmem:[#allocation6 + $0x6] sm:$0x3] %vm115, %v110
    %120 = vst.msk [vmem:[#allocation6 + $0x8] sm:$0x3] %vm115, %v111
    %121 = vst.msk [vmem:[#allocation6 + $0xa] sm:$0x3] %vm115, %v112
    %122 = vst.msk [vmem:[#allocation6 + $0xc] sm:$0x3] %vm115, %v113
    %123 = vst.msk [vmem:[#allocation6 + $0xe] sm:$0x3] %vm115, %v114
    %v124 = vld [vmem:[%s0] sm:$0xf]
    %v125 = vld [vmem:[%s0 + $0x4] sm:$0xf]
    %v126 = vld [vmem:[%s0 + $0x8] sm:$0xf]
    %v127 = vld [vmem:[%s0 + $0xc] sm:$0xf]
    %v128 = vld [vmem:[#allocation7] sm:$0xf]
    %v129 = vld [vmem:[%s4] sm:$0x1]
    %v131 = vlaneseq
    %v132 = vshrl.u32 %v131, 7
    %v133 = vsub.s32 0, %v132
    %v134 = vrot.slane %v129, %v133
    %v140 = vunpack.c.l.b16 %v124
    %v141 = vunpack.c.l.b16 %v125
    %v142 = vunpack.c.l.b16 %v126
    %v143 = vunpack.c.l.b16 %v127
    %v144 = vpack.c.b16 %v141, %v140
    %v145 = vpack.c.b16 %v143, %v142
    %vm146 = vcmask 64512
    %v148 = vsel %vm146, %v144, 0
    %v151 = vsel %vm146, %v145, 0
    %vm153 = vcmask 1043456
    %v155 = vsel %vm153, %v128, 0
    %157 = vmatprep.subr.bf16.mxu0 0
    %158 = vmatpush1.bf16.msra.mxu0 %v155
    %159 = vmatprep.subr.bf16.mxu0 0
    %160 = vmatpush1.bf16.msra.mxu0 0
    %161 = vmatprep.subr.bf16.mxu0 0
    %162 = vmatpush1.bf16.msra.mxu0 0
    %163 = vmatprep.subr.bf16.mxu0 0
    %164 = vmatpush1.bf16.msra.mxu0 0
    %165 = vmatprep.subr.bf16.mxu0 0
    %166 = vmatpush1.bf16.msra.mxu0 0
    %167 = vmatprep.subr.bf16.mxu0 0
    %168 = vmatpush1.bf16.msra.mxu0 0
    %169 = vmatprep.subr.bf16.mxu0 0
    %170 = vmatpush1.bf16.msra.mxu0 0
    %171 = vmatprep.subr.bf16.mxu0 0
    %172 = vmatpush1.bf16.msra.mxu0 0
    %173 = vmatprep.subr.bf16.mxu0 0
    %174 = vmatpush1.bf16.msra.mxu0 0
    %175 = vmatprep.subr.bf16.mxu0 0
    %176 = vmatpush1.bf16.msra.mxu0 0
    %177 = vmatprep.subr.bf16.mxu0 0
    %178 = vmatpush1.bf16.msra.mxu0 0
    %179 = vmatprep.subr.bf16.mxu0 0
    %180 = vmatpush1.bf16.msra.mxu0 0
    %181 = vmatprep.subr.bf16.mxu0 0
    %182 = vmatpush1.bf16.msra.mxu0 0
    %183 = vmatprep.subr.bf16.mxu0 0
    %184 = vmatpush1.bf16.msra.mxu0 0
    %185 = vmatprep.subr.bf16.mxu0 0
    %186 = vmatpush1.bf16.msra.mxu0 0
    %187 = vmatprep.subr.bf16.mxu0 0
    %188 = vmatpush1.bf16.msra.mxu0 0
    %189 = vmatprep.mubr.bf16.mxu0 0
    %190 = vmatmul.mubr.bf16.gmra.mrb[0].mxu0 %v148
    %v191 = vpop.f32.mrb[0].mxu0
    %v192 = vadd.f32 %v134, %v191
    %v193 = vpop.f32.mrb[0].mxu0
    %v194 = vpop.f32.mrb[0].mxu0
    %v195 = vadd.f32 %v134, %v194
    %v196 = vpop.f32.mrb[0].mxu0
    %197 = vmatprep.mubr.bf16.mxu0 0
    %198 = vmatmul.mubr.bf16.gmra.mrb[0].mxu0 %v151
    %v199 = vpop.f32.mrb[0].mxu0
    %v200 = vadd.f32 %v134, %v199
    %v201 = vpop.f32.mrb[0].mxu0
    %v202 = vpop.f32.mrb[0].mxu0
    %v203 = vadd.f32 %v134, %v202
    %v204 = vpop.f32.mrb[0].mxu0
    %205 = vdwg.mxu0
    %206 = vst [vmem:[#allocation2] sm:$0xff] %v192
    %207 = vst [vmem:[#allocation2 + $0x8] sm:$0xff] %v195
    %208 = vst [vmem:[#allocation2 + $0x10] sm:$0xff] %v200
    %209 = vst [vmem:[#allocation2 + $0x18] sm:$0xff] %v203
    %v210 = vld [vmem:[%s3] sm:$0xf]
    %v211 = vld [vmem:[%s3 + $0x4] sm:$0xf]
    %v212 = vld [vmem:[#allocation2] sm:$0xf]
    %v215 = vunpack.c.l.b16 %v210
    %v216 = vunpack.c.l.b16 %v211
    %v217 = vpack.c.b16 %v216, %v215
    %vm219 = vcmask 130048
    %v221 = vsel %vm219, 0, 0
    %223 = vmatprep.subr.bf16.mxu0 0
    %224 = vmatpush1.bf16.msra.mxu0 %v217
    %225 = vmatprep.subr.bf16.mxu0 0
    %226 = vmatpush1.bf16.msra.mxu0 0
    %227 = vmatprep.subr.bf16.mxu0 0
    %228 = vmatpush1.bf16.msra.mxu0 0
    %229 = vmatprep.subr.bf16.mxu0 0
    %230 = vmatpush1.bf16.msra.mxu0 0
    %231 = vmatprep.subr.bf16.mxu0 0
    %232 = vmatpush1.bf16.msra.mxu0 0
    %233 = vmatprep.subr.bf16.mxu0 0
    %234 = vmatpush1.bf16.msra.mxu0 0
    %235 = vmatprep.subr.bf16.mxu0 0
    %236 = vmatpush1.bf16.msra.mxu0 0
    %237 = vmatprep.subr.bf16.mxu0 0
    %238 = vmatpush1.bf16.msra.mxu0 0
    %239 = vmatprep.subr.bf16.mxu0 0
    %240 = vmatpush1.bf16.msra.mxu0 0
    %241 = vmatprep.subr.bf16.mxu0 0
    %242 = vmatpush1.bf16.msra.mxu0 0
    %243 = vmatprep.subr.bf16.mxu0 0
    %244 = vmatpush1.bf16.msra.mxu0 0
    %245 = vmatprep.subr.bf16.mxu0 0
    %246 = vmatpush1.bf16.msra.mxu0 0
    %247 = vmatprep.subr.bf16.mxu0 0
    %248 = vmatpush1.bf16.msra.mxu0 0
    %249 = vmatprep.subr.bf16.mxu0 0
    %250 = vmatpush1.bf16.msra.mxu0 0
    %251 = vmatprep.subr.bf16.mxu0 0
    %252 = vmatpush1.bf16.msra.mxu0 0
    %253 = vmatprep.subr.bf16.mxu0 0
    %254 = vmatpush1.bf16.msra.mxu0 0
    %255 = vmatprep.mubr.bf16.mxu0 0
    %256 = vmatmul.mubr.bf16.gmra.mrb[0].mxu0 %v221
    %v257 = vpop.f32.mrb[0].mxu0
    %v258 = vadd.f32 0.0, %v257
    %v259 = vpop.f32.mrb[0].mxu0
    %v260 = vpop.f32.mrb[0].mxu0
    %v261 = vpop.f32.mrb[0].mxu0
    %262 = vdwg.mxu0
    %v263 = vadd.f32 %v212, %v258
    %v264 = vxor.u32 %v263, 2147483648
    %v265 = vmul.f32 %v264, 1.442695
    %v266 = vpow.pop %v265
    %v267 = vadd.f32 %v266, 1.0
    %v268 = vrcp.pop %v267
    %v269 = vmul.f32 1.0, %v268
    %v270 = vtanh.pop %v263
    %v271 = vsel %vm49, 1, 0
    %vm272 = vcmp.eq.s32.totalorder %v271, 1
    %274 = vrot.lane.b32.xlu0 %v269, 80
    %v275 = vpop.permute.xlu0 %274
    %v277 = vsel %vm272, %v269, %v275
    %279 = vrot.lane.b32.xlu0 %v270, 112
    %v280 = vpop.permute.xlu0 %279
    %v282 = vsel %vm272, %v270, %v280
    %v283 = vmul.f32 %v277, 0.0
    %285 = vrot.lane.b32.xlu0 %v282, 32
    %v286 = vpop.permute.xlu0 %285
    %v288 = vmul.f32 %v277, %v286
    %290 = vrot.lane.b32.xlu0 %v288, 16
    %v291 = vpop.permute.xlu0 %290
    %v293 = vadd.f32 %v283, %v291
    %v294 = vtanh.pop %v293
    %296 = vrot.lane.b32.xlu0 %v294, 16
    %v297 = vpop.permute.xlu0 %296
    %v299 = vmul.f32 %v277, %v297
    %v300 = vld [vmem:[#allocation5] sm:$0xf]
    %302 = vset.pattern.permute.xlu0 0
    %303 = vperm.xlu0 %302, %v300
    %v304 = vpop.permute.xlu0 %303
    %v306 = vmul.f32 %v304, %v299
    %v307 = vsub.f32 1.0, %v300
    %309 = vset.pattern.permute.xlu0 0
    %310 = vperm.xlu0 %309, %v307
    %v311 = vpop.permute.xlu0 %310
    %v313 = vmul.f32 %v311, 0.0
    %v314 = vadd.f32 %v306, %v313
    %v315 = vmul.f32 %v304, %v293
    %v316 = vadd.f32 %v315, %v313
    %v317 = vmul.f32 %v304, %v314
    %319 = vrot.lane.b32.xlu0 %v317, 96
    %v320 = vpop.permute.xlu0 %319
    %vm322 = vcmask 123904
    %323 = vst.msk [vmem:[#allocation3] sm:$0x3] %vm322, %v320
    %324 = vrot.lane.b32.xlu0 %v317, 112
    %v325 = vpop.permute.xlu0 %324
    %vm327 = vcmask 257154
    %328 = vst.msk [vmem:[#allocation3 + $0xc] sm:$0xc] %vm327, %v325
    %v329 = vld [vmem:[#allocation2 + $0x4] sm:$0xf]
    %v330 = vpack.c.bf16 %v314, %v314
    %332 = vrot.lane.b32.xlu0 %v330, 96
    %v333 = vpop.permute.xlu0 %332
    %v335 = vsel %vm219, %v333, 0
    %337 = vmatprep.subr.bf16.mxu0 0
    %338 = vmatpush1.bf16.msra.mxu0 %v217
    %339 = vmatprep.subr.bf16.mxu0 0
    %340 = vmatpush1.bf16.msra.mxu0 0
    %341 = vmatprep.subr.bf16.mxu0 0
    %342 = vmatpush1.bf16.msra.mxu0 0
    %343 = vmatprep.subr.bf16.mxu0 0
    %344 = vmatpush1.bf16.msra.mxu0 0
    %345 = vmatprep.subr.bf16.mxu0 0
    %346 = vmatpush1.bf16.msra.mxu0 0
    %347 = vmatprep.subr.bf16.mxu0 0
    %348 = vmatpush1.bf16.msra.mxu0 0
    %349 = vmatprep.subr.bf16.mxu0 0
    %350 = vmatpush1.bf16.msra.mxu0 0
    %351 = vmatprep.subr.bf16.mxu0 0
    %352 = vmatpush1.bf16.msra.mxu0 0
    %353 = vmatprep.subr.bf16.mxu0 0
    %354 = vmatpush1.bf16.msra.mxu0 0
    %355 = vmatprep.subr.bf16.mxu0 0
    %356 = vmatpush1.bf16.msra.mxu0 0
    %357 = vmatprep.subr.bf16.mxu0 0
    %358 = vmatpush1.bf16.msra.mxu0 0
    %359 = vmatprep.subr.bf16.mxu0 0
    %360 = vmatpush1.bf16.msra.mxu0 0
    %361 = vmatprep.subr.bf16.mxu0 0
    %362 = vmatpush1.bf16.msra.mxu0 0
    %363 = vmatprep.subr.bf16.mxu0 0
    %364 = vmatpush1.bf16.msra.mxu0 0
    %365 = vmatprep.subr.bf16.mxu0 0
    %366 = vmatpush1.bf16.msra.mxu0 0
    %367 = vmatprep.subr.bf16.mxu0 0
    %368 = vmatpush1.bf16.msra.mxu0 0
    %369 = vmatprep.mubr.bf16.mxu0 0
    %370 = vmatmul.mubr.bf16.gmra.mrb[0].mxu0 %v335
    %v371 = vpop.f32.mrb[0].mxu0
    %v372 = vadd.f32 0.0, %v371
    %v373 = vpop.f32.mrb[0].mxu0
    %v374 = vpop.f32.mrb[0].mxu0
    %v375 = vpop.f32.mrb[0].mxu0
    %376 = vdwg.mxu0
    %v377 = vadd.f32 %v329, %v372
    %v378 = vxor.u32 %v377, 2147483648
    %v379 = vmul.f32 %v378, 1.442695
    %v380 = vpow.pop %v379
    %v381 = vadd.f32 %v380, 1.0
    %v382 = vrcp.pop %v381
    %v383 = vmul.f32 1.0, %v382
    %v384 = vtanh.pop %v377
    %386 = vrot.lane.b32.xlu0 %v383, 80
    %v387 = vpop.permute.xlu0 %386
    %v389 = vsel %vm272, %v383, %v387
    %391 = vrot.lane.b32.xlu0 %v384, 112
    %v392 = vpop.permute.xlu0 %391
    %v394 = vsel %vm272, %v384, %v392
    %v395 = vmul.f32 %v389, %v316
    %397 = vrot.lane.b32.xlu0 %v394, 32
    %v398 = vpop.permute.xlu0 %397
    %v400 = vmul.f32 %v389, %v398
    %402 = vrot.lane.b32.xlu0 %v400, 16
    %v403 = vpop.permute.xlu0 %402
    %v405 = vadd.f32 %v395, %v403
    %v406 = vtanh.pop %v405
    %408 = vrot.lane.b32.xlu0 %v406, 16
    %v409 = vpop.permute.xlu0 %408
    %v411 = vmul.f32 %v389, %v409
    %s412 = scalar_lea.vmem [#allocation5], 4
    %v413 = vld [vmem:[%s412] sm:$0xf]
    %415 = vset.pattern.permute.xlu0 0
    %416 = vperm.xlu0 %415, %v413
    %v417 = vpop.permute.xlu0 %416
    %v419 = vmul.f32 %v417, %v411
    %v420 = vsub.f32 1.0, %v413
    %422 = vset.pattern.permute.xlu0 0
    %423 = vperm.xlu0 %422, %v420
    %v424 = vpop.permute.xlu0 %423
    %v426 = vmul.f32 %v424, %v314
    %v427 = vadd.f32 %v419, %v426
    %v428 = vmul.f32 %v417, %v405
    %v429 = vmul.f32 %v424, %v316
    %v430 = vadd.f32 %v428, %v429
    %v431 = vmul.f32 %v417, %v427
    %433 = vrot.lane.b32.xlu0 %v431, 96
    %v434 = vpop.permute.xlu0 %433
    %436 = vst.msk [vmem:[#allocation3 + $0x2] sm:$0x3] %vm322, %v434
    %437 = vrot.lane.b32.xlu0 %v431, 112
    %v438 = vpop.permute.xlu0 %437
    %440 = vst.msk [vmem:[#allocation3 + $0xa] sm:$0xc] %vm327, %v438
    %v441 = vld [vmem:[#allocation2 + $0x8] sm:$0xf]
    %v442 = vpack.c.bf16 %v427, %v427
    %444 = vrot.lane.b32.xlu0 %v442, 96
    %v445 = vpop.permute.xlu0 %444
    %v447 = vsel %vm219, %v445, 0
    %449 = vmatprep.subr.bf16.mxu0 0
    %450 = vmatpush1.bf16.msra.mxu0 %v217
    %451 = vmatprep.subr.bf16.mxu0 0
    %452 = vmatpush1.bf16.msra.mxu0 0
    %453 = vmatprep.subr.bf16.mxu0 0
    %454 = vmatpush1.bf16.msra.mxu0 0
    %455 = vmatprep.subr.bf16.mxu0 0
    %456 = vmatpush1.bf16.msra.mxu0 0
    %457 = vmatprep.subr.bf16.mxu0 0
    %458 = vmatpush1.bf16.msra.mxu0 0
    %459 = vmatprep.subr.bf16.mxu0 0
    %460 = vmatpush1.bf16.msra.mxu0 0
    %461 = vmatprep.subr.bf16.mxu0 0
    %462 = vmatpush1.bf16.msra.mxu0 0
    %463 = vmatprep.subr.bf16.mxu0 0
    %464 = vmatpush1.bf16.msra.mxu0 0
    %465 = vmatprep.subr.bf16.mxu0 0
    %466 = vmatpush1.bf16.msra.mxu0 0
    %467 = vmatprep.subr.bf16.mxu0 0
    %468 = vmatpush1.bf16.msra.mxu0 0
    %469 = vmatprep.subr.bf16.mxu0 0
    %470 = vmatpush1.bf16.msra.mxu0 0
    %471 = vmatprep.subr.bf16.mxu0 0
    %472 = vmatpush1.bf16.msra.mxu0 0
    %473 = vmatprep.subr.bf16.mxu0 0
    %474 = vmatpush1.bf16.msra.mxu0 0
    %475 = vmatprep.subr.bf16.mxu0 0
    %476 = vmatpush1.bf16.msra.mxu0 0
    %477 = vmatprep.subr.bf16.mxu0 0
    %478 = vmatpush1.bf16.msra.mxu0 0
    %479 = vmatprep.subr.bf16.mxu0 0
    %480 = vmatpush1.bf16.msra.mxu0 0
    %481 = vmatprep.mubr.bf16.mxu0 0
    %482 = vmatmul.mubr.bf16.gmra.mrb[0].mxu0 %v447
    %v483 = vpop.f32.mrb[0].mxu0
    %v484 = vadd.f32 0.0, %v483
    %v485 = vpop.f32.mrb[0].mxu0
    %v486 = vpop.f32.mrb[0].mxu0
    %v487 = vpop.f32.mrb[0].mxu0
    %488 = vdwg.mxu0
    %v489 = vadd.f32 %v441, %v484
    %v490 = vxor.u32 %v489, 2147483648
    %v491 = vmul.f32 %v490, 1.442695
    %v492 = vpow.pop %v491
    %v493 = vadd.f32 %v492, 1.0
    %v494 = vrcp.pop %v493
    %v495 = vmul.f32 1.0, %v494
    %v496 = vtanh.pop %v489
    %498 = vrot.lane.b32.xlu0 %v495, 80
    %v499 = vpop.permute.xlu0 %498
    %v501 = vsel %vm272, %v495, %v499
    %503 = vrot.lane.b32.xlu0 %v496, 112
    %v504 = vpop.permute.xlu0 %503
    %v506 = vsel %vm272, %v496, %v504
    %v507 = vmul.f32 %v501, %v430
    %509 = vrot.lane.b32.xlu0 %v506, 32
    %v510 = vpop.permute.xlu0 %509
    %v512 = vmul.f32 %v501, %v510
    %514 = vrot.lane.b32.xlu0 %v512, 16
    %v515 = vpop.permute.xlu0 %514
    %v517 = vadd.f32 %v507, %v515
    %v518 = vtanh.pop %v517
    %520 = vrot.lane.b32.xlu0 %v518, 16
    %v521 = vpop.permute.xlu0 %520
    %v523 = vmul.f32 %v501, %v521
    %s524 = scalar_lea.vmem [#allocation5], 8
    %v525 = vld [vmem:[%s524] sm:$0xf]
    %527 = vset.pattern.permute.xlu0 0
    %528 = vperm.xlu0 %527, %v525
    %v529 = vpop.permute.xlu0 %528
    %v531 = vmul.f32 %v529, %v523
    %v532 = vsub.f32 1.0, %v525
    %534 = vset.pattern.permute.xlu0 0
    %535 = vperm.xlu0 %534, %v532
    %v536 = vpop.permute.xlu0 %535
    %v538 = vmul.f32 %v536, %v427
    %v539 = vadd.f32 %v531, %v538
    %v540 = vmul.f32 %v529, %v517
    %v541 = vmul.f32 %v536, %v430
    %v542 = vadd.f32 %v540, %v541
    %v543 = vmul.f32 %v529, %v539
    %545 = vrot.lane.b32.xlu0 %v543, 96
    %v546 = vpop.permute.xlu0 %545
    %548 = vst.msk [vmem:[#allocation3 + $0x4] sm:$0x3] %vm322, %v546
    %549 = vrot.lane.b32.xlu0 %v543, 112
    %v550 = vpop.permute.xlu0 %549
    %552 = vst.msk [vmem:[#allocation3 + $0x8] sm:$0xc] %vm327, %v550
    %v553 = vld [vmem:[#allocation2 + $0xc] sm:$0xf]
    %v554 = vpack.c.bf16 %v539, %v539
    %556 = vrot.lane.b32.xlu0 %v554, 96
    %v557 = vpop.permute.xlu0 %556
    %v559 = vsel %vm219, %v557, 0
    %561 = vmatprep.subr.bf16.mxu0 0
    %562 = vmatpush1.bf16.msra.mxu0 %v217
    %563 = vmatprep.subr.bf16.mxu0 0
    %564 = vmatpush1.bf16.msra.mxu0 0
    %565 = vmatprep.subr.bf16.mxu0 0
    %566 = vmatpush1.bf16.msra.mxu0 0
    %567 = vmatprep.subr.bf16.mxu0 0
    %568 = vmatpush1.bf16.msra.mxu0 0
    %569 = vmatprep.subr.bf16.mxu0 0
    %570 = vmatpush1.bf16.msra.mxu0 0
    %571 = vmatprep.subr.bf16.mxu0 0
    %572 = vmatpush1.bf16.msra.mxu0 0
    %573 = vmatprep.subr.bf16.mxu0 0
    %574 = vmatpush1.bf16.msra.mxu0 0
    %575 = vmatprep.subr.bf16.mxu0 0
    %576 = vmatpush1.bf16.msra.mxu0 0
    %577 = vmatprep.subr.bf16.mxu0 0
    %578 = vmatpush1.bf16.msra.mxu0 0
    %579 = vmatprep.subr.bf16.mxu0 0
    %580 = vmatpush1.bf16.msra.mxu0 0
    %581 = vmatprep.subr.bf16.mxu0 0
    %582 = vmatpush1.bf16.msra.mxu0 0
    %583 = vmatprep.subr.bf16.mxu0 0
    %584 = vmatpush1.bf16.msra.mxu0 0
    %585 = vmatprep.subr.bf16.mxu0 0
    %586 = vmatpush1.bf16.msra.mxu0 0
    %587 = vmatprep.subr.bf16.mxu0 0
    %588 = vmatpush1.bf16.msra.mxu0 0
    %589 = vmatprep.subr.bf16.mxu0 0
    %590 = vmatpush1.bf16.msra.mxu0 0
    %591 = vmatprep.subr.bf16.mxu0 0
    %592 = vmatpush1.bf16.msra.mxu0 0
    %593 = vmatprep.mubr.bf16.mxu0 0
    %594 = vmatmul.mubr.bf16.gmra.mrb[0].mxu0 %v559
    %v595 = vpop.f32.mrb[0].mxu0
    %v596 = vadd.f32 0.0, %v595
    %v597 = vpop.f32.mrb[0].mxu0
    %v598 = vpop.f32.mrb[0].mxu0
    %v599 = vpop.f32.mrb[0].mxu0
    %600 = vdwg.mxu0
    %v601 = vadd.f32 %v553, %v596
    %v602 = vxor.u32 %v601, 2147483648
    %v603 = vmul.f32 %v602, 1.442695
    %v604 = vpow.pop %v603
    %v605 = vadd.f32 %v604, 1.0
    %v606 = vrcp.pop %v605
    %v607 = vmul.f32 1.0, %v606
    %v608 = vtanh.pop %v601
    %610 = vrot.lane.b32.xlu0 %v607, 80
    %v611 = vpop.permute.xlu0 %610
    %v613 = vsel %vm272, %v607, %v611
    %615 = vrot.lane.b32.xlu0 %v608, 112
    %v616 = vpop.permute.xlu0 %615
    %v618 = vsel %vm272, %v608, %v616
    %v619 = vmul.f32 %v613, %v542
    %621 = vrot.lane.b32.xlu0 %v618, 32
    %v622 = vpop.permute.xlu0 %621
    %v624 = vmul.f32 %v613, %v622
    %626 = vrot.lane.b32.xlu0 %v624, 16
    %v627 = vpop.permute.xlu0 %626
    %v629 = vadd.f32 %v619, %v627
    %v630 = vtanh.pop %v629
    %632 = vrot.lane.b32.xlu0 %v630, 16
    %v633 = vpop.permute.xlu0 %632
    %v635 = vmul.f32 %v613, %v633
    %s636 = scalar_lea.vmem [#allocation5], 12
    %v637 = vld [vmem:[%s636] sm:$0xf]
    %639 = vset.pattern.permute.xlu0 0
    %640 = vperm.xlu0 %639, %v637
    %v641 = vpop.permute.xlu0 %640
    %v643 = vmul.f32 %v641, %v635
    %v644 = vsub.f32 1.0, %v637
    %646 = vset.pattern.permute.xlu0 0
    %647 = vperm.xlu0 %646, %v644
    %v648 = vpop.permute.xlu0 %647
    %v650 = vmul.f32 %v648, %v539
    %v651 = vadd.f32 %v643, %v650
    %v652 = vmul.f32 %v641, %v629
    %v653 = vmul.f32 %v648, %v542
    %v654 = vadd.f32 %v652, %v653
    %v655 = vmul.f32 %v641, %v651
    %657 = vrot.lane.b32.xlu0 %v655, 96
    %v658 = vpop.permute.xlu0 %657
    %660 = vst.msk [vmem:[#allocation3 + $0x6] sm:$0x3] %vm322, %v658
    %661 = vrot.lane.b32.xlu0 %v655, 112
    %v662 = vpop.permute.xlu0 %661
    %664 = vst.msk [vmem:[#allocation3 + $0x6] sm:$0xc] %vm327, %v662
    %v665 = vld [vmem:[#allocation2 + $0x10] sm:$0xf]
    %v666 = vpack.c.bf16 %v651, %v651
    %668 = vrot.lane.b32.xlu0 %v666, 96
    %v669 = vpop.permute.xlu0 %668
    %v671 = vsel %vm219, %v669, 0
    %673 = vmatprep.subr.bf16.mxu0 0
    %674 = vmatpush1.bf16.msra.mxu0 %v217
    %675 = vmatprep.subr.bf16.mxu0 0
    %676 = vmatpush1.bf16.msra.mxu0 0
    %677 = vmatprep.subr.bf16.mxu0 0
    %678 = vmatpush1.bf16.msra.mxu0 0
    %679 = vmatprep.subr.bf16.mxu0 0
    %680 = vmatpush1.bf16.msra.mxu0 0
    %681 = vmatprep.subr.bf16.mxu0 0
    %682 = vmatpush1.bf16.msra.mxu0 0
    %683 = vmatprep.subr.bf16.mxu0 0
    %684 = vmatpush1.bf16.msra.mxu0 0
    %685 = vmatprep.subr.bf16.mxu0 0
    %686 = vmatpush1.bf16.msra.mxu0 0
    %687 = vmatprep.subr.bf16.mxu0 0
    %688 = vmatpush1.bf16.msra.mxu0 0
    %689 = vmatprep.subr.bf16.mxu0 0
    %690 = vmatpush1.bf16.msra.mxu0 0
    %691 = vmatprep.subr.bf16.mxu0 0
    %692 = vmatpush1.bf16.msra.mxu0 0
    %693 = vmatprep.subr.bf16.mxu0 0
    %694 = vmatpush1.bf16.msra.mxu0 0
    %695 = vmatprep.subr.bf16.mxu0 0
    %696 = vmatpush1.bf16.msra.mxu0 0
    %697 = vmatprep.subr.bf16.mxu0 0
    %698 = vmatpush1.bf16.msra.mxu0 0
    %699 = vmatprep.subr.bf16.mxu0 0
    %700 = vmatpush1.bf16.msra.mxu0 0
    %701 = vmatprep.subr.bf16.mxu0 0
    %702 = vmatpush1.bf16.msra.mxu0 0
    %703 = vmatprep.subr.bf16.mxu0 0
    %704 = vmatpush1.bf16.msra.mxu0 0
    %705 = vmatprep.mubr.bf16.mxu0 0
    %706 = vmatmul.mubr.bf16.gmra.mrb[0].mxu0 %v671
    %v707 = vpop.f32.mrb[0].mxu0
    %v708 = vadd.f32 0.0, %v707
    %v709 = vpop.f32.mrb[0].mxu0
    %v710 = vpop.f32.mrb[0].mxu0
    %v711 = vpop.f32.mrb[0].mxu0
    %712 = vdwg.mxu0
    %v713 = vadd.f32 %v665, %v708
    %v714 = vxor.u32 %v713, 2147483648
    %v715 = vmul.f32 %v714, 1.442695
    %v716 = vpow.pop %v715
    %v717 = vadd.f32 %v716, 1.0
    %v718 = vrcp.pop %v717
    %v719 = vmul.f32 1.0, %v718
    %v720 = vtanh.pop %v713
    %722 = vrot.lane.b32.xlu0 %v719, 80
    %v723 = vpop.permute.xlu0 %722
    %v725 = vsel %vm272, %v719, %v723
    %727 = vrot.lane.b32.xlu0 %v720, 112
    %v728 = vpop.permute.xlu0 %727
    %v730 = vsel %vm272, %v720, %v728
    %v731 = vmul.f32 %v725, %v654
    %733 = vrot.lane.b32.xlu0 %v730, 32
    %v734 = vpop.permute.xlu0 %733
    %v736 = vmul.f32 %v725, %v734
    %738 = vrot.lane.b32.xlu0 %v736, 16
    %v739 = vpop.permute.xlu0 %738
    %v741 = vadd.f32 %v731, %v739
    %v742 = vtanh.pop %v741
    %744 = vrot.lane.b32.xlu0 %v742, 16
    %v745 = vpop.permute.xlu0 %744
    %v747 = vmul.f32 %v725, %v745
    %s748 = scalar_lea.vmem [#allocation5], 16
    %v749 = vld [vmem:[%s748] sm:$0xf]
    %751 = vset.pattern.permute.xlu0 0
    %752 = vperm.xlu0 %751, %v749
    %v753 = vpop.permute.xlu0 %752
    %v755 = vmul.f32 %v753, %v747
    %v756 = vsub.f32 1.0, %v749
    %758 = vset.pattern.permute.xlu0 0
    %759 = vperm.xlu0 %758, %v756
    %v760 = vpop.permute.xlu0 %759
    %v762 = vmul.f32 %v760, %v651
    %v763 = vadd.f32 %v755, %v762
    %v764 = vmul.f32 %v753, %v741
    %v765 = vmul.f32 %v760, %v654
    %v766 = vadd.f32 %v764, %v765
    %v767 = vmul.f32 %v753, %v763
    %769 = vrot.lane.b32.xlu0 %v767, 96
    %v770 = vpop.permute.xlu0 %769
    %772 = vst.msk [vmem:[#allocation3 + $0x8] sm:$0x3] %vm322, %v770
    %773 = vrot.lane.b32.xlu0 %v767, 112
    %v774 = vpop.permute.xlu0 %773
    %776 = vst.msk [vmem:[#allocation3 + $0x4] sm:$0xc] %vm327, %v774
    %v777 = vld [vmem:[#allocation2 + $0x14] sm:$0xf]
    %v778 = vpack.c.bf16 %v763, %v763
    %780 = vrot.lane.b32.xlu0 %v778, 96
    %v781 = vpop.permute.xlu0 %780
    %v783 = vsel %vm219, %v781, 0
    %785 = vmatprep.subr.bf16.mxu0 0
    %786 = vmatpush1.bf16.msra.mxu0 %v217
    %787 = vmatprep.subr.bf16.mxu0 0
    %788 = vmatpush1.bf16.msra.mxu0 0
    %789 = vmatprep.subr.bf16.mxu0 0
    %790 = vmatpush1.bf16.msra.mxu0 0
    %791 = vmatprep.subr.bf16.mxu0 0
    %792 = vmatpush1.bf16.msra.mxu0 0
    %793 = vmatprep.subr.bf16.mxu0 0
    %794 = vmatpush1.bf16.msra.mxu0 0
    %795 = vmatprep.subr.bf16.mxu0 0
    %796 = vmatpush1.bf16.msra.mxu0 0
    %797 = vmatprep.subr.bf16.mxu0 0
    %798 = vmatpush1.bf16.msra.mxu0 0
    %799 = vmatprep.subr.bf16.mxu0 0
    %800 = vmatpush1.bf16.msra.mxu0 0
    %801 = vmatprep.subr.bf16.mxu0 0
    %802 = vmatpush1.bf16.msra.mxu0 0
    %803 = vmatprep.subr.bf16.mxu0 0
    %804 = vmatpush1.bf16.msra.mxu0 0
    %805 = vmatprep.subr.bf16.mxu0 0
    %806 = vmatpush1.bf16.msra.mxu0 0
    %807 = vmatprep.subr.bf16.mxu0 0
    %808 = vmatpush1.bf16.msra.mxu0 0
    %809 = vmatprep.subr.bf16.mxu0 0
    %810 = vmatpush1.bf16.msra.mxu0 0
    %811 = vmatprep.subr.bf16.mxu0 0
    %812 = vmatpush1.bf16.msra.mxu0 0
    %813 = vmatprep.subr.bf16.mxu0 0
    %814 = vmatpush1.bf16.msra.mxu0 0
    %815 = vmatprep.subr.bf16.mxu0 0
    %816 = vmatpush1.bf16.msra.mxu0 0
    %817 = vmatprep.mubr.bf16.mxu0 0
    %818 = vmatmul.mubr.bf16.gmra.mrb[0].mxu0 %v783
    %v819 = vpop.f32.mrb[0].mxu0
    %v820 = vadd.f32 0.0, %v819
    %v821 = vpop.f32.mrb[0].mxu0
    %v822 = vpop.f32.mrb[0].mxu0
    %v823 = vpop.f32.mrb[0].mxu0
    %824 = vdwg.mxu0
    %v825 = vadd.f32 %v777, %v820
    %v826 = vxor.u32 %v825, 2147483648
    %v827 = vmul.f32 %v826, 1.442695
    %v828 = vpow.pop %v827
    %v829 = vadd.f32 %v828, 1.0
    %v830 = vrcp.pop %v829
    %v831 = vmul.f32 1.0, %v830
    %v832 = vtanh.pop %v825
    %834 = vrot.lane.b32.xlu0 %v831, 80
    %v835 = vpop.permute.xlu0 %834
    %v837 = vsel %vm272, %v831, %v835
    %839 = vrot.lane.b32.xlu0 %v832, 112
    %v840 = vpop.permute.xlu0 %839
    %v842 = vsel %vm272, %v832, %v840
    %v843 = vmul.f32 %v837, %v766
    %845 = vrot.lane.b32.xlu0 %v842, 32
    %v846 = vpop.permute.xlu0 %845
    %v848 = vmul.f32 %v837, %v846
    %850 = vrot.lane.b32.xlu0 %v848, 16
    %v851 = vpop.permute.xlu0 %850
    %v853 = vadd.f32 %v843, %v851
    %v854 = vtanh.pop %v853
    %856 = vrot.lane.b32.xlu0 %v854, 16
    %v857 = vpop.permute.xlu0 %856
    %v859 = vmul.f32 %v837, %v857
    %s860 = scalar_lea.vmem [#allocation5], 20
    %v861 = vld [vmem:[%s860] sm:$0xf]
    %863 = vset.pattern.permute.xlu0 0
    %864 = vperm.xlu0 %863, %v861
    %v865 = vpop.permute.xlu0 %864
    %v867 = vmul.f32 %v865, %v859
    %v868 = vsub.f32 1.0, %v861
    %870 = vset.pattern.permute.xlu0 0
    %871 = vperm.xlu0 %870, %v868
    %v872 = vpop.permute.xlu0 %871
    %v874 = vmul.f32 %v872, %v763
    %v875 = vadd.f32 %v867, %v874
    %v876 = vmul.f32 %v865, %v853
    %v877 = vmul.f32 %v872, %v766
    %v878 = vadd.f32 %v876, %v877
    %v879 = vmul.f32 %v865, %v875
    %881 = vrot.lane.b32.xlu0 %v879, 96
    %v882 = vpop.permute.xlu0 %881
    %884 = vst.msk [vmem:[#allocation3 + $0xa] sm:$0x3] %vm322, %v882
    %885 = vrot.lane.b32.xlu0 %v879, 112
    %v886 = vpop.permute.xlu0 %885
    %888 = vst.msk [vmem:[#allocation3 + $0x2] sm:$0xc] %vm327, %v886
    %v889 = vld [vmem:[#allocation2 + $0x18] sm:$0xf]
    %v890 = vpack.c.bf16 %v875, %v875
    %892 = vrot.lane.b32.xlu0 %v890, 96
    %v893 = vpop.permute.xlu0 %892
    %v895 = vsel %vm219, %v893, 0
    %897 = vmatprep.subr.bf16.mxu0 0
    %898 = vmatpush1.bf16.msra.mxu0 %v217
    %899 = vmatprep.subr.bf16.mxu0 0
    %900 = vmatpush1.bf16.msra.mxu0 0
    %901 = vmatprep.subr.bf16.mxu0 0
    %902 = vmatpush1.bf16.msra.mxu0 0
    %903 = vmatprep.subr.bf16.mxu0 0
    %904 = vmatpush1.bf16.msra.mxu0 0
    %905 = vmatprep.subr.bf16.mxu0 0
    %906 = vmatpush1.bf16.msra.mxu0 0
    %907 = vmatprep.subr.bf16.mxu0 0
    %908 = vmatpush1.bf16.msra.mxu0 0
    %909 = vmatprep.subr.bf16.mxu0 0
    %910 = vmatpush1.bf16.msra.mxu0 0
    %911 = vmatprep.subr.bf16.mxu0 0
    %912 = vmatpush1.bf16.msra.mxu0 0
    %913 = vmatprep.subr.bf16.mxu0 0
    %914 = vmatpush1.bf16.msra.mxu0 0
    %915 = vmatprep.subr.bf16.mxu0 0
    %916 = vmatpush1.bf16.msra.mxu0 0
    %917 = vmatprep.subr.bf16.mxu0 0
    %918 = vmatpush1.bf16.msra.mxu0 0
    %919 = vmatprep.subr.bf16.mxu0 0
    %920 = vmatpush1.bf16.msra.mxu0 0
    %921 = vmatprep.subr.bf16.mxu0 0
    %922 = vmatpush1.bf16.msra.mxu0 0
    %923 = vmatprep.subr.bf16.mxu0 0
    %924 = vmatpush1.bf16.msra.mxu0 0
    %925 = vmatprep.subr.bf16.mxu0 0
    %926 = vmatpush1.bf16.msra.mxu0 0
    %927 = vmatprep.subr.bf16.mxu0 0
    %928 = vmatpush1.bf16.msra.mxu0 0
    %929 = vmatprep.mubr.bf16.mxu0 0
    %930 = vmatmul.mubr.bf16.gmra.mrb[0].mxu0 %v895
    %v931 = vpop.f32.mrb[0].mxu0
    %v932 = vadd.f32 0.0, %v931
    %v933 = vpop.f32.mrb[0].mxu0
    %v934 = vpop.f32.mrb[0].mxu0
    %v935 = vpop.f32.mrb[0].mxu0
    %936 = vdwg.mxu0
    %v937 = vadd.f32 %v889, %v932
    %v938 = vxor.u32 %v937, 2147483648
    %v939 = vmul.f32 %v938, 1.442695
    %v940 = vpow.pop %v939
    %v941 = vadd.f32 %v940, 1.0
    %v942 = vrcp.pop %v941
    %v943 = vmul.f32 1.0, %v942
    %v944 = vtanh.pop %v937
    %946 = vrot.lane.b32.xlu0 %v943, 80
    %v947 = vpop.permute.xlu0 %946
    %v949 = vsel %vm272, %v943, %v947
    %951 = vrot.lane.b32.xlu0 %v944, 112
    %v952 = vpop.permute.xlu0 %951
    %v954 = vsel %vm272, %v944, %v952
    %v955 = vmul.f32 %v949, %v878
    %957 = vrot.lane.b32.xlu0 %v954, 32
    %v958 = vpop.permute.xlu0 %957
    %v960 = vmul.f32 %v949, %v958
    %962 = vrot.lane.b32.xlu0 %v960, 16
    %v963 = vpop.permute.xlu0 %962
    %v965 = vadd.f32 %v955, %v963
    %v966 = vtanh.pop %v965
    %968 = vrot.lane.b32.xlu0 %v966, 16
    %v969 = vpop.permute.xlu0 %968
    %v971 = vmul.f32 %v949, %v969
    %s972 = scalar_lea.vmem [#allocation5], 24
    %v973 = vld [vmem:[%s972] sm:$0xf]
    %975 = vset.pattern.permute.xlu0 0
    %976 = vperm.xlu0 %975, %v973
    %v977 = vpop.permute.xlu0 %976
    %v979 = vmul.f32 %v977, %v971
    %v980 = vsub.f32 1.0, %v973
    %982 = vset.pattern.permute.xlu0 0
    %983 = vperm.xlu0 %982, %v980
    %v984 = vpop.permute.xlu0 %983
    %v986 = vmul.f32 %v984, %v875
    %v987 = vadd.f32 %v979, %v986
    %v988 = vmul.f32 %v977, %v965
    %v989 = vmul.f32 %v984, %v878
    %v990 = vadd.f32 %v988, %v989
    %v991 = vmul.f32 %v977, %v987
    %993 = vrot.lane.b32.xlu0 %v991, 96
    %v994 = vpop.permute.xlu0 %993
    %996 = vst.msk [vmem:[#allocation3 + $0xc] sm:$0x3] %vm322, %v994
    %997 = vrot.lane.b32.xlu0 %v991, 112
    %v998 = vpop.permute.xlu0 %997
    %1000 = vst.msk [vmem:[#allocation3] sm:$0xc] %vm327, %v998
    %v1001 = vld [vmem:[#allocation2 + $0x1c] sm:$0xf]
    %v1002 = vpack.c.bf16 %v987, %v987
    %1004 = vrot.lane.b32.xlu0 %v1002, 96
    %v1005 = vpop.permute.xlu0 %1004
    %v1007 = vsel %vm219, %v1005, 0
    %1009 = vmatprep.subr.bf16.mxu0 0
    %1010 = vmatpush1.bf16.msra.mxu0 %v217
    %1011 = vmatprep.subr.bf16.mxu0 0
    %1012 = vmatpush1.bf16.msra.mxu0 0
    %1013 = vmatprep.subr.bf16.mxu0 0
    %1014 = vmatpush1.bf16.msra.mxu0 0
    %1015 = vmatprep.subr.bf16.mxu0 0
    %1016 = vmatpush1.bf16.msra.mxu0 0
    %1017 = vmatprep.subr.bf16.mxu0 0
    %1018 = vmatpush1.bf16.msra.mxu0 0
    %1019 = vmatprep.subr.bf16.mxu0 0
    %1020 = vmatpush1.bf16.msra.mxu0 0
    %1021 = vmatprep.subr.bf16.mxu0 0
    %1022 = vmatpush1.bf16.msra.mxu0 0
    %1023 = vmatprep.subr.bf16.mxu0 0
    %1024 = vmatpush1.bf16.msra.mxu0 0
    %1025 = vmatprep.subr.bf16.mxu0 0
    %1026 = vmatpush1.bf16.msra.mxu0 0
    %1027 = vmatprep.subr.bf16.mxu0 0
    %1028 = vmatpush1.bf16.msra.mxu0 0
    %1029 = vmatprep.subr.bf16.mxu0 0
    %1030 = vmatpush1.bf16.msra.mxu0 0
    %1031 = vmatprep.subr.bf16.mxu0 0
    %1032 = vmatpush1.bf16.msra.mxu0 0
    %1033 = vmatprep.subr.bf16.mxu0 0
    %1034 = vmatpush1.bf16.msra.mxu0 0
    %1035 = vmatprep.subr.bf16.mxu0 0
    %1036 = vmatpush1.bf16.msra.mxu0 0
    %1037 = vmatprep.subr.bf16.mxu0 0
    %1038 = vmatpush1.bf16.msra.mxu0 0
    %1039 = vmatprep.subr.bf16.mxu0 0
    %1040 = vmatpush1.bf16.msra.mxu0 0
    %1041 = vmatprep.mubr.bf16.mxu0 0
    %1042 = vmatmul.mubr.bf16.gmra.mrb[0].mxu0 %v1007
    %v1043 = vpop.f32.mrb[0].mxu0
    %v1044 = vadd.f32 0.0, %v1043
    %v1045 = vpop.f32.mrb[0].mxu0
    %v1046 = vpop.f32.mrb[0].mxu0
    %v1047 = vpop.f32.mrb[0].mxu0
    %1048 = vdwg.mxu0
    %v1049 = vadd.f32 %v1001, %v1044
    %v1050 = vxor.u32 %v1049, 2147483648
    %v1051 = vmul.f32 %v1050, 1.442695
    %v1052 = vpow.pop %v1051
    %v1053 = vadd.f32 %v1052, 1.0
    %v1054 = vrcp.pop %v1053
    %v1055 = vmul.f32 1.0, %v1054
    %v1056 = vtanh.pop %v1049
    %1058 = vrot.lane.b32.xlu0 %v1055, 80
    %v1059 = vpop.permute.xlu0 %1058
    %v1061 = vsel %vm272, %v1055, %v1059
    %1063 = vrot.lane.b32.xlu0 %v1056, 112
    %v1064 = vpop.permute.xlu0 %1063
    %v1066 = vsel %vm272, %v1056, %v1064
    %v1067 = vmul.f32 %v1061, %v990
    %1069 = vrot.lane.b32.xlu0 %v1066, 32
    %v1070 = vpop.permute.xlu0 %1069
    %v1072 = vmul.f32 %v1061, %v1070
    %1074 = vrot.lane.b32.xlu0 %v1072, 16
    %v1075 = vpop.permute.xlu0 %1074
    %v1077 = vadd.f32 %v1067, %v1075
    %v1078 = vtanh.pop %v1077
    %1080 = vrot.lane.b32.xlu0 %v1078, 16
    %v1081 = vpop.permute.xlu0 %1080
    %v1083 = vmul.f32 %v1061, %v1081
    %s1084 = scalar_lea.vmem [#allocation5], 28
    %v1085 = vld [vmem:[%s1084] sm:$0xf]
    %1087 = vset.pattern.permute.xlu0 0
    %1088 = vperm.xlu0 %1087, %v1085
    %v1089 = vpop.permute.xlu0 %1088
    %v1091 = vmul.f32 %v1089, %v1083
    %v1092 = vsub.f32 1.0, %v1085
    %1094 = vset.pattern.permute.xlu0 0
    %1095 = vperm.xlu0 %1094, %v1092
    %v1096 = vpop.permute.xlu0 %1095
    %v1098 = vmul.f32 %v1096, %v987
    %v1099 = vadd.f32 %v1091, %v1098
    %v1100 = vmul.f32 %v1089, %v1099
    %1102 = vrot.lane.b32.xlu0 %v1100, 96
    %v1103 = vpop.permute.xlu0 %1102
    %1105 = vst.msk [vmem:[#allocation3 + $0xe] sm:$0x3] %vm322, %v1103
    %1106 = vrot.lane.b32.xlu0 %v1100, 112
    %v1107 = vpop.permute.xlu0 %1106
    %1109 = vst.msk [vmem:[#allocation3 - $0x2] sm:$0xc] %vm327, %v1107
    %v1110 = vld [vmem:[#allocation3] sm:$0xff]
    %v1111 = vld [vmem:[#allocation3 + $0x8] sm:$0xff]
    %v1112 = vpack.c.bf16 %v1111, %v1110
    %v1113 = vld [vmem:[%s5] sm:$0xf]
    %v1114 = vld [vmem:[%s5 + $0x4] sm:$0xf]
    %v1115 = vld [vmem:[%s5 + $0x8] sm:$0xf]
    %v1116 = vld [vmem:[%s5 + $0xc] sm:$0xf]
    %v1117 = vld [vmem:[%s6] sm:$0x1]
    %v1119 = vlaneseq
    %v1120 = vshrl.u32 %v1119, 7
    %v1121 = vsub.s32 0, %v1120
    %v1122 = vrot.slane %v1117, %v1121
    %v1128 = vunpack.c.l.b16 %v1113
    %v1129 = vunpack.c.l.b16 %v1114
    %v1130 = vunpack.c.l.b16 %v1115
    %v1131 = vunpack.c.l.b16 %v1116
    %v1132 = vpack.c.b16 %v1129, %v1128
    %v1133 = vpack.c.b16 %v1131, %v1130
    %vm1136 = vcmask 261120
    %v1138 = vsel %vm1136, %v1112, 0
    %1140 = vmatprep.subr.bf16.mxu0 0
    %1141 = vmatpush1.bf16.msra.mxu0 %v1132
    %1142 = vmatprep.subr.bf16.mxu0 0
    %1143 = vmatpush1.bf16.msra.mxu0 %v1133
    %1144 = vmatprep.subr.bf16.mxu0 0
    %1145 = vmatpush1.bf16.msra.mxu0 0
    %1146 = vmatprep.subr.bf16.mxu0 0
    %1147 = vmatpush1.bf16.msra.mxu0 0
    %1148 = vmatprep.subr.bf16.mxu0 0
    %1149 = vmatpush1.bf16.msra.mxu0 0
    %1150 = vmatprep.subr.bf16.mxu0 0
    %1151 = vmatpush1.bf16.msra.mxu0 0
    %1152 = vmatprep.subr.bf16.mxu0 0
    %1153 = vmatpush1.bf16.msra.mxu0 0
    %1154 = vmatprep.subr.bf16.mxu0 0
    %1155 = vmatpush1.bf16.msra.mxu0 0
    %1156 = vmatprep.subr.bf16.mxu0 0
    %1157 = vmatpush1.bf16.msra.mxu0 0
    %1158 = vmatprep.subr.bf16.mxu0 0
    %1159 = vmatpush1.bf16.msra.mxu0 0
    %1160 = vmatprep.subr.bf16.mxu0 0
    %1161 = vmatpush1.bf16.msra.mxu0 0
    %1162 = vmatprep.subr.bf16.mxu0 0
    %1163 = vmatpush1.bf16.msra.mxu0 0
    %1164 = vmatprep.subr.bf16.mxu0 0
    %1165 = vmatpush1.bf16.msra.mxu0 0
    %1166 = vmatprep.subr.bf16.mxu0 0
    %1167 = vmatpush1.bf16.msra.mxu0 0
    %1168 = vmatprep.subr.bf16.mxu0 0
    %1169 = vmatpush1.bf16.msra.mxu0 0
    %1170 = vmatprep.subr.bf16.mxu0 0
    %1171 = vmatpush1.bf16.msra.mxu0 0
    %1172 = vmatprep.mubr.bf16.mxu0 0
    %1173 = vmatmul.mubr.bf16.gmra.mrb[0].mxu0 %v1138
    %v1174 = vpop.f32.mrb[0].mxu0
    %v1175 = vadd.f32 %v1122, %v1174
    %v1176 = vpop.f32.mrb[0].mxu0
    %v1177 = vpop.f32.mrb[0].mxu0
    %v1178 = vadd.f32 %v1122, %v1177
    %v1179 = vpop.f32.mrb[0].mxu0
    %1180 = vdwg.mxu0
    %1181 = vst [vmem:[#allocation10] sm:$0xff] %v1175
    %1182 = vst [vmem:[#allocation10 + $0x8] sm:$0xff] %v1178
    %v1183 = vlaneseq
    %v1184 = vand.u32 %v1183, 127
    %v1185 = vld [vmem:[%s7] sm:$0x1f]
    %v1186 = vld [vmem:[%s7 + $0x4] sm:$0x1]
    %vm1187 = vcmp.eq.s32.totalorder %v1184, 3
    %v1188 = vsel %vm1187, 0.0, -10000.0
    %v1191 = vunpack.c.l.s4 1966171168
    %v1192 = vunpack.c.0.s8 %v1191
    %v1193 = vlaneseq
    %v1194 = vshrl.u32 %v1193, 7
    %v1195 = vsub.s32 %v1192, %v1194
    %v1196 = vrot.slane %v1188, %v1195
    %v1197 = vcombine.high %v1196, %v1196
    %v1199 = vunpack.c.l.s4 1966171168
    %v1200 = vunpack.c.0.s8 %v1199
    %v1201 = vlaneseq
    %v1202 = vshrl.u32 %v1201, 7
    %v1203 = vsub.s32 %v1200, %v1202
    %v1204 = vrot.slane %v1196, %v1203
    %v1206 = vunpack.c.l.s4 1966171168
    %v1207 = vunpack.c.0.s8 %v1206
    %v1208 = vlaneseq
    %v1209 = vshrl.u32 %v1208, 7
    %v1210 = vsub.s32 %v1207, %v1209
    %v1211 = vrot.slane %v1197, %v1210
    %v1212 = vlaneseq
    %v1213 = vshrl.u32 %v1212, 7
    %v1214 = vsub.s32 0, %v1213
    %v1215 = vrot.slane %v1204, %v1214
    %v1216 = vlaneseq
    %v1217 = vshrl.u32 %v1216, 7
    %v1218 = vsub.s32 0, %v1217
    %v1219 = vrot.slane %v1211, %v1218
    %v1222 = vadd.f32 %v1215, %v1185
    %v1223 = vadd.f32 %v1219, %v1185
    %vm1224 = vcmask 36864
    %v1225 = vsel %vm1224, %v1222, -inf
    %1226 = vmax.xlane.f32.xlu0 %v1225
    %v1227 = vpop.xlane.xlu0 %1226
    %v1228 = vsel %vm1224, %v1223, -inf
    %1229 = vmax.xlane.f32.xlu0 %v1228
    %v1230 = vpop.xlane.xlu0 %1229
    %vm1231 = vcmp.eq.f32.partialorder %v1222, %v1227
    %vm1232 = vcmp.eq.f32.partialorder %v1223, %v1230
    %v1233 = vsel %vm1231, %v1184, 5
    %v1234 = vsel %vm1232, %v1184, 5
    %v1235 = vsel %vm1224, %v1233, 2147483647
    %v1236 = vand.u32 %v1235, 65535
    %v1237 = vshra.s32 %v1235, 16
    %v1238 = vcvt.s32.f32 %v1236
    %v1239 = vcvt.s32.f32 %v1237
    %1240 = vmin.xlane.f32.xlu0 %v1239
    %v1241 = vpop.xlane.xlu0 %1240
    %vm1242 = vcmp.eq.f32.partialorder %v1239, %v1241
    %v1243 = vsel %vm1242, %v1238, inf
    %1244 = vmin.xlane.f32.xlu0 %v1243
    %v1245 = vpop.xlane.xlu0 %1244
    %v1246 = vcvt.f32.s32 %v1245
    %v1247 = vcvt.f32.s32 %v1241
    %v1248 = vshll.u32 %v1247, 16
    %v1249 = vadd.s32 %v1248, %v1246
    %v1250 = vsel %vm1224, %v1234, 2147483647
    %v1251 = vand.u32 %v1250, 65535
    %v1252 = vshra.s32 %v1250, 16
    %v1253 = vcvt.s32.f32 %v1251
    %v1254 = vcvt.s32.f32 %v1252
    %1255 = vmin.xlane.f32.xlu0 %v1254
    %v1256 = vpop.xlane.xlu0 %1255
    %vm1257 = vcmp.eq.f32.partialorder %v1254, %v1256
    %v1258 = vsel %vm1257, %v1253, inf
    %1259 = vmin.xlane.f32.xlu0 %v1258
    %v1260 = vpop.xlane.xlu0 %1259
    %v1261 = vcvt.f32.s32 %v1260
    %v1262 = vcvt.f32.s32 %v1256
    %v1263 = vshll.u32 %v1262, 16
    %v1264 = vadd.s32 %v1263, %v1261
    %v1265 = vlaneseq
    %v1266 = vshrl.u32 %v1265, 7
    %v1267 = vsub.s32 %v1184, %v1266
    %v1268 = vrot.slane %v1249, %v1267
    %v1269 = vlaneseq
    %v1270 = vshrl.u32 %v1269, 7
    %v1271 = vsub.s32 %v1184, %v1270
    %v1272 = vrot.slane %v1264, %v1271
    %vm1273 = vcmask 1041409
    %v1274 = vsel %vm1273, %v1272, %v1268
    %vm1275 = vcmask 33792
    %1276 = vst.msk [vmem:[#allocation4] sm:$0x3] %vm1275, %v1274
    %v1277 = vld [vmem:[#allocation10] sm:$0x3]
    %v1278 = vld [vmem:[#allocation5] sm:$0xf]
    %v1280 = vlaneseq
    %v1281 = vshrl.u32 %v1280, 7
    %v1282 = vsub.s32 0, %v1281
    %v1283 = vrot.slane %v1277, %v1282
    %1285 = vbcast.lane.b32.xlu0 %v1283, 256
    %v1286 = vpop.permute.xlu0 %1285
    %v1287 = vlaneseq
    %v1288 = vshrl.u32 %v1287, 7
    %v1289 = vsub.s32 1, %v1288
    %v1290 = vrot.slane %v1277, %v1289
    %1292 = vbcast.lane.b32.xlu0 %v1290, 256
    %v1293 = vpop.permute.xlu0 %1292
    %v1296 = vadd.f32 %v1227, %v1286
    %v1297 = vadd.f32 %v1230, %v1293
    %1299 = vset.pattern.permute.xlu0 0
    %1300 = vperm.xlu0 %1299, %v1278
    %v1301 = vpop.permute.xlu0 %1300
    %1305 = vset.pattern.permute.xlu0 0
    %1306 = vperm.xlu0 %1305, %v1296
    %v1307 = vpop.permute.xlu0 %1306
    %1308 = vset.pattern.permute.xlu0 0
    %1309 = vperm.xlu0 %1308, %v1297
    %v1310 = vpop.permute.xlu0 %1309
    %v1311 = vlaneseq
    %v1312 = vshrl.u32 %v1311, 7
    %v1313 = vsub.s32 %v1184, %v1312
    %v1314 = vrot.slane %v1307, %v1313
    %v1315 = vlaneseq
    %v1316 = vshrl.u32 %v1315, 7
    %v1317 = vsub.s32 %v1184, %v1316
    %v1318 = vrot.slane %v1310, %v1317
    %v1319 = vsel %vm1273, %v1318, %v1314
    %v1321 = vmul.f32 %v1301, %v1319
    %v1322 = vsub.f32 1.0, %v1278
    %1324 = vset.pattern.permute.xlu0 0
    %1325 = vperm.xlu0 %1324, %v1322
    %v1326 = vpop.permute.xlu0 %1325
    %v1328 = vmul.f32 %v1326, %v1188
    %v1329 = vadd.f32 %v1321, %v1328
    %v1330 = vld [vmem:[#allocation6] sm:$0x3]
    %1332 = vset.pattern.permute.xlu0 0
    %1333 = vperm.xlu0 %1332, %v1330
    %v1334 = vpop.permute.xlu0 %1333
    %v1336 = vlaneseq
    %v1337 = vshrl.u32 %v1336, 7
    %v1338 = vsub.s32 0, %v1337
    %v1339 = vrot.slane %v1186, %v1338
    %v1340 = vmul.f32 %v1334, %v1339
    %v1341 = vadd.f32 %v1329, %v1340
    %v1344 = vunpack.c.l.s4 1966171168
    %v1345 = vunpack.c.0.s8 %v1344
    %v1346 = vlaneseq
    %v1347 = vshrl.u32 %v1346, 7
    %v1348 = vsub.s32 %v1345, %v1347
    %v1349 = vrot.slane %v1341, %v1348
    %v1350 = vcombine.high %v1349, %v1349
    %v1352 = vunpack.c.l.s4 1966171168
    %v1353 = vunpack.c.0.s8 %v1352
    %v1354 = vlaneseq
    %v1355 = vshrl.u32 %v1354, 7
    %v1356 = vsub.s32 %v1353, %v1355
    %v1357 = vrot.slane %v1349, %v1356
    %v1359 = vunpack.c.l.s4 1966171168
    %v1360 = vunpack.c.0.s8 %v1359
    %v1361 = vlaneseq
    %v1362 = vshrl.u32 %v1361, 7
    %v1363 = vsub.s32 %v1360, %v1362
    %v1364 = vrot.slane %v1350, %v1363
    %v1365 = vlaneseq
    %v1366 = vshrl.u32 %v1365, 7
    %v1367 = vsub.s32 0, %v1366
    %v1368 = vrot.slane %v1357, %v1367
    %v1369 = vlaneseq
    %v1370 = vshrl.u32 %v1369, 7
    %v1371 = vsub.s32 0, %v1370
    %v1372 = vrot.slane %v1364, %v1371
    %v1375 = vadd.f32 %v1368, %v1185
    %v1376 = vadd.f32 %v1372, %v1185
    %v1377 = vsel %vm1224, %v1375, -inf
    %1378 = vmax.xlane.f32.xlu0 %v1377
    %v1379 = vpop.xlane.xlu0 %1378
    %v1380 = vsel %vm1224, %v1376, -inf
    %1381 = vmax.xlane.f32.xlu0 %v1380
    %v1382 = vpop.xlane.xlu0 %1381
    %vm1383 = vcmp.eq.f32.partialorder %v1375, %v1379
    %vm1384 = vcmp.eq.f32.partialorder %v1376, %v1382
    %v1385 = vsel %vm1383, %v1184, 5
    %v1386 = vsel %vm1384, %v1184, 5
    %v1387 = vsel %vm1224, %v1385, 2147483647
    %v1388 = vand.u32 %v1387, 65535
    %v1389 = vshra.s32 %v1387, 16
    %v1390 = vcvt.s32.f32 %v1388
    %v1391 = vcvt.s32.f32 %v1389
    %1392 = vmin.xlane.f32.xlu0 %v1391
    %v1393 = vpop.xlane.xlu0 %1392
    %vm1394 = vcmp.eq.f32.partialorder %v1391, %v1393
    %v1395 = vsel %vm1394, %v1390, inf
    %1396 = vmin.xlane.f32.xlu0 %v1395
    %v1397 = vpop.xlane.xlu0 %1396
    %v1398 = vcvt.f32.s32 %v1397
    %v1399 = vcvt.f32.s32 %v1393
    %v1400 = vshll.u32 %v1399, 16
    %v1401 = vadd.s32 %v1400, %v1398
    %v1402 = vsel %vm1224, %v1386, 2147483647
    %v1403 = vand.u32 %v1402, 65535
    %v1404 = vshra.s32 %v1402, 16
    %v1405 = vcvt.s32.f32 %v1403
    %v1406 = vcvt.s32.f32 %v1404
    %1407 = vmin.xlane.f32.xlu0 %v1406
    %v1408 = vpop.xlane.xlu0 %1407
    %vm1409 = vcmp.eq.f32.partialorder %v1406, %v1408
    %v1410 = vsel %vm1409, %v1405, inf
    %1411 = vmin.xlane.f32.xlu0 %v1410
    %v1412 = vpop.xlane.xlu0 %1411
    %v1413 = vcvt.f32.s32 %v1412
    %v1414 = vcvt.f32.s32 %v1408
    %v1415 = vshll.u32 %v1414, 16
    %v1416 = vadd.s32 %v1415, %v1413
    %v1417 = vlaneseq
    %v1418 = vshrl.u32 %v1417, 7
    %v1419 = vsub.s32 %v1184, %v1418
    %v1420 = vrot.slane %v1401, %v1419
    %v1421 = vlaneseq
    %v1422 = vshrl.u32 %v1421, 7
    %v1423 = vsub.s32 %v1184, %v1422
    %v1424 = vrot.slane %v1416, %v1423
    %v1425 = vsel %vm1273, %v1424, %v1420
    %s1426 = scalar_lea.vmem [#allocation4], 2
    %1427 = vst.msk [vmem:[%s1426] sm:$0x3] %vm1275, %v1425
    %v1428 = vld [vmem:[#allocation10 + $0x2] sm:$0x3]
    %v1429 = vld [vmem:[%s412] sm:$0xf]
    %v1431 = vlaneseq
    %v1432 = vshrl.u32 %v1431, 7
    %v1433 = vsub.s32 0, %v1432
    %v1434 = vrot.slane %v1428, %v1433
    %1436 = vbcast.lane.b32.xlu0 %v1434, 256
    %v1437 = vpop.permute.xlu0 %1436
    %v1438 = vlaneseq
    %v1439 = vshrl.u32 %v1438, 7
    %v1440 = vsub.s32 1, %v1439
    %v1441 = vrot.slane %v1428, %v1440
    %1443 = vbcast.lane.b32.xlu0 %v1441, 256
    %v1444 = vpop.permute.xlu0 %1443
    %v1447 = vadd.f32 %v1379, %v1437
    %v1448 = vadd.f32 %v1382, %v1444
    %1450 = vset.pattern.permute.xlu0 0
    %1451 = vperm.xlu0 %1450, %v1429
    %v1452 = vpop.permute.xlu0 %1451
    %1456 = vset.pattern.permute.xlu0 0
    %1457 = vperm.xlu0 %1456, %v1447
    %v1458 = vpop.permute.xlu0 %1457
    %1459 = vset.pattern.permute.xlu0 0
    %1460 = vperm.xlu0 %1459, %v1448
    %v1461 = vpop.permute.xlu0 %1460
    %v1462 = vlaneseq
    %v1463 = vshrl.u32 %v1462, 7
    %v1464 = vsub.s32 %v1184, %v1463
    %v1465 = vrot.slane %v1458, %v1464
    %v1466 = vlaneseq
    %v1467 = vshrl.u32 %v1466, 7
    %v1468 = vsub.s32 %v1184, %v1467
    %v1469 = vrot.slane %v1461, %v1468
    %v1470 = vsel %vm1273, %v1469, %v1465
    %v1472 = vmul.f32 %v1452, %v1470
    %v1473 = vsub.f32 1.0, %v1429
    %1475 = vset.pattern.permute.xlu0 0
    %1476 = vperm.xlu0 %1475, %v1473
    %v1477 = vpop.permute.xlu0 %1476
    %v1479 = vmul.f32 %v1477, %v1341
    %v1480 = vadd.f32 %v1472, %v1479
    %s1481 = scalar_lea.vmem [#allocation6], 2
    %v1482 = vld [vmem:[%s1481] sm:$0x3]
    %1484 = vset.pattern.permute.xlu0 0
    %1485 = vperm.xlu0 %1484, %v1482
    %v1486 = vpop.permute.xlu0 %1485
    %v1488 = vmul.f32 %v1486, %v1339
    %v1489 = vadd.f32 %v1480, %v1488
    %v1492 = vunpack.c.l.s4 1966171168
    %v1493 = vunpack.c.0.s8 %v1492
    %v1494 = vlaneseq
    %v1495 = vshrl.u32 %v1494, 7
    %v1496 = vsub.s32 %v1493, %v1495
    %v1497 = vrot.slane %v1489, %v1496
    %v1498 = vcombine.high %v1497, %v1497
    %v1500 = vunpack.c.l.s4 1966171168
    %v1501 = vunpack.c.0.s8 %v1500
    %v1502 = vlaneseq
    %v1503 = vshrl.u32 %v1502, 7
    %v1504 = vsub.s32 %v1501, %v1503
    %v1505 = vrot.slane %v1497, %v1504
    %v1507 = vunpack.c.l.s4 1966171168
    %v1508 = vunpack.c.0.s8 %v1507
    %v1509 = vlaneseq
    %v1510 = vshrl.u32 %v1509, 7
    %v1511 = vsub.s32 %v1508, %v1510
    %v1512 = vrot.slane %v1498, %v1511
    %v1513 = vlaneseq
    %v1514 = vshrl.u32 %v1513, 7
    %v1515 = vsub.s32 0, %v1514
    %v1516 = vrot.slane %v1505, %v1515
    %v1517 = vlaneseq
    %v1518 = vshrl.u32 %v1517, 7
    %v1519 = vsub.s32 0, %v1518
    %v1520 = vrot.slane %v1512, %v1519
    %v1523 = vadd.f32 %v1516, %v1185
    %v1524 = vadd.f32 %v1520, %v1185
    %v1525 = vsel %vm1224, %v1523, -inf
    %1526 = vmax.xlane.f32.xlu0 %v1525
    %v1527 = vpop.xlane.xlu0 %1526
    %v1528 = vsel %vm1224, %v1524, -inf
    %1529 = vmax.xlane.f32.xlu0 %v1528
    %v1530 = vpop.xlane.xlu0 %1529
    %vm1531 = vcmp.eq.f32.partialorder %v1523, %v1527
    %vm1532 = vcmp.eq.f32.partialorder %v1524, %v1530
    %v1533 = vsel %vm1531, %v1184, 5
    %v1534 = vsel %vm1532, %v1184, 5
    %v1535 = vsel %vm1224, %v1533, 2147483647
    %v1536 = vand.u32 %v1535, 65535
    %v1537 = vshra.s32 %v1535, 16
    %v1538 = vcvt.s32.f32 %v1536
    %v1539 = vcvt.s32.f32 %v1537
    %1540 = vmin.xlane.f32.xlu0 %v1539
    %v1541 = vpop.xlane.xlu0 %1540
    %vm1542 = vcmp.eq.f32.partialorder %v1539, %v1541
    %v1543 = vsel %vm1542, %v1538, inf
    %1544 = vmin.xlane.f32.xlu0 %v1543
    %v1545 = vpop.xlane.xlu0 %1544
    %v1546 = vcvt.f32.s32 %v1545
    %v1547 = vcvt.f32.s32 %v1541
    %v1548 = vshll.u32 %v1547, 16
    %v1549 = vadd.s32 %v1548, %v1546
    %v1550 = vsel %vm1224, %v1534, 2147483647
    %v1551 = vand.u32 %v1550, 65535
    %v1552 = vshra.s32 %v1550, 16
    %v1553 = vcvt.s32.f32 %v1551
    %v1554 = vcvt.s32.f32 %v1552
    %1555 = vmin.xlane.f32.xlu0 %v1554
    %v1556 = vpop.xlane.xlu0 %1555
    %vm1557 = vcmp.eq.f32.partialorder %v1554, %v1556
    %v1558 = vsel %vm1557, %v1553, inf
    %1559 = vmin.xlane.f32.xlu0 %v1558
    %v1560 = vpop.xlane.xlu0 %1559
    %v1561 = vcvt.f32.s32 %v1560
    %v1562 = vcvt.f32.s32 %v1556
    %v1563 = vshll.u32 %v1562, 16
    %v1564 = vadd.s32 %v1563, %v1561
    %v1565 = vlaneseq
    %v1566 = vshrl.u32 %v1565, 7
    %v1567 = vsub.s32 %v1184, %v1566
    %v1568 = vrot.slane %v1549, %v1567
    %v1569 = vlaneseq
    %v1570 = vshrl.u32 %v1569, 7
    %v1571 = vsub.s32 %v1184, %v1570
    %v1572 = vrot.slane %v1564, %v1571
    %v1573 = vsel %vm1273, %v1572, %v1568
    %s1574 = scalar_lea.vmem [#allocation4], 4
    %1575 = vst.msk [vmem:[%s1574] sm:$0x3] %vm1275, %v1573
    %v1576 = vld [vmem:[#allocation10 + $0x4] sm:$0x3]
    %v1577 = vld [vmem:[%s524] sm:$0xf]
    %v1579 = vlaneseq
    %v1580 = vshrl.u32 %v1579, 7
    %v1581 = vsub.s32 0, %v1580
    %v1582 = vrot.slane %v1576, %v1581
    %1584 = vbcast.lane.b32.xlu0 %v1582, 256
    %v1585 = vpop.permute.xlu0 %1584
    %v1586 = vlaneseq
    %v1587 = vshrl.u32 %v1586, 7
    %v1588 = vsub.s32 1, %v1587
    %v1589 = vrot.slane %v1576, %v1588
    %1591 = vbcast.lane.b32.xlu0 %v1589, 256
    %v1592 = vpop.permute.xlu0 %1591
    %v1595 = vadd.f32 %v1527, %v1585
    %v1596 = vadd.f32 %v1530, %v1592
    %1598 = vset.pattern.permute.xlu0 0
    %1599 = vperm.xlu0 %1598, %v1577
    %v1600 = vpop.permute.xlu0 %1599
    %1604 = vset.pattern.permute.xlu0 0
    %1605 = vperm.xlu0 %1604, %v1595
    %v1606 = vpop.permute.xlu0 %1605
    %1607 = vset.pattern.permute.xlu0 0
    %1608 = vperm.xlu0 %1607, %v1596
    %v1609 = vpop.permute.xlu0 %1608
    %v1610 = vlaneseq
    %v1611 = vshrl.u32 %v1610, 7
    %v1612 = vsub.s32 %v1184, %v1611
    %v1613 = vrot.slane %v1606, %v1612
    %v1614 = vlaneseq
    %v1615 = vshrl.u32 %v1614, 7
    %v1616 = vsub.s32 %v1184, %v1615
    %v1617 = vrot.slane %v1609, %v1616
    %v1618 = vsel %vm1273, %v1617, %v1613
    %v1620 = vmul.f32 %v1600, %v1618
    %v1621 = vsub.f32 1.0, %v1577
    %1623 = vset.pattern.permute.xlu0 0
    %1624 = vperm.xlu0 %1623, %v1621
    %v1625 = vpop.permute.xlu0 %1624
    %v1627 = vmul.f32 %v1625, %v1489
    %v1628 = vadd.f32 %v1620, %v1627
    %s1629 = scalar_lea.vmem [#allocation6], 4
    %v1630 = vld [vmem:[%s1629] sm:$0x3]
    %1632 = vset.pattern.permute.xlu0 0
    %1633 = vperm.xlu0 %1632, %v1630
    %v1634 = vpop.permute.xlu0 %1633
    %v1636 = vmul.f32 %v1634, %v1339
    %v1637 = vadd.f32 %v1628, %v1636
    %v1640 = vunpack.c.l.s4 1966171168
    %v1641 = vunpack.c.0.s8 %v1640
    %v1642 = vlaneseq
    %v1643 = vshrl.u32 %v1642, 7
    %v1644 = vsub.s32 %v1641, %v1643
    %v1645 = vrot.slane %v1637, %v1644
    %v1646 = vcombine.high %v1645, %v1645
    %v1648 = vunpack.c.l.s4 1966171168
    %v1649 = vunpack.c.0.s8 %v1648
    %v1650 = vlaneseq
    %v1651 = vshrl.u32 %v1650, 7
    %v1652 = vsub.s32 %v1649, %v1651
    %v1653 = vrot.slane %v1645, %v1652
    %v1655 = vunpack.c.l.s4 1966171168
    %v1656 = vunpack.c.0.s8 %v1655
    %v1657 = vlaneseq
    %v1658 = vshrl.u32 %v1657, 7
    %v1659 = vsub.s32 %v1656, %v1658
    %v1660 = vrot.slane %v1646, %v1659
    %v1661 = vlaneseq
    %v1662 = vshrl.u32 %v1661, 7
    %v1663 = vsub.s32 0, %v1662
    %v1664 = vrot.slane %v1653, %v1663
    %v1665 = vlaneseq
    %v1666 = vshrl.u32 %v1665, 7
    %v1667 = vsub.s32 0, %v1666
    %v1668 = vrot.slane %v1660, %v1667
    %v1671 = vadd.f32 %v1664, %v1185
    %v1672 = vadd.f32 %v1668, %v1185
    %v1673 = vsel %vm1224, %v1671, -inf
    %1674 = vmax.xlane.f32.xlu0 %v1673
    %v1675 = vpop.xlane.xlu0 %1674
    %v1676 = vsel %vm1224, %v1672, -inf
    %1677 = vmax.xlane.f32.xlu0 %v1676
    %v1678 = vpop.xlane.xlu0 %1677
    %vm1679 = vcmp.eq.f32.partialorder %v1671, %v1675
    %vm1680 = vcmp.eq.f32.partialorder %v1672, %v1678
    %v1681 = vsel %vm1679, %v1184, 5
    %v1682 = vsel %vm1680, %v1184, 5
    %v1683 = vsel %vm1224, %v1681, 2147483647
    %v1684 = vand.u32 %v1683, 65535
    %v1685 = vshra.s32 %v1683, 16
    %v1686 = vcvt.s32.f32 %v1684
    %v1687 = vcvt.s32.f32 %v1685
    %1688 = vmin.xlane.f32.xlu0 %v1687
    %v1689 = vpop.xlane.xlu0 %1688
    %vm1690 = vcmp.eq.f32.partialorder %v1687, %v1689
    %v1691 = vsel %vm1690, %v1686, inf
    %1692 = vmin.xlane.f32.xlu0 %v1691
    %v1693 = vpop.xlane.xlu0 %1692
    %v1694 = vcvt.f32.s32 %v1693
    %v1695 = vcvt.f32.s32 %v1689
    %v1696 = vshll.u32 %v1695, 16
    %v1697 = vadd.s32 %v1696, %v1694
    %v1698 = vsel %vm1224, %v1682, 2147483647
    %v1699 = vand.u32 %v1698, 65535
    %v1700 = vshra.s32 %v1698, 16
    %v1701 = vcvt.s32.f32 %v1699
    %v1702 = vcvt.s32.f32 %v1700
    %1703 = vmin.xlane.f32.xlu0 %v1702
    %v1704 = vpop.xlane.xlu0 %1703
    %vm1705 = vcmp.eq.f32.partialorder %v1702, %v1704
    %v1706 = vsel %vm1705, %v1701, inf
    %1707 = vmin.xlane.f32.xlu0 %v1706
    %v1708 = vpop.xlane.xlu0 %1707
    %v1709 = vcvt.f32.s32 %v1708
    %v1710 = vcvt.f32.s32 %v1704
    %v1711 = vshll.u32 %v1710, 16
    %v1712 = vadd.s32 %v1711, %v1709
    %v1713 = vlaneseq
    %v1714 = vshrl.u32 %v1713, 7
    %v1715 = vsub.s32 %v1184, %v1714
    %v1716 = vrot.slane %v1697, %v1715
    %v1717 = vlaneseq
    %v1718 = vshrl.u32 %v1717, 7
    %v1719 = vsub.s32 %v1184, %v1718
    %v1720 = vrot.slane %v1712, %v1719
    %v1721 = vsel %vm1273, %v1720, %v1716
    %s1722 = scalar_lea.vmem [#allocation4], 6
    %1723 = vst.msk [vmem:[%s1722] sm:$0x3] %vm1275, %v1721
    %v1724 = vld [vmem:[#allocation10 + $0x6] sm:$0x3]
    %v1725 = vld [vmem:[%s636] sm:$0xf]
    %v1727 = vlaneseq
    %v1728 = vshrl.u32 %v1727, 7
    %v1729 = vsub.s32 0, %v1728
    %v1730 = vrot.slane %v1724, %v1729
    %1732 = vbcast.lane.b32.xlu0 %v1730, 256
    %v1733 = vpop.permute.xlu0 %1732
    %v1734 = vlaneseq
    %v1735 = vshrl.u32 %v1734, 7
    %v1736 = vsub.s32 1, %v1735
    %v1737 = vrot.slane %v1724, %v1736
    %1739 = vbcast.lane.b32.xlu0 %v1737, 256
    %v1740 = vpop.permute.xlu0 %1739
    %v1743 = vadd.f32 %v1675, %v1733
    %v1744 = vadd.f32 %v1678, %v1740
    %1746 = vset.pattern.permute.xlu0 0
    %1747 = vperm.xlu0 %1746, %v1725
    %v1748 = vpop.permute.xlu0 %1747
    %1752 = vset.pattern.permute.xlu0 0
    %1753 = vperm.xlu0 %1752, %v1743
    %v1754 = vpop.permute.xlu0 %1753
    %1755 = vset.pattern.permute.xlu0 0
    %1756 = vperm.xlu0 %1755, %v1744
    %v1757 = vpop.permute.xlu0 %1756
    %v1758 = vlaneseq
    %v1759 = vshrl.u32 %v1758, 7
    %v1760 = vsub.s32 %v1184, %v1759
    %v1761 = vrot.slane %v1754, %v1760
    %v1762 = vlaneseq
    %v1763 = vshrl.u32 %v1762, 7
    %v1764 = vsub.s32 %v1184, %v1763
    %v1765 = vrot.slane %v1757, %v1764
    %v1766 = vsel %vm1273, %v1765, %v1761
    %v1768 = vmul.f32 %v1748, %v1766
    %v1769 = vsub.f32 1.0, %v1725
    %1771 = vset.pattern.permute.xlu0 0
    %1772 = vperm.xlu0 %1771, %v1769
    %v1773 = vpop.permute.xlu0 %1772
    %v1775 = vmul.f32 %v1773, %v1637
    %v1776 = vadd.f32 %v1768, %v1775
    %s1777 = scalar_lea.vmem [#allocation6], 6
    %v1778 = vld [vmem:[%s1777] sm:$0x3]
    %1780 = vset.pattern.permute.xlu0 0
    %1781 = vperm.xlu0 %1780, %v1778
    %v1782 = vpop.permute.xlu0 %1781
    %v1784 = vmul.f32 %v1782, %v1339
    %v1785 = vadd.f32 %v1776, %v1784
    %v1788 = vunpack.c.l.s4 1966171168
    %v1789 = vunpack.c.0.s8 %v1788
    %v1790 = vlaneseq
    %v1791 = vshrl.u32 %v1790, 7
    %v1792 = vsub.s32 %v1789, %v1791
    %v1793 = vrot.slane %v1785, %v1792
    %v1794 = vcombine.high %v1793, %v1793
    %v1796 = vunpack.c.l.s4 1966171168
    %v1797 = vunpack.c.0.s8 %v1796
    %v1798 = vlaneseq
    %v1799 = vshrl.u32 %v1798, 7
    %v1800 = vsub.s32 %v1797, %v1799
    %v1801 = vrot.slane %v1793, %v1800
    %v1803 = vunpack.c.l.s4 1966171168
    %v1804 = vunpack.c.0.s8 %v1803
    %v1805 = vlaneseq
    %v1806 = vshrl.u32 %v1805, 7
    %v1807 = vsub.s32 %v1804, %v1806
    %v1808 = vrot.slane %v1794, %v1807
    %v1809 = vlaneseq
    %v1810 = vshrl.u32 %v1809, 7
    %v1811 = vsub.s32 0, %v1810
    %v1812 = vrot.slane %v1801, %v1811
    %v1813 = vlaneseq
    %v1814 = vshrl.u32 %v1813, 7
    %v1815 = vsub.s32 0, %v1814
    %v1816 = vrot.slane %v1808, %v1815
    %v1819 = vadd.f32 %v1812, %v1185
    %v1820 = vadd.f32 %v1816, %v1185
    %v1821 = vsel %vm1224, %v1819, -inf
    %1822 = vmax.xlane.f32.xlu0 %v1821
    %v1823 = vpop.xlane.xlu0 %1822
    %v1824 = vsel %vm1224, %v1820, -inf
    %1825 = vmax.xlane.f32.xlu0 %v1824
    %v1826 = vpop.xlane.xlu0 %1825
    %vm1827 = vcmp.eq.f32.partialorder %v1819, %v1823
    %vm1828 = vcmp.eq.f32.partialorder %v1820, %v1826
    %v1829 = vsel %vm1827, %v1184, 5
    %v1830 = vsel %vm1828, %v1184, 5
    %v1831 = vsel %vm1224, %v1829, 2147483647
    %v1832 = vand.u32 %v1831, 65535
    %v1833 = vshra.s32 %v1831, 16
    %v1834 = vcvt.s32.f32 %v1832
    %v1835 = vcvt.s32.f32 %v1833
    %1836 = vmin.xlane.f32.xlu0 %v1835
    %v1837 = vpop.xlane.xlu0 %1836
    %vm1838 = vcmp.eq.f32.partialorder %v1835, %v1837
    %v1839 = vsel %vm1838, %v1834, inf
    %1840 = vmin.xlane.f32.xlu0 %v1839
    %v1841 = vpop.xlane.xlu0 %1840
    %v1842 = vcvt.f32.s32 %v1841
    %v1843 = vcvt.f32.s32 %v1837
    %v1844 = vshll.u32 %v1843, 16
    %v1845 = vadd.s32 %v1844, %v1842
    %v1846 = vsel %vm1224, %v1830, 2147483647
    %v1847 = vand.u32 %v1846, 65535
    %v1848 = vshra.s32 %v1846, 16
    %v1849 = vcvt.s32.f32 %v1847
    %v1850 = vcvt.s32.f32 %v1848
    %1851 = vmin.xlane.f32.xlu0 %v1850
    %v1852 = vpop.xlane.xlu0 %1851
    %vm1853 = vcmp.eq.f32.partialorder %v1850, %v1852
    %v1854 = vsel %vm1853, %v1849, inf
    %1855 = vmin.xlane.f32.xlu0 %v1854
    %v1856 = vpop.xlane.xlu0 %1855
    %v1857 = vcvt.f32.s32 %v1856
    %v1858 = vcvt.f32.s32 %v1852
    %v1859 = vshll.u32 %v1858, 16
    %v1860 = vadd.s32 %v1859, %v1857
    %v1861 = vlaneseq
    %v1862 = vshrl.u32 %v1861, 7
    %v1863 = vsub.s32 %v1184, %v1862
    %v1864 = vrot.slane %v1845, %v1863
    %v1865 = vlaneseq
    %v1866 = vshrl.u32 %v1865, 7
    %v1867 = vsub.s32 %v1184, %v1866
    %v1868 = vrot.slane %v1860, %v1867
    %v1869 = vsel %vm1273, %v1868, %v1864
    %s1870 = scalar_lea.vmem [#allocation4], 8
    %1871 = vst.msk [vmem:[%s1870] sm:$0x3] %vm1275, %v1869
    %v1872 = vld [vmem:[#allocation10 + $0x8] sm:$0x3]
    %v1873 = vld [vmem:[%s748] sm:$0xf]
    %v1875 = vlaneseq
    %v1876 = vshrl.u32 %v1875, 7
    %v1877 = vsub.s32 0, %v1876
    %v1878 = vrot.slane %v1872, %v1877
    %1880 = vbcast.lane.b32.xlu0 %v1878, 256
    %v1881 = vpop.permute.xlu0 %1880
    %v1882 = vlaneseq
    %v1883 = vshrl.u32 %v1882, 7
    %v1884 = vsub.s32 1, %v1883
    %v1885 = vrot.slane %v1872, %v1884
    %1887 = vbcast.lane.b32.xlu0 %v1885, 256
    %v1888 = vpop.permute.xlu0 %1887
    %v1891 = vadd.f32 %v1823, %v1881
    %v1892 = vadd.f32 %v1826, %v1888
    %1894 = vset.pattern.permute.xlu0 0
    %1895 = vperm.xlu0 %1894, %v1873
    %v1896 = vpop.permute.xlu0 %1895
    %1900 = vset.pattern.permute.xlu0 0
    %1901 = vperm.xlu0 %1900, %v1891
    %v1902 = vpop.permute.xlu0 %1901
    %1903 = vset.pattern.permute.xlu0 0
    %1904 = vperm.xlu0 %1903, %v1892
    %v1905 = vpop.permute.xlu0 %1904
    %v1906 = vlaneseq
    %v1907 = vshrl.u32 %v1906, 7
    %v1908 = vsub.s32 %v1184, %v1907
    %v1909 = vrot.slane %v1902, %v1908
    %v1910 = vlaneseq
    %v1911 = vshrl.u32 %v1910, 7
    %v1912 = vsub.s32 %v1184, %v1911
    %v1913 = vrot.slane %v1905, %v1912
    %v1914 = vsel %vm1273, %v1913, %v1909
    %v1916 = vmul.f32 %v1896, %v1914
    %v1917 = vsub.f32 1.0, %v1873
    %1919 = vset.pattern.permute.xlu0 0
    %1920 = vperm.xlu0 %1919, %v1917
    %v1921 = vpop.permute.xlu0 %1920
    %v1923 = vmul.f32 %v1921, %v1785
    %v1924 = vadd.f32 %v1916, %v1923
    %s1925 = scalar_lea.vmem [#allocation6], 8
    %v1926 = vld [vmem:[%s1925] sm:$0x3]
    %1928 = vset.pattern.permute.xlu0 0
    %1929 = vperm.xlu0 %1928, %v1926
    %v1930 = vpop.permute.xlu0 %1929
    %v1932 = vmul.f32 %v1930, %v1339
    %v1933 = vadd.f32 %v1924, %v1932
    %v1936 = vunpack.c.l.s4 1966171168
    %v1937 = vunpack.c.0.s8 %v1936
    %v1938 = vlaneseq
    %v1939 = vshrl.u32 %v1938, 7
    %v1940 = vsub.s32 %v1937, %v1939
    %v1941 = vrot.slane %v1933, %v1940
    %v1942 = vcombine.high %v1941, %v1941
    %v1944 = vunpack.c.l.s4 1966171168
    %v1945 = vunpack.c.0.s8 %v1944
    %v1946 = vlaneseq
    %v1947 = vshrl.u32 %v1946, 7
    %v1948 = vsub.s32 %v1945, %v1947
    %v1949 = vrot.slane %v1941, %v1948
    %v1951 = vunpack.c.l.s4 1966171168
    %v1952 = vunpack.c.0.s8 %v1951
    %v1953 = vlaneseq
    %v1954 = vshrl.u32 %v1953, 7
    %v1955 = vsub.s32 %v1952, %v1954
    %v1956 = vrot.slane %v1942, %v1955
    %v1957 = vlaneseq
    %v1958 = vshrl.u32 %v1957, 7
    %v1959 = vsub.s32 0, %v1958
    %v1960 = vrot.slane %v1949, %v1959
    %v1961 = vlaneseq
    %v1962 = vshrl.u32 %v1961, 7
    %v1963 = vsub.s32 0, %v1962
    %v1964 = vrot.slane %v1956, %v1963
    %v1967 = vadd.f32 %v1960, %v1185
    %v1968 = vadd.f32 %v1964, %v1185
    %v1969 = vsel %vm1224, %v1967, -inf
    %1970 = vmax.xlane.f32.xlu0 %v1969
    %v1971 = vpop.xlane.xlu0 %1970
    %v1972 = vsel %vm1224, %v1968, -inf
    %1973 = vmax.xlane.f32.xlu0 %v1972
    %v1974 = vpop.xlane.xlu0 %1973
    %vm1975 = vcmp.eq.f32.partialorder %v1967, %v1971
    %vm1976 = vcmp.eq.f32.partialorder %v1968, %v1974
    %v1977 = vsel %vm1975, %v1184, 5
    %v1978 = vsel %vm1976, %v1184, 5
    %v1979 = vsel %vm1224, %v1977, 2147483647
    %v1980 = vand.u32 %v1979, 65535
    %v1981 = vshra.s32 %v1979, 16
    %v1982 = vcvt.s32.f32 %v1980
    %v1983 = vcvt.s32.f32 %v1981
    %1984 = vmin.xlane.f32.xlu0 %v1983
    %v1985 = vpop.xlane.xlu0 %1984
    %vm1986 = vcmp.eq.f32.partialorder %v1983, %v1985
    %v1987 = vsel %vm1986, %v1982, inf
    %1988 = vmin.xlane.f32.xlu0 %v1987
    %v1989 = vpop.xlane.xlu0 %1988
    %v1990 = vcvt.f32.s32 %v1989
    %v1991 = vcvt.f32.s32 %v1985
    %v1992 = vshll.u32 %v1991, 16
    %v1993 = vadd.s32 %v1992, %v1990
    %v1994 = vsel %vm1224, %v1978, 2147483647
    %v1995 = vand.u32 %v1994, 65535
    %v1996 = vshra.s32 %v1994, 16
    %v1997 = vcvt.s32.f32 %v1995
    %v1998 = vcvt.s32.f32 %v1996
    %1999 = vmin.xlane.f32.xlu0 %v1998
    %v2000 = vpop.xlane.xlu0 %1999
    %vm2001 = vcmp.eq.f32.partialorder %v1998, %v2000
    %v2002 = vsel %vm2001, %v1997, inf
    %2003 = vmin.xlane.f32.xlu0 %v2002
    %v2004 = vpop.xlane.xlu0 %2003
    %v2005 = vcvt.f32.s32 %v2004
    %v2006 = vcvt.f32.s32 %v2000
    %v2007 = vshll.u32 %v2006, 16
    %v2008 = vadd.s32 %v2007, %v2005
    %v2009 = vlaneseq
    %v2010 = vshrl.u32 %v2009, 7
    %v2011 = vsub.s32 %v1184, %v2010
    %v2012 = vrot.slane %v1993, %v2011
    %v2013 = vlaneseq
    %v2014 = vshrl.u32 %v2013, 7
    %v2015 = vsub.s32 %v1184, %v2014
    %v2016 = vrot.slane %v2008, %v2015
    %v2017 = vsel %vm1273, %v2016, %v2012
    %s2018 = scalar_lea.vmem [#allocation4], 10
    %2019 = vst.msk [vmem:[%s2018] sm:$0x3] %vm1275, %v2017
    %v2020 = vld [vmem:[#allocation10 + $0xa] sm:$0x3]
    %v2021 = vld [vmem:[%s860] sm:$0xf]
    %v2023 = vlaneseq
    %v2024 = vshrl.u32 %v2023, 7
    %v2025 = vsub.s32 0, %v2024
    %v2026 = vrot.slane %v2020, %v2025
    %2028 = vbcast.lane.b32.xlu0 %v2026, 256
    %v2029 = vpop.permute.xlu0 %2028
    %v2030 = vlaneseq
    %v2031 = vshrl.u32 %v2030, 7
    %v2032 = vsub.s32 1, %v2031
    %v2033 = vrot.slane %v2020, %v2032
    %2035 = vbcast.lane.b32.xlu0 %v2033, 256
    %v2036 = vpop.permute.xlu0 %2035
    %v2039 = vadd.f32 %v1971, %v2029
    %v2040 = vadd.f32 %v1974, %v2036
    %2042 = vset.pattern.permute.xlu0 0
    %2043 = vperm.xlu0 %2042, %v2021
    %v2044 = vpop.permute.xlu0 %2043
    %2048 = vset.pattern.permute.xlu0 0
    %2049 = vperm.xlu0 %2048, %v2039
    %v2050 = vpop.permute.xlu0 %2049
    %2051 = vset.pattern.permute.xlu0 0
    %2052 = vperm.xlu0 %2051, %v2040
    %v2053 = vpop.permute.xlu0 %2052
    %v2054 = vlaneseq
    %v2055 = vshrl.u32 %v2054, 7
    %v2056 = vsub.s32 %v1184, %v2055
    %v2057 = vrot.slane %v2050, %v2056
    %v2058 = vlaneseq
    %v2059 = vshrl.u32 %v2058, 7
    %v2060 = vsub.s32 %v1184, %v2059
    %v2061 = vrot.slane %v2053, %v2060
    %v2062 = vsel %vm1273, %v2061, %v2057
    %v2064 = vmul.f32 %v2044, %v2062
    %v2065 = vsub.f32 1.0, %v2021
    %2067 = vset.pattern.permute.xlu0 0
    %2068 = vperm.xlu0 %2067, %v2065
    %v2069 = vpop.permute.xlu0 %2068
    %v2071 = vmul.f32 %v2069, %v1933
    %v2072 = vadd.f32 %v2064, %v2071
    %s2073 = scalar_lea.vmem [#allocation6], 10
    %v2074 = vld [vmem:[%s2073] sm:$0x3]
    %2076 = vset.pattern.permute.xlu0 0
    %2077 = vperm.xlu0 %2076, %v2074
    %v2078 = vpop.permute.xlu0 %2077
    %v2080 = vmul.f32 %v2078, %v1339
    %v2081 = vadd.f32 %v2072, %v2080
    %v2084 = vunpack.c.l.s4 1966171168
    %v2085 = vunpack.c.0.s8 %v2084
    %v2086 = vlaneseq
    %v2087 = vshrl.u32 %v2086, 7
    %v2088 = vsub.s32 %v2085, %v2087
    %v2089 = vrot.slane %v2081, %v2088
    %v2090 = vcombine.high %v2089, %v2089
    %v2092 = vunpack.c.l.s4 1966171168
    %v2093 = vunpack.c.0.s8 %v2092
    %v2094 = vlaneseq
    %v2095 = vshrl.u32 %v2094, 7
    %v2096 = vsub.s32 %v2093, %v2095
    %v2097 = vrot.slane %v2089, %v2096
    %v2099 = vunpack.c.l.s4 1966171168
    %v2100 = vunpack.c.0.s8 %v2099
    %v2101 = vlaneseq
    %v2102 = vshrl.u32 %v2101, 7
    %v2103 = vsub.s32 %v2100, %v2102
    %v2104 = vrot.slane %v2090, %v2103
    %v2105 = vlaneseq
    %v2106 = vshrl.u32 %v2105, 7
    %v2107 = vsub.s32 0, %v2106
    %v2108 = vrot.slane %v2097, %v2107
    %v2109 = vlaneseq
    %v2110 = vshrl.u32 %v2109, 7
    %v2111 = vsub.s32 0, %v2110
    %v2112 = vrot.slane %v2104, %v2111
    %v2115 = vadd.f32 %v2108, %v1185
    %v2116 = vadd.f32 %v2112, %v1185
    %v2117 = vsel %vm1224, %v2115, -inf
    %2118 = vmax.xlane.f32.xlu0 %v2117
    %v2119 = vpop.xlane.xlu0 %2118
    %v2120 = vsel %vm1224, %v2116, -inf
    %2121 = vmax.xlane.f32.xlu0 %v2120
    %v2122 = vpop.xlane.xlu0 %2121
    %vm2123 = vcmp.eq.f32.partialorder %v2115, %v2119
    %vm2124 = vcmp.eq.f32.partialorder %v2116, %v2122
    %v2125 = vsel %vm2123, %v1184, 5
    %v2126 = vsel %vm2124, %v1184, 5
    %v2127 = vsel %vm1224, %v2125, 2147483647
    %v2128 = vand.u32 %v2127, 65535
    %v2129 = vshra.s32 %v2127, 16
    %v2130 = vcvt.s32.f32 %v2128
    %v2131 = vcvt.s32.f32 %v2129
    %2132 = vmin.xlane.f32.xlu0 %v2131
    %v2133 = vpop.xlane.xlu0 %2132
    %vm2134 = vcmp.eq.f32.partialorder %v2131, %v2133
    %v2135 = vsel %vm2134, %v2130, inf
    %2136 = vmin.xlane.f32.xlu0 %v2135
    %v2137 = vpop.xlane.xlu0 %2136
    %v2138 = vcvt.f32.s32 %v2137
    %v2139 = vcvt.f32.s32 %v2133
    %v2140 = vshll.u32 %v2139, 16
    %v2141 = vadd.s32 %v2140, %v2138
    %v2142 = vsel %vm1224, %v2126, 2147483647
    %v2143 = vand.u32 %v2142, 65535
    %v2144 = vshra.s32 %v2142, 16
    %v2145 = vcvt.s32.f32 %v2143
    %v2146 = vcvt.s32.f32 %v2144
    %2147 = vmin.xlane.f32.xlu0 %v2146
    %v2148 = vpop.xlane.xlu0 %2147
    %vm2149 = vcmp.eq.f32.partialorder %v2146, %v2148
    %v2150 = vsel %vm2149, %v2145, inf
    %2151 = vmin.xlane.f32.xlu0 %v2150
    %v2152 = vpop.xlane.xlu0 %2151
    %v2153 = vcvt.f32.s32 %v2152
    %v2154 = vcvt.f32.s32 %v2148
    %v2155 = vshll.u32 %v2154, 16
    %v2156 = vadd.s32 %v2155, %v2153
    %v2157 = vlaneseq
    %v2158 = vshrl.u32 %v2157, 7
    %v2159 = vsub.s32 %v1184, %v2158
    %v2160 = vrot.slane %v2141, %v2159
    %v2161 = vlaneseq
    %v2162 = vshrl.u32 %v2161, 7
    %v2163 = vsub.s32 %v1184, %v2162
    %v2164 = vrot.slane %v2156, %v2163
    %v2165 = vsel %vm1273, %v2164, %v2160
    %s2166 = scalar_lea.vmem [#allocation4], 12
    %2167 = vst.msk [vmem:[%s2166] sm:$0x3] %vm1275, %v2165
    %v2168 = vld [vmem:[#allocation10 + $0xc] sm:$0x3]
    %v2169 = vld [vmem:[%s972] sm:$0xf]
    %v2171 = vlaneseq
    %v2172 = vshrl.u32 %v2171, 7
    %v2173 = vsub.s32 0, %v2172
    %v2174 = vrot.slane %v2168, %v2173
    %2176 = vbcast.lane.b32.xlu0 %v2174, 256
    %v2177 = vpop.permute.xlu0 %2176
    %v2178 = vlaneseq
    %v2179 = vshrl.u32 %v2178, 7
    %v2180 = vsub.s32 1, %v2179
    %v2181 = vrot.slane %v2168, %v2180
    %2183 = vbcast.lane.b32.xlu0 %v2181, 256
    %v2184 = vpop.permute.xlu0 %2183
    %v2187 = vadd.f32 %v2119, %v2177
    %v2188 = vadd.f32 %v2122, %v2184
    %2190 = vset.pattern.permute.xlu0 0
    %2191 = vperm.xlu0 %2190, %v2169
    %v2192 = vpop.permute.xlu0 %2191
    %2196 = vset.pattern.permute.xlu0 0
    %2197 = vperm.xlu0 %2196, %v2187
    %v2198 = vpop.permute.xlu0 %2197
    %2199 = vset.pattern.permute.xlu0 0
    %2200 = vperm.xlu0 %2199, %v2188
    %v2201 = vpop.permute.xlu0 %2200
    %v2202 = vlaneseq
    %v2203 = vshrl.u32 %v2202, 7
    %v2204 = vsub.s32 %v1184, %v2203
    %v2205 = vrot.slane %v2198, %v2204
    %v2206 = vlaneseq
    %v2207 = vshrl.u32 %v2206, 7
    %v2208 = vsub.s32 %v1184, %v2207
    %v2209 = vrot.slane %v2201, %v2208
    %v2210 = vsel %vm1273, %v2209, %v2205
    %v2212 = vmul.f32 %v2192, %v2210
    %v2213 = vsub.f32 1.0, %v2169
    %2215 = vset.pattern.permute.xlu0 0
    %2216 = vperm.xlu0 %2215, %v2213
    %v2217 = vpop.permute.xlu0 %2216
    %v2219 = vmul.f32 %v2217, %v2081
    %v2220 = vadd.f32 %v2212, %v2219
    %s2221 = scalar_lea.vmem [#allocation6], 12
    %v2222 = vld [vmem:[%s2221] sm:$0x3]
    %2224 = vset.pattern.permute.xlu0 0
    %2225 = vperm.xlu0 %2224, %v2222
    %v2226 = vpop.permute.xlu0 %2225
    %v2228 = vmul.f32 %v2226, %v1339
    %v2229 = vadd.f32 %v2220, %v2228
    %v2232 = vunpack.c.l.s4 1966171168
    %v2233 = vunpack.c.0.s8 %v2232
    %v2234 = vlaneseq
    %v2235 = vshrl.u32 %v2234, 7
    %v2236 = vsub.s32 %v2233, %v2235
    %v2237 = vrot.slane %v2229, %v2236
    %v2238 = vcombine.high %v2237, %v2237
    %v2240 = vunpack.c.l.s4 1966171168
    %v2241 = vunpack.c.0.s8 %v2240
    %v2242 = vlaneseq
    %v2243 = vshrl.u32 %v2242, 7
    %v2244 = vsub.s32 %v2241, %v2243
    %v2245 = vrot.slane %v2237, %v2244
    %v2247 = vunpack.c.l.s4 1966171168
    %v2248 = vunpack.c.0.s8 %v2247
    %v2249 = vlaneseq
    %v2250 = vshrl.u32 %v2249, 7
    %v2251 = vsub.s32 %v2248, %v2250
    %v2252 = vrot.slane %v2238, %v2251
    %v2253 = vlaneseq
    %v2254 = vshrl.u32 %v2253, 7
    %v2255 = vsub.s32 0, %v2254
    %v2256 = vrot.slane %v2245, %v2255
    %v2257 = vlaneseq
    %v2258 = vshrl.u32 %v2257, 7
    %v2259 = vsub.s32 0, %v2258
    %v2260 = vrot.slane %v2252, %v2259
    %v2263 = vadd.f32 %v2256, %v1185
    %v2264 = vadd.f32 %v2260, %v1185
    %v2265 = vsel %vm1224, %v2263, -inf
    %2266 = vmax.xlane.f32.xlu0 %v2265
    %v2267 = vpop.xlane.xlu0 %2266
    %v2268 = vsel %vm1224, %v2264, -inf
    %2269 = vmax.xlane.f32.xlu0 %v2268
    %v2270 = vpop.xlane.xlu0 %2269
    %vm2271 = vcmp.eq.f32.partialorder %v2263, %v2267
    %vm2272 = vcmp.eq.f32.partialorder %v2264, %v2270
    %v2273 = vsel %vm2271, %v1184, 5
    %v2274 = vsel %vm2272, %v1184, 5
    %v2275 = vsel %vm1224, %v2273, 2147483647
    %v2276 = vand.u32 %v2275, 65535
    %v2277 = vshra.s32 %v2275, 16
    %v2278 = vcvt.s32.f32 %v2276
    %v2279 = vcvt.s32.f32 %v2277
    %2280 = vmin.xlane.f32.xlu0 %v2279
    %v2281 = vpop.xlane.xlu0 %2280
    %vm2282 = vcmp.eq.f32.partialorder %v2279, %v2281
    %v2283 = vsel %vm2282, %v2278, inf
    %2284 = vmin.xlane.f32.xlu0 %v2283
    %v2285 = vpop.xlane.xlu0 %2284
    %v2286 = vcvt.f32.s32 %v2285
    %v2287 = vcvt.f32.s32 %v2281
    %v2288 = vshll.u32 %v2287, 16
    %v2289 = vadd.s32 %v2288, %v2286
    %v2290 = vsel %vm1224, %v2274, 2147483647
    %v2291 = vand.u32 %v2290, 65535
    %v2292 = vshra.s32 %v2290, 16
    %v2293 = vcvt.s32.f32 %v2291
    %v2294 = vcvt.s32.f32 %v2292
    %2295 = vmin.xlane.f32.xlu0 %v2294
    %v2296 = vpop.xlane.xlu0 %2295
    %vm2297 = vcmp.eq.f32.partialorder %v2294, %v2296
    %v2298 = vsel %vm2297, %v2293, inf
    %2299 = vmin.xlane.f32.xlu0 %v2298
    %v2300 = vpop.xlane.xlu0 %2299
    %v2301 = vcvt.f32.s32 %v2300
    %v2302 = vcvt.f32.s32 %v2296
    %v2303 = vshll.u32 %v2302, 16
    %v2304 = vadd.s32 %v2303, %v2301
    %v2305 = vlaneseq
    %v2306 = vshrl.u32 %v2305, 7
    %v2307 = vsub.s32 %v1184, %v2306
    %v2308 = vrot.slane %v2289, %v2307
    %v2309 = vlaneseq
    %v2310 = vshrl.u32 %v2309, 7
    %v2311 = vsub.s32 %v1184, %v2310
    %v2312 = vrot.slane %v2304, %v2311
    %v2313 = vsel %vm1273, %v2312, %v2308
    %s2314 = scalar_lea.vmem [#allocation4], 14
    %2315 = vst.msk [vmem:[%s2314] sm:$0x3] %vm1275, %v2313
    %v2316 = vld [vmem:[#allocation10 + $0xe] sm:$0x3]
    %v2317 = vld [vmem:[%s1084] sm:$0xf]
    %v2319 = vlaneseq
    %v2320 = vshrl.u32 %v2319, 7
    %v2321 = vsub.s32 0, %v2320
    %v2322 = vrot.slane %v2316, %v2321
    %2324 = vbcast.lane.b32.xlu0 %v2322, 256
    %v2325 = vpop.permute.xlu0 %2324
    %v2326 = vlaneseq
    %v2327 = vshrl.u32 %v2326, 7
    %v2328 = vsub.s32 1, %v2327
    %v2329 = vrot.slane %v2316, %v2328
    %2331 = vbcast.lane.b32.xlu0 %v2329, 256
    %v2332 = vpop.permute.xlu0 %2331
    %v2335 = vadd.f32 %v2267, %v2325
    %v2336 = vadd.f32 %v2270, %v2332
    %2338 = vset.pattern.permute.xlu0 0
    %2339 = vperm.xlu0 %2338, %v2317
    %v2340 = vpop.permute.xlu0 %2339
    %2344 = vset.pattern.permute.xlu0 0
    %2345 = vperm.xlu0 %2344, %v2335
    %v2346 = vpop.permute.xlu0 %2345
    %2347 = vset.pattern.permute.xlu0 0
    %2348 = vperm.xlu0 %2347, %v2336
    %v2349 = vpop.permute.xlu0 %2348
    %v2350 = vlaneseq
    %v2351 = vshrl.u32 %v2350, 7
    %v2352 = vsub.s32 %v1184, %v2351
    %v2353 = vrot.slane %v2346, %v2352
    %v2354 = vlaneseq
    %v2355 = vshrl.u32 %v2354, 7
    %v2356 = vsub.s32 %v1184, %v2355
    %v2357 = vrot.slane %v2349, %v2356
    %v2358 = vsel %vm1273, %v2357, %v2353
    %v2360 = vmul.f32 %v2340, %v2358
    %v2361 = vsub.f32 1.0, %v2317
    %2363 = vset.pattern.permute.xlu0 0
    %2364 = vperm.xlu0 %2363, %v2361
    %v2365 = vpop.permute.xlu0 %2364
    %v2367 = vmul.f32 %v2365, %v2229
    %v2368 = vadd.f32 %v2360, %v2367
    %s2369 = scalar_lea.vmem [#allocation6], 14
    %v2370 = vld [vmem:[%s2369] sm:$0x3]
    %2372 = vset.pattern.permute.xlu0 0
    %2373 = vperm.xlu0 %2372, %v2370
    %v2374 = vpop.permute.xlu0 %2373
    %v2376 = vmul.f32 %v2374, %v1339
    %v2377 = vadd.f32 %v2368, %v2376
    %v2378 = vsel %vm1275, %v2377, -inf
    %2379 = vmax.xlane.f32.xlu0 %v2378
    %v2380 = vpop.xlane.xlu0 %2379
    %vm2381 = vcmp.eq.f32.partialorder %v2377, %v2380
    %v2382 = vsel %vm2381, %v1184, 5
    %v2383 = vsel %vm1275, %v2382, 2147483647
    %v2384 = vand.u32 %v2383, 65535
    %v2385 = vshra.s32 %v2383, 16
    %v2386 = vcvt.s32.f32 %v2384
    %v2387 = vcvt.s32.f32 %v2385
    %2388 = vmin.xlane.f32.xlu0 %v2387
    %v2389 = vpop.xlane.xlu0 %2388
    %vm2390 = vcmp.eq.f32.partialorder %v2387, %v2389
    %v2391 = vsel %vm2390, %v2386, inf
    %2392 = vmin.xlane.f32.xlu0 %v2391
    %v2393 = vpop.xlane.xlu0 %2392
    %v2394 = vcvt.f32.s32 %v2393
    %v2395 = vcvt.f32.s32 %v2389
    %v2396 = vshll.u32 %v2395, 16
    %v2397 = vadd.s32 %v2396, %v2394
    %2398 = vst.msk [vmem:[%s9] sm:$0x3] %vm115, %v2380
    %s2399 = scalar_lea.vmem %s10, 14
    %2400 = vst.msk [vmem:[%s2399] sm:$0x3] %vm115, %v2397
    %v2401 = vld [vmem:[%s2314] sm:$0x3]
    %vm2402 = vcmp.eq.s32.totalorder %v1184, %v2397
    %v2403 = vsel %vm2402, %v2401, 0
    %v2404 = vsel %vm1275, %v2403, 0
    %v2405 = vand.u32 %v2404, 65535
    %v2406 = vshrl.u32 %v2404, 16
    %v2407 = vcvt.s32.f32 %v2405
    %v2408 = vcvt.s32.f32 %v2406
    %2409 = vadd.xlane.f32.xlu0 %v2407
    %v2410 = vpop.xlane.xlu0 %2409
    %2411 = vadd.xlane.f32.xlu0 %v2408
    %v2412 = vpop.xlane.xlu0 %2411
    %v2413 = vcvt.f32.s32 %v2410
    %v2414 = vcvt.f32.s32 %v2412
    %v2415 = vshll.u32 %v2414, 16
    %v2416 = vadd.s32 %v2415, %v2413
    %s2417 = scalar_lea.vmem %s10, 12
    %2418 = vst.msk [vmem:[%s2417] sm:$0x3] %vm115, %v2416
    %v2419 = vld [vmem:[%s2166] sm:$0x3]
    %vm2420 = vcmp.eq.s32.totalorder %v1184, %v2416
    %v2421 = vsel %vm2420, %v2419, 0
    %v2422 = vsel %vm1275, %v2421, 0
    %v2423 = vand.u32 %v2422, 65535
    %v2424 = vshrl.u32 %v2422, 16
    %v2425 = vcvt.s32.f32 %v2423
    %v2426 = vcvt.s32.f32 %v2424
    %2427 = vadd.xlane.f32.xlu0 %v2425
    %v2428 = vpop.xlane.xlu0 %2427
    %2429 = vadd.xlane.f32.xlu0 %v2426
    %v2430 = vpop.xlane.xlu0 %2429
    %v2431 = vcvt.f32.s32 %v2428
    %v2432 = vcvt.f32.s32 %v2430
    %v2433 = vshll.u32 %v2432, 16
    %v2434 = vadd.s32 %v2433, %v2431
    %s2435 = scalar_lea.vmem %s10, 10
    %2436 = vst.msk [vmem:[%s2435] sm:$0x3] %vm115, %v2434
    %v2437 = vld [vmem:[%s2018] sm:$0x3]
    %vm2438 = vcmp.eq.s32.totalorder %v1184, %v2434
    %v2439 = vsel %vm2438, %v2437, 0
    %v2440 = vsel %vm1275, %v2439, 0
    %v2441 = vand.u32 %v2440, 65535
    %v2442 = vshrl.u32 %v2440, 16
    %v2443 = vcvt.s32.f32 %v2441
    %v2444 = vcvt.s32.f32 %v2442
    %2445 = vadd.xlane.f32.xlu0 %v2443
    %v2446 = vpop.xlane.xlu0 %2445
    %2447 = vadd.xlane.f32.xlu0 %v2444
    %v2448 = vpop.xlane.xlu0 %2447
    %v2449 = vcvt.f32.s32 %v2446
    %v2450 = vcvt.f32.s32 %v2448
    %v2451 = vshll.u32 %v2450, 16
    %v2452 = vadd.s32 %v2451, %v2449
    %s2453 = scalar_lea.vmem %s10, 8
    %2454 = vst.msk [vmem:[%s2453] sm:$0x3] %vm115, %v2452
    %v2455 = vld [vmem:[%s1870] sm:$0x3]
    %vm2456 = vcmp.eq.s32.totalorder %v1184, %v2452
    %v2457 = vsel %vm2456, %v2455, 0
    %v2458 = vsel %vm1275, %v2457, 0
    %v2459 = vand.u32 %v2458, 65535
    %v2460 = vshrl.u32 %v2458, 16
    %v2461 = vcvt.s32.f32 %v2459
    %v2462 = vcvt.s32.f32 %v2460
    %2463 = vadd.xlane.f32.xlu0 %v2461
    %v2464 = vpop.xlane.xlu0 %2463
    %2465 = vadd.xlane.f32.xlu0 %v2462
    %v2466 = vpop.xlane.xlu0 %2465
    %v2467 = vcvt.f32.s32 %v2464
    %v2468 = vcvt.f32.s32 %v2466
    %v2469 = vshll.u32 %v2468, 16
    %v2470 = vadd.s32 %v2469, %v2467
    %s2471 = scalar_lea.vmem %s10, 6
    %2472 = vst.msk [vmem:[%s2471] sm:$0x3] %vm115, %v2470
    %v2473 = vld [vmem:[%s1722] sm:$0x3]
    %vm2474 = vcmp.eq.s32.totalorder %v1184, %v2470
    %v2475 = vsel %vm2474, %v2473, 0
    %v2476 = vsel %vm1275, %v2475, 0
    %v2477 = vand.u32 %v2476, 65535
    %v2478 = vshrl.u32 %v2476, 16
    %v2479 = vcvt.s32.f32 %v2477
    %v2480 = vcvt.s32.f32 %v2478
    %2481 = vadd.xlane.f32.xlu0 %v2479
    %v2482 = vpop.xlane.xlu0 %2481
    %2483 = vadd.xlane.f32.xlu0 %v2480
    %v2484 = vpop.xlane.xlu0 %2483
    %v2485 = vcvt.f32.s32 %v2482
    %v2486 = vcvt.f32.s32 %v2484
    %v2487 = vshll.u32 %v2486, 16
    %v2488 = vadd.s32 %v2487, %v2485
    %s2489 = scalar_lea.vmem %s10, 4
    %2490 = vst.msk [vmem:[%s2489] sm:$0x3] %vm115, %v2488
    %v2491 = vld [vmem:[%s1574] sm:$0x3]
    %vm2492 = vcmp.eq.s32.totalorder %v1184, %v2488
    %v2493 = vsel %vm2492, %v2491, 0
    %v2494 = vsel %vm1275, %v2493, 0
    %v2495 = vand.u32 %v2494, 65535
    %v2496 = vshrl.u32 %v2494, 16
    %v2497 = vcvt.s32.f32 %v2495
    %v2498 = vcvt.s32.f32 %v2496
    %2499 = vadd.xlane.f32.xlu0 %v2497
    %v2500 = vpop.xlane.xlu0 %2499
    %2501 = vadd.xlane.f32.xlu0 %v2498
    %v2502 = vpop.xlane.xlu0 %2501
    %v2503 = vcvt.f32.s32 %v2500
    %v2504 = vcvt.f32.s32 %v2502
    %v2505 = vshll.u32 %v2504, 16
    %v2506 = vadd.s32 %v2505, %v2503
    %s2507 = scalar_lea.vmem %s10, 2
    %2508 = vst.msk [vmem:[%s2507] sm:$0x3] %vm115, %v2506
    %v2509 = vld [vmem:[%s1426] sm:$0x3]
    %vm2510 = vcmp.eq.s32.totalorder %v1184, %v2506
    %v2511 = vsel %vm2510, %v2509, 0
    %v2512 = vsel %vm1275, %v2511, 0
    %v2513 = vand.u32 %v2512, 65535
    %v2514 = vshrl.u32 %v2512, 16
    %v2515 = vcvt.s32.f32 %v2513
    %v2516 = vcvt.s32.f32 %v2514
    %2517 = vadd.xlane.f32.xlu0 %v2515
    %v2518 = vpop.xlane.xlu0 %2517
    %2519 = vadd.xlane.f32.xlu0 %v2516
    %v2520 = vpop.xlane.xlu0 %2519
    %v2521 = vcvt.f32.s32 %v2518
    %v2522 = vcvt.f32.s32 %v2520
    %v2523 = vshll.u32 %v2522, 16
    %v2524 = vadd.s32 %v2523, %v2521
    %2525 = vst.msk [vmem:[%s10] sm:$0x3] %vm115, %v2524
    // Predicated region
    $region38: #{tpu_custom_call.1} parent=1 // pred_check
      _
    $region39: #{tpu_custom_call.1} parent=1 // pred_check_branch
      %2527 = sbr.rel (0) target = $region41
    $region40: #{tpu_custom_call.1} parent=1 // pred_region
      %s2529 = ssub.s32 256, 256
      %2530 = vsyncadd [#allocation9], %s2529
      %s2531 = sshll.u32 [#allocation10], 4
      %s2532 = int_to_ptr.vmem [resolvable:$true] %s2531
      %2537 = dma.vmem_to_hbm [thread:$0]  %s2532, 256, %s8, [#allocation9], 128, 128, 8
    $region41: #{tpu_custom_call.1} parent=1 // pred_fallthru
      _
    // Predicated region
    $region42: #{tpu_custom_call.1} parent=1 // pred_check
      _
    $region43: #{tpu_custom_call.1} parent=1 // pred_check_branch
      %2539 = sbr.rel (0) target = $region45
    $region44: #{tpu_custom_call.1} parent=1 // pred_region
      _
    $region45: #{tpu_custom_call.1} parent=1 // pred_fallthru
      _
    // Predicated region
    $region46: #{tpu_custom_call.1} parent=1 // pred_check
      _
    $region47: #{tpu_custom_call.1} parent=1 // pred_check_branch
      %2541 = sbr.rel (0) target = $region49
    $region48: #{tpu_custom_call.1} parent=1 // pred_region
      _
    $region49: #{tpu_custom_call.1} parent=1 // pred_fallthru
      _
    // Predicated region
    $region50: #{tpu_custom_call.1} parent=1 // pred_check
      _
    $region51: #{tpu_custom_call.1} parent=1 // pred_check_branch
      %2543 = sbr.rel (0) target = $region53
    $region52: #{tpu_custom_call.1} parent=1 // pred_region
      %2544 = dma.done [#allocation9], 256
    $region53: #{tpu_custom_call.1} parent=1 // pred_fallthru
      _
    // Predicated region
    $region54: #{tpu_custom_call.1} parent=1 // pred_check
      _
    $region55: #{tpu_custom_call.1} parent=1 // pred_check_branch
      %2546 = sbr.rel (0) target = $region57
    $region56: #{tpu_custom_call.1} parent=1 // pred_region
      _
    $region57: #{tpu_custom_call.1} parent=1 // pred_fallthru
      _
    // Predicated region
    $region58: #{tpu_custom_call.1} parent=1 // pred_check
      _
    $region59: #{tpu_custom_call.1} parent=1 // pred_check_branch
      %2548 = sbr.rel (0) target = $region61
    $region60: #{tpu_custom_call.1} parent=1 // pred_region
      _
    $region61: #{tpu_custom_call.1} parent=1 // pred_fallthru
      _
    %2549 = vsyncpa [#allocation8], 1
    %2550 = vsyncpa [#allocation9], 1

</llo_original>
